<compile_context>
chip_gen: v7x
topology: tpu7x:2x2x1
jax: 0.10.0
libtpu: 0.0.40
codegen_flags: <defaults>
</compile_context>

<pallas_src>
import functools

import jax
import jax.numpy as jnp
from jax.experimental import pallas as pl
from jax.experimental.pallas import tpu as pltpu

H = W = 28          # MNIST spatial size implied by fc = Linear(1*28*28, 10)
NUM_CLASSES = 10
OUT_PAD = 128       # fc output columns padded to a full lane group


def _round_up(x, m):
    return (x + m - 1) // m * m


def fold_weight_kernel(wp_ref, k_ref, we_ref):
    """Fold the 3x3 conv into the fc weight (runs once).

    wp_ref: (30, 30, 128) f32 VMEM  -- fc_w^T zero-padded to 128 out-columns,
            viewed as a (28,28,128) image and zero-padded by 1 pixel.
    k_ref:  (3, 3)        f32 SMEM  -- conv1 weight (scalars).
    we_ref: (28, 28, 128) f32 VMEM  -- effective weight image:
            we[r, c, o] = sum_{a,b} k[a,b] * Wimg[r+1-a, c+1-b, o]
            (zero outside the image), so that
            x_flat @ we.reshape(784,128) == flatten(conv(x)) @ fc_w^T (padded).
    """
    acc = jnp.zeros((H, W, OUT_PAD), jnp.float32)
    for a in range(3):
        for b in range(3):
            acc = acc + k_ref[a, b] * wp_ref[pl.ds(2 - a, H), pl.ds(2 - b, W), :]
    we_ref[...] = acc


def gemm_kernel(x_ref, w_ref, o_ref):
    """(TB, 784) @ (784, 128) on the MXU with f32 accumulation."""
    o_ref[...] = jnp.dot(x_ref[...], w_ref[...],
                         preferred_element_type=jnp.float32)


@functools.partial(jax.jit, static_argnames=("block_batch",))
def quantized_cnn_forward(x, conv_w, fc_w, *, block_batch=1024):
    """x: (N,1,28,28) f32, conv_w: (1,1,3,3) f32, fc_w: (10,784) f32 -> (N,10)."""
    n = x.shape[0]

    # ---- Kernel 1: fold conv1 into the fc weight (Pallas, single shot) ----
    wt = jnp.pad(fc_w.T, ((0, 0), (0, OUT_PAD - NUM_CLASSES)))       # (784,128)
    wt_img = jnp.pad(wt.reshape(H, W, OUT_PAD),
                     ((1, 1), (1, 1), (0, 0)))                       # (30,30,128)

    w_eff_img = pl.pallas_call(
        fold_weight_kernel,
        out_shape=jax.ShapeDtypeStruct((H, W, OUT_PAD), jnp.float32),
        in_specs=[
            pl.BlockSpec(memory_space=pltpu.MemorySpace.VMEM),
            pl.BlockSpec(memory_space=pltpu.MemorySpace.SMEM),
        ],
        out_specs=pl.BlockSpec(memory_space=pltpu.MemorySpace.VMEM),
    )(wt_img, conv_w[0, 0])
    w_eff = w_eff_img.reshape(H * W, OUT_PAD)                        # (784,128)

    # ---- Kernel 2: batch-tiled, pipelined GEMM (one HBM read of x) ----
    x_flat = x.reshape(n, H * W)          # contiguous NCHW, C==1 -> free reshape
    tb = min(_round_up(block_batch, 8), _round_up(n, 8))
    num_blocks = pl.cdiv(n, tb)           # partial last block handled by Pallas

    out = pl.pallas_call(
        gemm_kernel,
        # Output allocated block-aligned so every output DMA is a full,
        # unmasked, lane-dense tile; extra rows are sliced off below.
        out_shape=jax.ShapeDtypeStruct((num_blocks * tb, OUT_PAD), jnp.float32),
        grid=(num_blocks,),
        in_specs=[
            pl.BlockSpec((tb, H * W), lambda i: (i, 0)),
            pl.BlockSpec((H * W, OUT_PAD), lambda i: (0, 0)),   # resident weight
        ],
        out_specs=pl.BlockSpec((tb, OUT_PAD), lambda i: (i, 0)),
        compiler_params=pltpu.CompilerParams(
            dimension_semantics=("parallel",),
            vmem_limit_bytes=32 * 1024 * 1024),
    )(x_flat, w_eff)

    # QuantStub / DeQuantStub are identity in float mode -> no-ops.
    return out[:n, :NUM_CLASSES]


def reference_forward(x, conv_w, fc_w):
    """Pure-JAX reference mirroring the PyTorch module exactly."""
    n = x.shape[0]
    xp = jnp.pad(x[:, 0], ((0, 0), (1, 1), (1, 1)))
    k = conv_w[0, 0]
    acc = jnp.zeros((n, H, W), jnp.float32)
    for a in range(3):
        for b in range(3):
            acc = acc + k[a, b] * xp[:, a:a + H, b:b + W]
    return acc.reshape(n, H * W) @ fc_w.T


if __name__ == "__main__":
    key = jax.random.PRNGKey(0)
    k_x, k_conv, k_fc = jax.random.split(key, 3)

    conv_w = jax.random.normal(k_conv, (1, 1, 3, 3), dtype=jnp.float32) * 0.1
    fc_w = jax.random.normal(k_fc, (10, H * W), dtype=jnp.float32) * 0.05

    # Small demo batch (single, partially-filled tile).
    x_small = jax.random.normal(k_x, (2, 1, H, W), dtype=jnp.float32)
    out_small = jax.block_until_ready(quantized_cnn_forward(x_small, conv_w, fc_w))
    ref_small = reference_forward(x_small, conv_w, fc_w)
    assert out_small.shape == (2, 10), out_small.shape
    assert jnp.allclose(out_small, ref_small, atol=1e-3, rtol=1e-3), (
        "Pallas output mismatch vs reference (small batch)")

    # Multi-tile batch with a ragged final tile: exercises the grid, the
    # resident weight, and the partial-block path (600 = 2*256 + 88).
    x_big = jax.random.normal(k_x, (600, 1, H, W), dtype=jnp.float32)
    out_big = jax.block_until_ready(
        quantized_cnn_forward(x_big, conv_w, fc_w, block_batch=256))
    ref_big = reference_forward(x_big, conv_w, fc_w)
    assert out_big.shape == (600, 10), out_big.shape
    assert jnp.allclose(out_big, ref_big, atol=1e-3, rtol=1e-3), (
        "Pallas output mismatch vs reference (large batch)")

    print("KERNEL_OK")
</pallas_src>

<mosaic_0001>
module attributes {stable_mosaic.version = 11 : i64} {
  func.func @fold_weight_kernel(%arg0: memref<30x30x128xf32, #tpu.memory_space<vmem>>, %arg1: memref<3x3xf32, #tpu.memory_space<smem>>, %arg2: memref<28x28x128xf32, #tpu.memory_space<vmem>>) attributes {dimension_semantics = [], scalar_prefetch = 0 : i64, scratch_operands = 0 : i64, tpu.core_type = #tpu.core_type<tc>} {
    %cst = arith.constant 0.000000e+00 : f32
    %0 = vector.broadcast %cst : f32 to vector<28x28x128xf32>
    %c0 = arith.constant 0 : index
    %c0_0 = arith.constant 0 : index
    %1 = memref.load %arg1[%c0, %c0_0] : memref<3x3xf32, #tpu.memory_space<smem>>
    %c2 = arith.constant 2 : index
    %c2_1 = arith.constant 2 : index
    %c0_2 = arith.constant 0 : index
    %2 = vector.load %arg0[%c2, %c2_1, %c0_2] : memref<30x30x128xf32, #tpu.memory_space<vmem>>, vector<28x28x128xf32>
    %3 = vector.broadcast %1 : f32 to vector<28x28x128xf32>
    %4 = arith.mulf %3, %2 : vector<28x28x128xf32>
    %5 = arith.addf %0, %4 : vector<28x28x128xf32>
    %c0_3 = arith.constant 0 : index
    %c1 = arith.constant 1 : index
    %6 = memref.load %arg1[%c0_3, %c1] : memref<3x3xf32, #tpu.memory_space<smem>>
    %c2_4 = arith.constant 2 : index
    %c1_5 = arith.constant 1 : index
    %c0_6 = arith.constant 0 : index
    %7 = vector.load %arg0[%c2_4, %c1_5, %c0_6] : memref<30x30x128xf32, #tpu.memory_space<vmem>>, vector<28x28x128xf32>
    %8 = vector.broadcast %6 : f32 to vector<28x28x128xf32>
    %9 = arith.mulf %8, %7 : vector<28x28x128xf32>
    %10 = arith.addf %5, %9 : vector<28x28x128xf32>
    %c0_7 = arith.constant 0 : index
    %c2_8 = arith.constant 2 : index
    %11 = memref.load %arg1[%c0_7, %c2_8] : memref<3x3xf32, #tpu.memory_space<smem>>
    %c2_9 = arith.constant 2 : index
    %c0_10 = arith.constant 0 : index
    %c0_11 = arith.constant 0 : index
    %12 = vector.load %arg0[%c2_9, %c0_10, %c0_11] : memref<30x30x128xf32, #tpu.memory_space<vmem>>, vector<28x28x128xf32>
    %13 = vector.broadcast %11 : f32 to vector<28x28x128xf32>
    %14 = arith.mulf %13, %12 : vector<28x28x128xf32>
    %15 = arith.addf %10, %14 : vector<28x28x128xf32>
    %c1_12 = arith.constant 1 : index
    %c0_13 = arith.constant 0 : index
    %16 = memref.load %arg1[%c1_12, %c0_13] : memref<3x3xf32, #tpu.memory_space<smem>>
    %c1_14 = arith.constant 1 : index
    %c2_15 = arith.constant 2 : index
    %c0_16 = arith.constant 0 : index
    %17 = vector.load %arg0[%c1_14, %c2_15, %c0_16] : memref<30x30x128xf32, #tpu.memory_space<vmem>>, vector<28x28x128xf32>
    %18 = vector.broadcast %16 : f32 to vector<28x28x128xf32>
    %19 = arith.mulf %18, %17 : vector<28x28x128xf32>
    %20 = arith.addf %15, %19 : vector<28x28x128xf32>
    %c1_17 = arith.constant 1 : index
    %c1_18 = arith.constant 1 : index
    %21 = memref.load %arg1[%c1_17, %c1_18] : memref<3x3xf32, #tpu.memory_space<smem>>
    %c1_19 = arith.constant 1 : index
    %c1_20 = arith.constant 1 : index
    %c0_21 = arith.constant 0 : index
    %22 = vector.load %arg0[%c1_19, %c1_20, %c0_21] : memref<30x30x128xf32, #tpu.memory_space<vmem>>, vector<28x28x128xf32>
    %23 = vector.broadcast %21 : f32 to vector<28x28x128xf32>
    %24 = arith.mulf %23, %22 : vector<28x28x128xf32>
    %25 = arith.addf %20, %24 : vector<28x28x128xf32>
    %c1_22 = arith.constant 1 : index
    %c2_23 = arith.constant 2 : index
    %26 = memref.load %arg1[%c1_22, %c2_23] : memref<3x3xf32, #tpu.memory_space<smem>>
    %c1_24 = arith.constant 1 : index
    %c0_25 = arith.constant 0 : index
    %c0_26 = arith.constant 0 : index
    %27 = vector.load %arg0[%c1_24, %c0_25, %c0_26] : memref<30x30x128xf32, #tpu.memory_space<vmem>>, vector<28x28x128xf32>
    %28 = vector.broadcast %26 : f32 to vector<28x28x128xf32>
    %29 = arith.mulf %28, %27 : vector<28x28x128xf32>
    %30 = arith.addf %25, %29 : vector<28x28x128xf32>
    %c2_27 = arith.constant 2 : index
    %c0_28 = arith.constant 0 : index
    %31 = memref.load %arg1[%c2_27, %c0_28] : memref<3x3xf32, #tpu.memory_space<smem>>
    %c0_29 = arith.constant 0 : index
    %c2_30 = arith.constant 2 : index
    %c0_31 = arith.constant 0 : index
    %32 = vector.load %arg0[%c0_29, %c2_30, %c0_31] : memref<30x30x128xf32, #tpu.memory_space<vmem>>, vector<28x28x128xf32>
    %33 = vector.broadcast %31 : f32 to vector<28x28x128xf32>
    %34 = arith.mulf %33, %32 : vector<28x28x128xf32>
    %35 = arith.addf %30, %34 : vector<28x28x128xf32>
    %c2_32 = arith.constant 2 : index
    %c1_33 = arith.constant 1 : index
    %36 = memref.load %arg1[%c2_32, %c1_33] : memref<3x3xf32, #tpu.memory_space<smem>>
    %c0_34 = arith.constant 0 : index
    %c1_35 = arith.constant 1 : index
    %c0_36 = arith.constant 0 : index
    %37 = vector.load %arg0[%c0_34, %c1_35, %c0_36] : memref<30x30x128xf32, #tpu.memory_space<vmem>>, vector<28x28x128xf32>
    %38 = vector.broadcast %36 : f32 to vector<28x28x128xf32>
    %39 = arith.mulf %38, %37 : vector<28x28x128xf32>
    %40 = arith.addf %35, %39 : vector<28x28x128xf32>
    %c2_37 = arith.constant 2 : index
    %c2_38 = arith.constant 2 : index
    %41 = memref.load %arg1[%c2_37, %c2_38] : memref<3x3xf32, #tpu.memory_space<smem>>
    %c0_39 = arith.constant 0 : index
    %c0_40 = arith.constant 0 : index
    %c0_41 = arith.constant 0 : index
    %42 = vector.load %arg0[%c0_39, %c0_40, %c0_41] : memref<30x30x128xf32, #tpu.memory_space<vmem>>, vector<28x28x128xf32>
    %43 = vector.broadcast %41 : f32 to vector<28x28x128xf32>
    %44 = arith.mulf %43, %42 : vector<28x28x128xf32>
    %45 = arith.addf %40, %44 : vector<28x28x128xf32>
    %c0_42 = arith.constant 0 : index
    %c0_43 = arith.constant 0 : index
    %c0_44 = arith.constant 0 : index
    %46 = vector.load %arg2[%c0_42, %c0_43, %c0_44] : memref<28x28x128xf32, #tpu.memory_space<vmem>>, vector<28x28x128xf32>
    tpu.vector_store %arg2[%c0_42, %c0_43, %c0_44], %45 {strides = array<i32>} : memref<28x28x128xf32, #tpu.memory_space<vmem>>, vector<28x28x128xf32>,
    return
  }
}

module attributes {stable_mosaic.version = 11 : i64} {
  func.func @gemm_kernel(%arg0: i32, %arg1: memref<8x784xf32, #tpu.memory_space<vmem>>, %arg2: memref<784x128xf32, #tpu.memory_space<vmem>>, %arg3: memref<8x128xf32, #tpu.memory_space<vmem>>) attributes {dimension_semantics = [#tpu.dimension_semantics<parallel>], iteration_bounds = array<i64: 1>, scalar_prefetch = 0 : i64, scratch_operands = 0 : i64, tpu.core_type = #tpu.core_type<tc>, window_params = [{transform_indices = @transform_0, window_bounds = array<i64: 8, 784>}, {pipeline_mode = #tpu.pipeline_mode<synchronous>, transform_indices = @transform_1, window_bounds = array<i64: 784, 128>}, {transform_indices = @transform_2, window_bounds = array<i64: 8, 128>}]} {
    %c0 = arith.constant 0 : index
    %c0_0 = arith.constant 0 : index
    %0 = vector.load %arg1[%c0, %c0_0] : memref<8x784xf32, #tpu.memory_space<vmem>>, vector<8x784xf32>
    %c0_1 = arith.constant 0 : index
    %c0_2 = arith.constant 0 : index
    %1 = vector.load %arg2[%c0_1, %c0_2] : memref<784x128xf32, #tpu.memory_space<vmem>>, vector<784x128xf32>
    %cst = arith.constant dense<0.000000e+00> : vector<8x128xf32>
    %2 = tpu.matmul %0, %1, %cst {dimension_numbers = #tpu.dot_dimension_numbers<[1], [0], [0], [1], [0, 0, 1, 1], [], []>} : vector<8x784xf32>, vector<784x128xf32>, vector<8x128xf32> -> vector<8x128xf32>
    %c0_3 = arith.constant 0 : index
    %c0_4 = arith.constant 0 : index
    %3 = vector.load %arg3[%c0_3, %c0_4] : memref<8x128xf32, #tpu.memory_space<vmem>>, vector<8x128xf32>
    tpu.vector_store %arg3[%c0_3, %c0_4], %2 {strides = array<i32>} : memref<8x128xf32, #tpu.memory_space<vmem>>, vector<8x128xf32>,
    return
  }
  func.func @transform_0(%arg0: i32) -> (i32, i32) {
    %c0_i32 = arith.constant 0 : i32
    %c0_i32_0 = arith.constant 0 : i32
    return %arg0, %c0_i32 : i32, i32
  }
  func.func @transform_1(%arg0: i32) -> (i32, i32) {
    %c0_i32 = arith.constant 0 : i32
    %c0_i32_0 = arith.constant 0 : i32
    %c0_i32_1 = arith.constant 0 : i32
    return %c0_i32, %c0_i32_0 : i32, i32
  }
  func.func @transform_2(%arg0: i32) -> (i32, i32) {
    %c0_i32 = arith.constant 0 : i32
    %c0_i32_0 = arith.constant 0 : i32
    return %arg0, %c0_i32 : i32, i32
  }
}

</mosaic_0001>

<llo_original>
// kernel: quantized_cnn_forward.3
$region0: #{quantized_cnn_forward.3}
  #allocation0 [shape = 'u32[]', space=smem, size = 0x4, offset = 0x4, fixed_abs, tag = 'smem constant byte address 0x4 - core index']
  #allocation1 [shape = 'u32[144,128]{1,0:T(1,128)}', space=vmem, size = 0x12000, scoped, tag = 'internal scratch']
  %s0 = inlined_call_operand.vmem [shape: f32[2,784], index: 0, kind: input, shape index: {}]
  %s1 = inlined_call_operand.vmem [shape: f32[784,128], index: 1, kind: input, shape index: {}]
  %s2 = inlined_call_operand.vmem [shape: f32[8,128], index: 2, kind: output, shape index: {}]
  %s3 = sld [smem:[#allocation0]]
  $region18: #{quantized_cnn_forward.3} parent=0
    _
  %s5 = ssub.s32 1, %s3
  %s6 = scalar_select 0, %s5, %s3
  // Predicated region
  $region2: #{quantized_cnn_forward.3} parent=0 // pred_check
    _
  $region3: #{quantized_cnn_forward.3} parent=0 // pred_check_branch
    %8 = sbr.rel (0) target = $region5
  $region4: #{quantized_cnn_forward.3} parent=0 // pred_region
    _
  $region5: #{quantized_cnn_forward.3} parent=0 // pred_fallthru
    _
  // Predicated region
  $region6: #{quantized_cnn_forward.3} parent=0 // pred_check
    _
  $region7: #{quantized_cnn_forward.3} parent=0 // pred_check_branch
    %10 = sbr.rel (0) target = $region9
  $region8: #{quantized_cnn_forward.3} parent=0 // pred_region
    _
  $region9: #{quantized_cnn_forward.3} parent=0 // pred_fallthru
    _
  %v11 = vld [vmem:[%s0] sm:$0xff]
  %v12 = vld [vmem:[%s0 + $0x8] sm:$0x3f]
  %v13 = vld [vmem:[%s0 + $0xe] sm:$0xff]
  %v14 = vld [vmem:[%s0 + $0x16] sm:$0x3f]
  %v15 = vld [vmem:[%s0 + $0x1c] sm:$0xff]
  %v16 = vld [vmem:[%s0 + $0x24] sm:$0x3f]
  %v17 = vld [vmem:[%s0 + $0x2a] sm:$0xff]
  %v18 = vld [vmem:[%s0 + $0x32] sm:$0x3f]
  %v19 = vld [vmem:[%s1] sm:$0xff]
  %v20 = vld [vmem:[%s1 + $0x8] sm:$0xff]
  %v21 = vld [vmem:[%s1 + $0x10] sm:$0xff]
  %v22 = vld [vmem:[%s1 + $0x18] sm:$0xff]
  %v23 = vld [vmem:[%s1 + $0x20] sm:$0xff]
  %v24 = vld [vmem:[%s1 + $0x28] sm:$0xff]
  %v25 = vld [vmem:[%s1 + $0x30] sm:$0xff]
  %v26 = vld [vmem:[%s1 + $0x38] sm:$0xff]
  %v27 = vld [vmem:[%s1 + $0x40] sm:$0xff]
  %v28 = vld [vmem:[%s1 + $0x48] sm:$0xff]
  %v29 = vld [vmem:[%s1 + $0x50] sm:$0xff]
  %v30 = vld [vmem:[%s1 + $0x58] sm:$0xff]
  %v31 = vld [vmem:[%s1 + $0x60] sm:$0xff]
  %v32 = vld [vmem:[%s1 + $0x68] sm:$0xff]
  %v33 = vld [vmem:[%s1 + $0x70] sm:$0xff]
  %v34 = vld [vmem:[%s1 + $0x78] sm:$0xff]
  %v35 = vld [vmem:[%s1 + $0x80] sm:$0xff]
  %v36 = vld [vmem:[%s1 + $0x88] sm:$0xff]
  %v37 = vld [vmem:[%s1 + $0x90] sm:$0xff]
  %v38 = vld [vmem:[%s1 + $0x98] sm:$0xff]
  %v39 = vld [vmem:[%s1 + $0xa0] sm:$0xff]
  %v40 = vld [vmem:[%s1 + $0xa8] sm:$0xff]
  %v41 = vld [vmem:[%s1 + $0xb0] sm:$0xff]
  %v42 = vld [vmem:[%s1 + $0xb8] sm:$0xff]
  %v43 = vld [vmem:[%s1 + $0xc0] sm:$0xff]
  %v44 = vld [vmem:[%s1 + $0xc8] sm:$0xff]
  %v45 = vld [vmem:[%s1 + $0xd0] sm:$0xff]
  %v46 = vld [vmem:[%s1 + $0xd8] sm:$0xff]
  %v47 = vld [vmem:[%s1 + $0xe0] sm:$0xff]
  %v48 = vld [vmem:[%s1 + $0xe8] sm:$0xff]
  %v49 = vld [vmem:[%s1 + $0xf0] sm:$0xff]
  %v50 = vld [vmem:[%s1 + $0xf8] sm:$0xff]
  %v51 = vld [vmem:[%s1 + $0x100] sm:$0xff]
  %v52 = vld [vmem:[%s1 + $0x108] sm:$0xff]
  %v53 = vld [vmem:[%s1 + $0x110] sm:$0xff]
  %v54 = vld [vmem:[%s1 + $0x118] sm:$0xff]
  %v55 = vld [vmem:[%s1 + $0x120] sm:$0xff]
  %v56 = vld [vmem:[%s1 + $0x128] sm:$0xff]
  %v57 = vld [vmem:[%s1 + $0x130] sm:$0xff]
  %v58 = vld [vmem:[%s1 + $0x138] sm:$0xff]
  %v59 = vld [vmem:[%s1 + $0x140] sm:$0xff]
  %v60 = vld [vmem:[%s1 + $0x148] sm:$0xff]
  %v61 = vld [vmem:[%s1 + $0x150] sm:$0xff]
  %v62 = vld [vmem:[%s1 + $0x158] sm:$0xff]
  %v63 = vld [vmem:[%s1 + $0x160] sm:$0xff]
  %v64 = vld [vmem:[%s1 + $0x168] sm:$0xff]
  %v65 = vld [vmem:[%s1 + $0x170] sm:$0xff]
  %v66 = vld [vmem:[%s1 + $0x178] sm:$0xff]
  %v67 = vld [vmem:[%s1 + $0x180] sm:$0xff]
  %v68 = vld [vmem:[%s1 + $0x188] sm:$0xff]
  %v69 = vld [vmem:[%s1 + $0x190] sm:$0xff]
  %v70 = vld [vmem:[%s1 + $0x198] sm:$0xff]
  %v71 = vld [vmem:[%s1 + $0x1a0] sm:$0xff]
  %v72 = vld [vmem:[%s1 + $0x1a8] sm:$0xff]
  %v73 = vld [vmem:[%s1 + $0x1b0] sm:$0xff]
  %v74 = vld [vmem:[%s1 + $0x1b8] sm:$0xff]
  %v75 = vld [vmem:[%s1 + $0x1c0] sm:$0xff]
  %v76 = vld [vmem:[%s1 + $0x1c8] sm:$0xff]
  %v77 = vld [vmem:[%s1 + $0x1d0] sm:$0xff]
  %v78 = vld [vmem:[%s1 + $0x1d8] sm:$0xff]
  %v79 = vld [vmem:[%s1 + $0x1e0] sm:$0xff]
  %v80 = vld [vmem:[%s1 + $0x1e8] sm:$0xff]
  %v81 = vld [vmem:[%s1 + $0x1f0] sm:$0xff]
  %v82 = vld [vmem:[%s1 + $0x1f8] sm:$0xff]
  %v83 = vld [vmem:[%s1 + $0x200] sm:$0xff]
  %v84 = vld [vmem:[%s1 + $0x208] sm:$0xff]
  %v85 = vld [vmem:[%s1 + $0x210] sm:$0xff]
  %v86 = vld [vmem:[%s1 + $0x218] sm:$0xff]
  %v87 = vld [vmem:[%s1 + $0x220] sm:$0xff]
  %v88 = vld [vmem:[%s1 + $0x228] sm:$0xff]
  %v89 = vld [vmem:[%s1 + $0x230] sm:$0xff]
  %v90 = vld [vmem:[%s1 + $0x238] sm:$0xff]
  %v91 = vld [vmem:[%s1 + $0x240] sm:$0xff]
  %v92 = vld [vmem:[%s1 + $0x248] sm:$0xff]
  %v93 = vld [vmem:[%s1 + $0x250] sm:$0xff]
  %v94 = vld [vmem:[%s1 + $0x258] sm:$0xff]
  %v95 = vld [vmem:[%s1 + $0x260] sm:$0xff]
  %v96 = vld [vmem:[%s1 + $0x268] sm:$0xff]
  %v97 = vld [vmem:[%s1 + $0x270] sm:$0xff]
  %v98 = vld [vmem:[%s1 + $0x278] sm:$0xff]
  %v99 = vld [vmem:[%s1 + $0x280] sm:$0xff]
  %v100 = vld [vmem:[%s1 + $0x288] sm:$0xff]
  %v101 = vld [vmem:[%s1 + $0x290] sm:$0xff]
  %v102 = vld [vmem:[%s1 + $0x298] sm:$0xff]
  %v103 = vld [vmem:[%s1 + $0x2a0] sm:$0xff]
  %v104 = vld [vmem:[%s1 + $0x2a8] sm:$0xff]
  %v105 = vld [vmem:[%s1 + $0x2b0] sm:$0xff]
  %v106 = vld [vmem:[%s1 + $0x2b8] sm:$0xff]
  %v107 = vld [vmem:[%s1 + $0x2c0] sm:$0xff]
  %v108 = vld [vmem:[%s1 + $0x2c8] sm:$0xff]
  %v109 = vld [vmem:[%s1 + $0x2d0] sm:$0xff]
  %v110 = vld [vmem:[%s1 + $0x2d8] sm:$0xff]
  %v111 = vld [vmem:[%s1 + $0x2e0] sm:$0xff]
  %v112 = vld [vmem:[%s1 + $0x2e8] sm:$0xff]
  %v113 = vld [vmem:[%s1 + $0x2f0] sm:$0xff]
  %v114 = vld [vmem:[%s1 + $0x2f8] sm:$0xff]
  %v115 = vld [vmem:[%s1 + $0x300] sm:$0xff]
  %v116 = vld [vmem:[%s1 + $0x308] sm:$0xff]
  %v125 = vcombine.low %v11, %v13
  %v126 = vcombine.high %v11, %v13
  %v127 = vcombine.low %v15, %v17
  %v128 = vcombine.high %v15, %v17
  %v130 = vunpack.c.l.s4 1983009808
  %v131 = vunpack.c.0.s8 %v130
  %v132 = vlaneseq
  %v133 = vshrl.u32 %v132, 7
  %v134 = vsub.s32 %v131, %v133
  %v135 = vrot.slane %v125, %v134
  %v137 = vunpack.c.l.s4 1983009808
  %v138 = vunpack.c.0.s8 %v137
  %v139 = vlaneseq
  %v140 = vshrl.u32 %v139, 7
  %v141 = vsub.s32 %v138, %v140
  %v142 = vrot.slane %v126, %v141
  %v144 = vunpack.c.l.s4 1983009808
  %v145 = vunpack.c.0.s8 %v144
  %v146 = vlaneseq
  %v147 = vshrl.u32 %v146, 7
  %v148 = vsub.s32 %v145, %v147
  %v149 = vrot.slane %v127, %v148
  %v151 = vunpack.c.l.s4 1983009808
  %v152 = vunpack.c.0.s8 %v151
  %v153 = vlaneseq
  %v154 = vshrl.u32 %v153, 7
  %v155 = vsub.s32 %v152, %v154
  %v156 = vrot.slane %v128, %v155
  %v157 = vcombine.low %v135, %v149
  %v158 = vcombine.high %v135, %v149
  %v159 = vcombine.low %v142, %v156
  %v160 = vcombine.high %v142, %v156
  %v161 = vcombine.low %v12, %v14
  %v162 = vcombine.high %v12, %v14
  %v163 = vcombine.low %v16, %v18
  %v164 = vcombine.high %v16, %v18
  %v166 = vunpack.c.l.s4 1983009808
  %v167 = vunpack.c.0.s8 %v166
  %v168 = vlaneseq
  %v169 = vshrl.u32 %v168, 7
  %v170 = vsub.s32 %v167, %v169
  %v171 = vrot.slane %v161, %v170
  %v173 = vunpack.c.l.s4 1983009808
  %v174 = vunpack.c.0.s8 %v173
  %v175 = vlaneseq
  %v176 = vshrl.u32 %v175, 7
  %v177 = vsub.s32 %v174, %v176
  %v178 = vrot.slane %v162, %v177
  %v180 = vunpack.c.l.s4 1983009808
  %v181 = vunpack.c.0.s8 %v180
  %v182 = vlaneseq
  %v183 = vshrl.u32 %v182, 7
  %v184 = vsub.s32 %v181, %v183
  %v185 = vrot.slane %v163, %v184
  %v187 = vunpack.c.l.s4 1983009808
  %v188 = vunpack.c.0.s8 %v187
  %v189 = vlaneseq
  %v190 = vshrl.u32 %v189, 7
  %v191 = vsub.s32 %v188, %v190
  %v192 = vrot.slane %v164, %v191
  %v193 = vcombine.low %v171, %v185
  %v194 = vcombine.high %v171, %v185
  %v195 = vcombine.low %v178, %v192
  %vm202 = vcmask 130048
  %v203 = vsel %vm202, %v195, 0
  %205 = vmatprep.subr.mxu0 0.0
  %206 = vmatpush1.msra.mxu0 %v19
  %207 = vmatprep.subr.mxu0 0.0
  %208 = vmatpush1.msra.mxu0 %v20
  %209 = vmatprep.subr.mxu0 0.0
  %210 = vmatpush1.msra.mxu0 %v21
  %211 = vmatprep.subr.mxu0 0.0
  %212 = vmatpush1.msra.mxu0 %v22
  %213 = vmatprep.subr.mxu0 0.0
  %214 = vmatpush1.msra.mxu0 %v23
  %215 = vmatprep.subr.mxu0 0.0
  %216 = vmatpush1.msra.mxu0 %v24
  %217 = vmatprep.subr.mxu0 0.0
  %218 = vmatpush1.msra.mxu0 %v25
  %219 = vmatprep.subr.mxu0 0.0
  %220 = vmatpush1.msra.mxu0 %v26
  %221 = vmatprep.subr.mxu0 0.0
  %222 = vmatpush1.msra.mxu0 %v27
  %223 = vmatprep.subr.mxu0 0.0
  %224 = vmatpush1.msra.mxu0 %v28
  %225 = vmatprep.subr.mxu0 0.0
  %226 = vmatpush1.msra.mxu0 %v29
  %227 = vmatprep.subr.mxu0 0.0
  %228 = vmatpush1.msra.mxu0 %v30
  %229 = vmatprep.subr.mxu0 0.0
  %230 = vmatpush1.msra.mxu0 %v31
  %231 = vmatprep.subr.mxu0 0.0
  %232 = vmatpush1.msra.mxu0 %v32
  %233 = vmatprep.subr.mxu0 0.0
  %234 = vmatpush1.msra.mxu0 %v33
  %235 = vmatprep.subr.mxu0 0.0
  %236 = vmatpush1.msra.mxu0 %v34
  %237 = vmatprep.subr.mxu0 0.0
  %238 = vmatpush1.msra.mxu0 %v35
  %239 = vmatprep.subr.mxu0 0.0
  %240 = vmatpush1.msra.mxu0 %v36
  %241 = vmatprep.subr.mxu0 0.0
  %242 = vmatpush1.msra.mxu0 %v37
  %243 = vmatprep.subr.mxu0 0.0
  %244 = vmatpush1.msra.mxu0 %v38
  %245 = vmatprep.subr.mxu0 0.0
  %246 = vmatpush1.msra.mxu0 %v39
  %247 = vmatprep.subr.mxu0 0.0
  %248 = vmatpush1.msra.mxu0 %v40
  %249 = vmatprep.subr.mxu0 0.0
  %250 = vmatpush1.msra.mxu0 %v41
  %251 = vmatprep.subr.mxu0 0.0
  %252 = vmatpush1.msra.mxu0 %v42
  %253 = vmatprep.subr.mxu0 0.0
  %254 = vmatpush1.msra.mxu0 %v43
  %255 = vmatprep.subr.mxu0 0.0
  %256 = vmatpush1.msra.mxu0 %v44
  %257 = vmatprep.subr.mxu0 0.0
  %258 = vmatpush1.msra.mxu0 %v45
  %259 = vmatprep.subr.mxu0 0.0
  %260 = vmatpush1.msra.mxu0 %v46
  %261 = vmatprep.subr.mxu0 0.0
  %262 = vmatpush1.msra.mxu0 %v47
  %263 = vmatprep.subr.mxu0 0.0
  %264 = vmatpush1.msra.mxu0 %v48
  %265 = vmatprep.subr.mxu0 0.0
  %266 = vmatpush1.msra.mxu0 %v49
  %267 = vmatprep.subr.mxu0 0.0
  %268 = vmatpush1.msra.mxu0 %v50
  %269 = vmatprep.mubr.f32.mxu0 %v158
  %270 = vmatmul.mubr.f32.gmra.mrb[0].mxu0 %v157
  %v271 = vpop.f32.mrb[0].mxu0
  %v272 = vadd.f32 0.0, %v271
  %v273 = vpop.f32.mrb[0].mxu0
  %274 = vdwg.mxu0
  %275 = vmatprep.subr.mxu0 0.0
  %276 = vmatpush1.msra.mxu0 %v51
  %277 = vmatprep.subr.mxu0 0.0
  %278 = vmatpush1.msra.mxu0 %v52
  %279 = vmatprep.subr.mxu0 0.0
  %280 = vmatpush1.msra.mxu0 %v53
  %281 = vmatprep.subr.mxu0 0.0
  %282 = vmatpush1.msra.mxu0 %v54
  %283 = vmatprep.subr.mxu0 0.0
  %284 = vmatpush1.msra.mxu0 %v55
  %285 = vmatprep.subr.mxu0 0.0
  %286 = vmatpush1.msra.mxu0 %v56
  %287 = vmatprep.subr.mxu0 0.0
  %288 = vmatpush1.msra.mxu0 %v57
  %289 = vmatprep.subr.mxu0 0.0
  %290 = vmatpush1.msra.mxu0 %v58
  %291 = vmatprep.subr.mxu0 0.0
  %292 = vmatpush1.msra.mxu0 %v59
  %293 = vmatprep.subr.mxu0 0.0
  %294 = vmatpush1.msra.mxu0 %v60
  %295 = vmatprep.subr.mxu0 0.0
  %296 = vmatpush1.msra.mxu0 %v61
  %297 = vmatprep.subr.mxu0 0.0
  %298 = vmatpush1.msra.mxu0 %v62
  %299 = vmatprep.subr.mxu0 0.0
  %300 = vmatpush1.msra.mxu0 %v63
  %301 = vmatprep.subr.mxu0 0.0
  %302 = vmatpush1.msra.mxu0 %v64
  %303 = vmatprep.subr.mxu0 0.0
  %304 = vmatpush1.msra.mxu0 %v65
  %305 = vmatprep.subr.mxu0 0.0
  %306 = vmatpush1.msra.mxu0 %v66
  %307 = vmatprep.subr.mxu0 0.0
  %308 = vmatpush1.msra.mxu0 %v67
  %309 = vmatprep.subr.mxu0 0.0
  %310 = vmatpush1.msra.mxu0 %v68
  %311 = vmatprep.subr.mxu0 0.0
  %312 = vmatpush1.msra.mxu0 %v69
  %313 = vmatprep.subr.mxu0 0.0
  %314 = vmatpush1.msra.mxu0 %v70
  %315 = vmatprep.subr.mxu0 0.0
  %316 = vmatpush1.msra.mxu0 %v71
  %317 = vmatprep.subr.mxu0 0.0
  %318 = vmatpush1.msra.mxu0 %v72
  %319 = vmatprep.subr.mxu0 0.0
  %320 = vmatpush1.msra.mxu0 %v73
  %321 = vmatprep.subr.mxu0 0.0
  %322 = vmatpush1.msra.mxu0 %v74
  %323 = vmatprep.subr.mxu0 0.0
  %324 = vmatpush1.msra.mxu0 %v75
  %325 = vmatprep.subr.mxu0 0.0
  %326 = vmatpush1.msra.mxu0 %v76
  %327 = vmatprep.subr.mxu0 0.0
  %328 = vmatpush1.msra.mxu0 %v77
  %329 = vmatprep.subr.mxu0 0.0
  %330 = vmatpush1.msra.mxu0 %v78
  %331 = vmatprep.subr.mxu0 0.0
  %332 = vmatpush1.msra.mxu0 %v79
  %333 = vmatprep.subr.mxu0 0.0
  %334 = vmatpush1.msra.mxu0 %v80
  %335 = vmatprep.subr.mxu0 0.0
  %336 = vmatpush1.msra.mxu0 %v81
  %337 = vmatprep.subr.mxu0 0.0
  %338 = vmatpush1.msra.mxu0 %v82
  %339 = vmatprep.mubr.f32.mxu0 %v160
  %340 = vmatmul.mubr.f32.gmra.mrb[0].mxu0 %v159
  %v341 = vpop.f32.mrb[0].mxu0
  %v342 = vadd.f32 %v272, %v341
  %v343 = vpop.f32.mrb[0].mxu0
  %344 = vdwg.mxu0
  %345 = vmatprep.subr.mxu0 0.0
  %346 = vmatpush1.msra.mxu0 %v83
  %347 = vmatprep.subr.mxu0 0.0
  %348 = vmatpush1.msra.mxu0 %v84
  %349 = vmatprep.subr.mxu0 0.0
  %350 = vmatpush1.msra.mxu0 %v85
  %351 = vmatprep.subr.mxu0 0.0
  %352 = vmatpush1.msra.mxu0 %v86
  %353 = vmatprep.subr.mxu0 0.0
  %354 = vmatpush1.msra.mxu0 %v87
  %355 = vmatprep.subr.mxu0 0.0
  %356 = vmatpush1.msra.mxu0 %v88
  %357 = vmatprep.subr.mxu0 0.0
  %358 = vmatpush1.msra.mxu0 %v89
  %359 = vmatprep.subr.mxu0 0.0
  %360 = vmatpush1.msra.mxu0 %v90
  %361 = vmatprep.subr.mxu0 0.0
  %362 = vmatpush1.msra.mxu0 %v91
  %363 = vmatprep.subr.mxu0 0.0
  %364 = vmatpush1.msra.mxu0 %v92
  %365 = vmatprep.subr.mxu0 0.0
  %366 = vmatpush1.msra.mxu0 %v93
  %367 = vmatprep.subr.mxu0 0.0
  %368 = vmatpush1.msra.mxu0 %v94
  %369 = vmatprep.subr.mxu0 0.0
  %370 = vmatpush1.msra.mxu0 %v95
  %371 = vmatprep.subr.mxu0 0.0
  %372 = vmatpush1.msra.mxu0 %v96
  %373 = vmatprep.subr.mxu0 0.0
  %374 = vmatpush1.msra.mxu0 %v97
  %375 = vmatprep.subr.mxu0 0.0
  %376 = vmatpush1.msra.mxu0 %v98
  %377 = vmatprep.subr.mxu0 0.0
  %378 = vmatpush1.msra.mxu0 %v99
  %379 = vmatprep.subr.mxu0 0.0
  %380 = vmatpush1.msra.mxu0 %v100
  %381 = vmatprep.subr.mxu0 0.0
  %382 = vmatpush1.msra.mxu0 %v101
  %383 = vmatprep.subr.mxu0 0.0
  %384 = vmatpush1.msra.mxu0 %v102
  %385 = vmatprep.subr.mxu0 0.0
  %386 = vmatpush1.msra.mxu0 %v103
  %387 = vmatprep.subr.mxu0 0.0
  %388 = vmatpush1.msra.mxu0 %v104
  %389 = vmatprep.subr.mxu0 0.0
  %390 = vmatpush1.msra.mxu0 %v105
  %391 = vmatprep.subr.mxu0 0.0
  %392 = vmatpush1.msra.mxu0 %v106
  %393 = vmatprep.subr.mxu0 0.0
  %394 = vmatpush1.msra.mxu0 %v107
  %395 = vmatprep.subr.mxu0 0.0
  %396 = vmatpush1.msra.mxu0 %v108
  %397 = vmatprep.subr.mxu0 0.0
  %398 = vmatpush1.msra.mxu0 %v109
  %399 = vmatprep.subr.mxu0 0.0
  %400 = vmatpush1.msra.mxu0 %v110
  %401 = vmatprep.subr.mxu0 0.0
  %402 = vmatpush1.msra.mxu0 %v111
  %403 = vmatprep.subr.mxu0 0.0
  %404 = vmatpush1.msra.mxu0 %v112
  %405 = vmatprep.subr.mxu0 0.0
  %406 = vmatpush1.msra.mxu0 %v113
  %407 = vmatprep.subr.mxu0 0.0
  %408 = vmatpush1.msra.mxu0 %v114
  %409 = vmatprep.mubr.f32.mxu0 %v194
  %410 = vmatmul.mubr.f32.gmra.mrb[0].mxu0 %v193
  %v411 = vpop.f32.mrb[0].mxu0
  %v412 = vadd.f32 %v342, %v411
  %v413 = vpop.f32.mrb[0].mxu0
  %414 = vdwg.mxu0
  %415 = vmatprep.subr.mxu0 0.0
  %416 = vmatpush1.msra.mxu0 %v115
  %417 = vmatprep.subr.mxu0 0.0
  %418 = vmatpush1.msra.mxu0 %v116
  %419 = vmatprep.subr.mxu0 0.0
  %420 = vmatpush1.msra.mxu0 0.0
  %421 = vmatprep.subr.mxu0 0.0
  %422 = vmatpush1.msra.mxu0 0.0
  %423 = vmatprep.subr.mxu0 0.0
  %424 = vmatpush1.msra.mxu0 0.0
  %425 = vmatprep.subr.mxu0 0.0
  %426 = vmatpush1.msra.mxu0 0.0
  %427 = vmatprep.subr.mxu0 0.0
  %428 = vmatpush1.msra.mxu0 0.0
  %429 = vmatprep.subr.mxu0 0.0
  %430 = vmatpush1.msra.mxu0 0.0
  %431 = vmatprep.subr.mxu0 0.0
  %432 = vmatpush1.msra.mxu0 0.0
  %433 = vmatprep.subr.mxu0 0.0
  %434 = vmatpush1.msra.mxu0 0.0
  %435 = vmatprep.subr.mxu0 0.0
  %436 = vmatpush1.msra.mxu0 0.0
  %437 = vmatprep.subr.mxu0 0.0
  %438 = vmatpush1.msra.mxu0 0.0
  %439 = vmatprep.subr.mxu0 0.0
  %440 = vmatpush1.msra.mxu0 0.0
  %441 = vmatprep.subr.mxu0 0.0
  %442 = vmatpush1.msra.mxu0 0.0
  %443 = vmatprep.subr.mxu0 0.0
  %444 = vmatpush1.msra.mxu0 0.0
  %445 = vmatprep.subr.mxu0 0.0
  %446 = vmatpush1.msra.mxu0 0.0
  %447 = vmatprep.subr.mxu0 0.0
  %448 = vmatpush1.msra.mxu0 0.0
  %449 = vmatprep.subr.mxu0 0.0
  %450 = vmatpush1.msra.mxu0 0.0
  %451 = vmatprep.subr.mxu0 0.0
  %452 = vmatpush1.msra.mxu0 0.0
  %453 = vmatprep.subr.mxu0 0.0
  %454 = vmatpush1.msra.mxu0 0.0
  %455 = vmatprep.subr.mxu0 0.0
  %456 = vmatpush1.msra.mxu0 0.0
  %457 = vmatprep.subr.mxu0 0.0
  %458 = vmatpush1.msra.mxu0 0.0
  %459 = vmatprep.subr.mxu0 0.0
  %460 = vmatpush1.msra.mxu0 0.0
  %461 = vmatprep.subr.mxu0 0.0
  %462 = vmatpush1.msra.mxu0 0.0
  %463 = vmatprep.subr.mxu0 0.0
  %464 = vmatpush1.msra.mxu0 0.0
  %465 = vmatprep.subr.mxu0 0.0
  %466 = vmatpush1.msra.mxu0 0.0
  %467 = vmatprep.subr.mxu0 0.0
  %468 = vmatpush1.msra.mxu0 0.0
  %469 = vmatprep.subr.mxu0 0.0
  %470 = vmatpush1.msra.mxu0 0.0
  %471 = vmatprep.subr.mxu0 0.0
  %472 = vmatpush1.msra.mxu0 0.0
  %473 = vmatprep.subr.mxu0 0.0
  %474 = vmatpush1.msra.mxu0 0.0
  %475 = vmatprep.subr.mxu0 0.0
  %476 = vmatpush1.msra.mxu0 0.0
  %477 = vmatprep.subr.mxu0 0.0
  %478 = vmatpush1.msra.mxu0 0.0
  %479 = vmatprep.mubr.f32.mxu0 0.0
  %480 = vmatmul.mubr.f32.gmra.mrb[0].mxu0 %v203
  %v481 = vpop.f32.mrb[0].mxu0
  %v482 = vadd.f32 %v412, %v481
  %v483 = vpop.f32.mrb[0].mxu0
  %484 = vdwg.mxu0
  %485 = vst [vmem:[%s2] sm:$0xff] %v482
  // Predicated region
  $region10: #{quantized_cnn_forward.3} parent=0 // pred_check
    _
  $region11: #{quantized_cnn_forward.3} parent=0 // pred_check_branch
    %487 = sbr.rel (0) target = $region13
  $region12: #{quantized_cnn_forward.3} parent=0 // pred_region
    _
  $region13: #{quantized_cnn_forward.3} parent=0 // pred_fallthru
    _
  // Predicated region
  $region14: #{quantized_cnn_forward.3} parent=0 // pred_check
    _
  $region15: #{quantized_cnn_forward.3} parent=0 // pred_check_branch
    %489 = sbr.rel (0) target = $region17
  $region16: #{quantized_cnn_forward.3} parent=0 // pred_region
    _
  $region17: #{quantized_cnn_forward.3} parent=0 // pred_fallthru
    _

// kernel: quantized_cnn_forward.2
$region0: #{quantized_cnn_forward.2}
  #allocation0 [shape = 'u32[]', space=smem, size = 0x4, offset = 0x4, fixed_abs, tag = 'smem constant byte address 0x4 - core index']
  #allocation1 [shape = 'u32[144,128]{1,0:T(1,128)}', space=vmem, size = 0x12000, scoped, tag = 'internal scratch']
  %s0 = inlined_call_operand.vmem [shape: f32[30,30,128], index: 0, kind: input, shape index: {}]
  %s1 = inlined_call_operand.vmem [shape: f32[3,3], index: 1, kind: input, shape index: {}]
  %s2 = inlined_call_operand.vmem [shape: f32[28,28,128], index: 2, kind: output, shape index: {}]
  %s3 = sld [smem:[#allocation0]]
  $region22: #{quantized_cnn_forward.2} parent=0
    _
  %s5 = ssub.s32 1, %s3
  %s6 = scalar_select 0, %s5, %s3
  $region1: #{quantized_cnn_forward.2} parent=0
    #allocation2 [shape = 'u8[2048]{0}', space=smem, size = 0x800, scoped, tag = 'input window, operand 1, single buffered']
    #allocation3 [shape = 's32[1]{0}', space=sflag, size = 0x4, scoped, tag = 'scoped memory for quantized_cnn_forward.2']
    %7 = vsyncpa [#allocation3], 0
    // Predicated region
    $region2: #{quantized_cnn_forward.2} parent=1 // pred_check
      _
    $region3: #{quantized_cnn_forward.2} parent=1 // pred_check_branch
      %9 = sbr.rel (0) target = $region5
    $region4: #{quantized_cnn_forward.2} parent=1 // pred_region
      _
    $region5: #{quantized_cnn_forward.2} parent=1 // pred_fallthru
      _
    // Predicated region
    $region6: #{quantized_cnn_forward.2} parent=1 // pred_check
      _
    $region7: #{quantized_cnn_forward.2} parent=1 // pred_check_branch
      %11 = sbr.rel (0) target = $region9
    $region8: #{quantized_cnn_forward.2} parent=1 // pred_region
      %s13 = ssub.s32 64, 64
      %14 = vsyncadd [#allocation3], %s13
      %s16 = sshll.u32 %s1, 4
      %s17 = int_to_ptr.vmem [resolvable:$true] %s16
      %19 = dma.vmem_to_smem %s17, 64, [#allocation2], [#allocation3]
    $region9: #{quantized_cnn_forward.2} parent=1 // pred_fallthru
      _
    // Predicated region
    $region10: #{quantized_cnn_forward.2} parent=1 // pred_check
      _
    $region11: #{quantized_cnn_forward.2} parent=1 // pred_check_branch
      %21 = sbr.rel (0) target = $region13
    $region12: #{quantized_cnn_forward.2} parent=1 // pred_region
      %22 = dma.done [#allocation3], 64
    $region13: #{quantized_cnn_forward.2} parent=1 // pred_fallthru
      _
    %23 = sfence
    %s24 = sld [smem:[#allocation2]]
    %s25 = scalar_lea.vmem %s0, 64
    %v26 = vld [vmem:[%s25 + $0x2] sm:$0xff]
    %v27 = vld [vmem:[%s25 + $0xa] sm:$0xff]
    %v28 = vld [vmem:[%s25 + $0x12] sm:$0xff]
    %v29 = vld [vmem:[%s25 + $0x1a] sm:$0xf]
    %v30 = vld [vmem:[%s25 + $0x22] sm:$0xff]
    %v31 = vld [vmem:[%s25 + $0x2a] sm:$0xff]
    %v32 = vld [vmem:[%s25 + $0x32] sm:$0xff]
    %v33 = vld [vmem:[%s25 + $0x3a] sm:$0xf]
    %v34 = vld [vmem:[%s25 + $0x42] sm:$0xff]
    %v35 = vld [vmem:[%s25 + $0x4a] sm:$0xff]
    %v36 = vld [vmem:[%s25 + $0x52] sm:$0xff]
    %v37 = vld [vmem:[%s25 + $0x5a] sm:$0xf]
    %v38 = vld [vmem:[%s25 + $0x62] sm:$0xff]
    %v39 = vld [vmem:[%s25 + $0x6a] sm:$0xff]
    %v40 = vld [vmem:[%s25 + $0x72] sm:$0xff]
    %v41 = vld [vmem:[%s25 + $0x7a] sm:$0xf]
    %v42 = vld [vmem:[%s25 + $0x82] sm:$0xff]
    %v43 = vld [vmem:[%s25 + $0x8a] sm:$0xff]
    %v44 = vld [vmem:[%s25 + $0x92] sm:$0xff]
    %v45 = vld [vmem:[%s25 + $0x9a] sm:$0xf]
    %v46 = vld [vmem:[%s25 + $0xa2] sm:$0xff]
    %v47 = vld [vmem:[%s25 + $0xaa] sm:$0xff]
    %v48 = vld [vmem:[%s25 + $0xb2] sm:$0xff]
    %v49 = vld [vmem:[%s25 + $0xba] sm:$0xf]
    %v50 = vld [vmem:[%s25 + $0xc2] sm:$0xff]
    %v51 = vld [vmem:[%s25 + $0xca] sm:$0xff]
    %v52 = vld [vmem:[%s25 + $0xd2] sm:$0xff]
    %v53 = vld [vmem:[%s25 + $0xda] sm:$0xf]
    %v54 = vld [vmem:[%s25 + $0xe2] sm:$0xff]
    %v55 = vld [vmem:[%s25 + $0xea] sm:$0xff]
    %v56 = vld [vmem:[%s25 + $0xf2] sm:$0xff]
    %v57 = vld [vmem:[%s25 + $0xfa] sm:$0xf]
    %v58 = vld [vmem:[%s25 + $0x102] sm:$0xff]
    %v59 = vld [vmem:[%s25 + $0x10a] sm:$0xff]
    %v60 = vld [vmem:[%s25 + $0x112] sm:$0xff]
    %v61 = vld [vmem:[%s25 + $0x11a] sm:$0xf]
    %v62 = vld [vmem:[%s25 + $0x122] sm:$0xff]
    %v63 = vld [vmem:[%s25 + $0x12a] sm:$0xff]
    %v64 = vld [vmem:[%s25 + $0x132] sm:$0xff]
    %v65 = vld [vmem:[%s25 + $0x13a] sm:$0xf]
    %v66 = vld [vmem:[%s25 + $0x142] sm:$0xff]
    %v67 = vld [vmem:[%s25 + $0x14a] sm:$0xff]
    %v68 = vld [vmem:[%s25 + $0x152] sm:$0xff]
    %v69 = vld [vmem:[%s25 + $0x15a] sm:$0xf]
    %v70 = vld [vmem:[%s25 + $0x162] sm:$0xff]
    %v71 = vld [vmem:[%s25 + $0x16a] sm:$0xff]
    %v72 = vld [vmem:[%s25 + $0x172] sm:$0xff]
    %v73 = vld [vmem:[%s25 + $0x17a] sm:$0xf]
    %v74 = vld [vmem:[%s25 + $0x182] sm:$0xff]
    %v75 = vld [vmem:[%s25 + $0x18a] sm:$0xff]
    %v76 = vld [vmem:[%s25 + $0x192] sm:$0xff]
    %v77 = vld [vmem:[%s25 + $0x19a] sm:$0xf]
    %v78 = vld [vmem:[%s25 + $0x1a2] sm:$0xff]
    %v79 = vld [vmem:[%s25 + $0x1aa] sm:$0xff]
    %v80 = vld [vmem:[%s25 + $0x1b2] sm:$0xff]
    %v81 = vld [vmem:[%s25 + $0x1ba] sm:$0xf]
    %v82 = vld [vmem:[%s25 + $0x1c2] sm:$0xff]
    %v83 = vld [vmem:[%s25 + $0x1ca] sm:$0xff]
    %v84 = vld [vmem:[%s25 + $0x1d2] sm:$0xff]
    %v85 = vld [vmem:[%s25 + $0x1da] sm:$0xf]
    %v86 = vld [vmem:[%s25 + $0x1e2] sm:$0xff]
    %v87 = vld [vmem:[%s25 + $0x1ea] sm:$0xff]
    %v88 = vld [vmem:[%s25 + $0x1f2] sm:$0xff]
    %v89 = vld [vmem:[%s25 + $0x1fa] sm:$0xf]
    %v90 = vld [vmem:[%s25 + $0x202] sm:$0xff]
    %v91 = vld [vmem:[%s25 + $0x20a] sm:$0xff]
    %v92 = vld [vmem:[%s25 + $0x212] sm:$0xff]
    %v93 = vld [vmem:[%s25 + $0x21a] sm:$0xf]
    %v94 = vld [vmem:[%s25 + $0x222] sm:$0xff]
    %v95 = vld [vmem:[%s25 + $0x22a] sm:$0xff]
    %v96 = vld [vmem:[%s25 + $0x232] sm:$0xff]
    %v97 = vld [vmem:[%s25 + $0x23a] sm:$0xf]
    %v98 = vld [vmem:[%s25 + $0x242] sm:$0xff]
    %v99 = vld [vmem:[%s25 + $0x24a] sm:$0xff]
    %v100 = vld [vmem:[%s25 + $0x252] sm:$0xff]
    %v101 = vld [vmem:[%s25 + $0x25a] sm:$0xf]
    %v102 = vld [vmem:[%s25 + $0x262] sm:$0xff]
    %v103 = vld [vmem:[%s25 + $0x26a] sm:$0xff]
    %v104 = vld [vmem:[%s25 + $0x272] sm:$0xff]
    %v105 = vld [vmem:[%s25 + $0x27a] sm:$0xf]
    %v106 = vld [vmem:[%s25 + $0x282] sm:$0xff]
    %v107 = vld [vmem:[%s25 + $0x28a] sm:$0xff]
    %v108 = vld [vmem:[%s25 + $0x292] sm:$0xff]
    %v109 = vld [vmem:[%s25 + $0x29a] sm:$0xf]
    %v110 = vld [vmem:[%s25 + $0x2a2] sm:$0xff]
    %v111 = vld [vmem:[%s25 + $0x2aa] sm:$0xff]
    %v112 = vld [vmem:[%s25 + $0x2b2] sm:$0xff]
    %v113 = vld [vmem:[%s25 + $0x2ba] sm:$0xf]
    %v114 = vld [vmem:[%s25 + $0x2c2] sm:$0xff]
    %v115 = vld [vmem:[%s25 + $0x2ca] sm:$0xff]
    %v116 = vld [vmem:[%s25 + $0x2d2] sm:$0xff]
    %v117 = vld [vmem:[%s25 + $0x2da] sm:$0xf]
    %v118 = vld [vmem:[%s25 + $0x2e2] sm:$0xff]
    %v119 = vld [vmem:[%s25 + $0x2ea] sm:$0xff]
    %v120 = vld [vmem:[%s25 + $0x2f2] sm:$0xff]
    %v121 = vld [vmem:[%s25 + $0x2fa] sm:$0xf]
    %v122 = vld [vmem:[%s25 + $0x302] sm:$0xff]
    %v123 = vld [vmem:[%s25 + $0x30a] sm:$0xff]
    %v124 = vld [vmem:[%s25 + $0x312] sm:$0xff]
    %v125 = vld [vmem:[%s25 + $0x31a] sm:$0xf]
    %v126 = vld [vmem:[%s25 + $0x322] sm:$0xff]
    %v127 = vld [vmem:[%s25 + $0x32a] sm:$0xff]
    %v128 = vld [vmem:[%s25 + $0x332] sm:$0xff]
    %v129 = vld [vmem:[%s25 + $0x33a] sm:$0xf]
    %v130 = vld [vmem:[%s25 + $0x342] sm:$0xff]
    %v131 = vld [vmem:[%s25 + $0x34a] sm:$0xff]
    %v132 = vld [vmem:[%s25 + $0x352] sm:$0xff]
    %v133 = vld [vmem:[%s25 + $0x35a] sm:$0xf]
    %v134 = vld [vmem:[%s25 + $0x362] sm:$0xff]
    %v135 = vld [vmem:[%s25 + $0x36a] sm:$0xff]
    %v136 = vld [vmem:[%s25 + $0x372] sm:$0xff]
    %v137 = vld [vmem:[%s25 + $0x37a] sm:$0xf]
    %v138 = vstv %s24
    %v139 = vmul.f32 %v138, %v26
    %v140 = vmul.f32 %v138, %v27
    %v141 = vmul.f32 %v138, %v28
    %v142 = vmul.f32 %v138, %v29
    %v143 = vmul.f32 %v138, %v30
    %v144 = vmul.f32 %v138, %v31
    %v145 = vmul.f32 %v138, %v32
    %v146 = vmul.f32 %v138, %v33
    %v147 = vmul.f32 %v138, %v34
    %v148 = vmul.f32 %v138, %v35
    %v149 = vmul.f32 %v138, %v36
    %v150 = vmul.f32 %v138, %v37
    %v151 = vmul.f32 %v138, %v38
    %v152 = vmul.f32 %v138, %v39
    %v153 = vmul.f32 %v138, %v40
    %v154 = vmul.f32 %v138, %v41
    %v155 = vmul.f32 %v138, %v42
    %v156 = vmul.f32 %v138, %v43
    %v157 = vmul.f32 %v138, %v44
    %v158 = vmul.f32 %v138, %v45
    %v159 = vmul.f32 %v138, %v46
    %v160 = vmul.f32 %v138, %v47
    %v161 = vmul.f32 %v138, %v48
    %v162 = vmul.f32 %v138, %v49
    %v163 = vmul.f32 %v138, %v50
    %v164 = vmul.f32 %v138, %v51
    %v165 = vmul.f32 %v138, %v52
    %v166 = vmul.f32 %v138, %v53
    %v167 = vmul.f32 %v138, %v54
    %v168 = vmul.f32 %v138, %v55
    %v169 = vmul.f32 %v138, %v56
    %v170 = vmul.f32 %v138, %v57
    %v171 = vmul.f32 %v138, %v58
    %v172 = vmul.f32 %v138, %v59
    %v173 = vmul.f32 %v138, %v60
    %v174 = vmul.f32 %v138, %v61
    %v175 = vmul.f32 %v138, %v62
    %v176 = vmul.f32 %v138, %v63
    %v177 = vmul.f32 %v138, %v64
    %v178 = vmul.f32 %v138, %v65
    %v179 = vmul.f32 %v138, %v66
    %v180 = vmul.f32 %v138, %v67
    %v181 = vmul.f32 %v138, %v68
    %v182 = vmul.f32 %v138, %v69
    %v183 = vmul.f32 %v138, %v70
    %v184 = vmul.f32 %v138, %v71
    %v185 = vmul.f32 %v138, %v72
    %v186 = vmul.f32 %v138, %v73
    %v187 = vmul.f32 %v138, %v74
    %v188 = vmul.f32 %v138, %v75
    %v189 = vmul.f32 %v138, %v76
    %v190 = vmul.f32 %v138, %v77
    %v191 = vmul.f32 %v138, %v78
    %v192 = vmul.f32 %v138, %v79
    %v193 = vmul.f32 %v138, %v80
    %v194 = vmul.f32 %v138, %v81
    %v195 = vmul.f32 %v138, %v82
    %v196 = vmul.f32 %v138, %v83
    %v197 = vmul.f32 %v138, %v84
    %v198 = vmul.f32 %v138, %v85
    %v199 = vmul.f32 %v138, %v86
    %v200 = vmul.f32 %v138, %v87
    %v201 = vmul.f32 %v138, %v88
    %v202 = vmul.f32 %v138, %v89
    %v203 = vmul.f32 %v138, %v90
    %v204 = vmul.f32 %v138, %v91
    %v205 = vmul.f32 %v138, %v92
    %v206 = vmul.f32 %v138, %v93
    %v207 = vmul.f32 %v138, %v94
    %v208 = vmul.f32 %v138, %v95
    %v209 = vmul.f32 %v138, %v96
    %v210 = vmul.f32 %v138, %v97
    %v211 = vmul.f32 %v138, %v98
    %v212 = vmul.f32 %v138, %v99
    %v213 = vmul.f32 %v138, %v100
    %v214 = vmul.f32 %v138, %v101
    %v215 = vmul.f32 %v138, %v102
    %v216 = vmul.f32 %v138, %v103
    %v217 = vmul.f32 %v138, %v104
    %v218 = vmul.f32 %v138, %v105
    %v219 = vmul.f32 %v138, %v106
    %v220 = vmul.f32 %v138, %v107
    %v221 = vmul.f32 %v138, %v108
    %v222 = vmul.f32 %v138, %v109
    %v223 = vmul.f32 %v138, %v110
    %v224 = vmul.f32 %v138, %v111
    %v225 = vmul.f32 %v138, %v112
    %v226 = vmul.f32 %v138, %v113
    %v227 = vmul.f32 %v138, %v114
    %v228 = vmul.f32 %v138, %v115
    %v229 = vmul.f32 %v138, %v116
    %v230 = vmul.f32 %v138, %v117
    %v231 = vmul.f32 %v138, %v118
    %v232 = vmul.f32 %v138, %v119
    %v233 = vmul.f32 %v138, %v120
    %v234 = vmul.f32 %v138, %v121
    %v235 = vmul.f32 %v138, %v122
    %v236 = vmul.f32 %v138, %v123
    %v237 = vmul.f32 %v138, %v124
    %v238 = vmul.f32 %v138, %v125
    %v239 = vmul.f32 %v138, %v126
    %v240 = vmul.f32 %v138, %v127
    %v241 = vmul.f32 %v138, %v128
    %v242 = vmul.f32 %v138, %v129
    %v243 = vmul.f32 %v138, %v130
    %v244 = vmul.f32 %v138, %v131
    %v245 = vmul.f32 %v138, %v132
    %v246 = vmul.f32 %v138, %v133
    %v247 = vmul.f32 %v138, %v134
    %v248 = vmul.f32 %v138, %v135
    %v249 = vmul.f32 %v138, %v136
    %v250 = vmul.f32 %v138, %v137
    %v251 = vadd.f32 %v139, 0.0
    %v252 = vadd.f32 %v140, 0.0
    %v253 = vadd.f32 %v141, 0.0
    %v254 = vadd.f32 %v142, 0.0
    %v255 = vadd.f32 %v143, 0.0
    %v256 = vadd.f32 %v144, 0.0
    %v257 = vadd.f32 %v145, 0.0
    %v258 = vadd.f32 %v146, 0.0
    %v259 = vadd.f32 %v147, 0.0
    %v260 = vadd.f32 %v148, 0.0
    %v261 = vadd.f32 %v149, 0.0
    %v262 = vadd.f32 %v150, 0.0
    %v263 = vadd.f32 %v151, 0.0
    %v264 = vadd.f32 %v152, 0.0
    %v265 = vadd.f32 %v153, 0.0
    %v266 = vadd.f32 %v154, 0.0
    %v267 = vadd.f32 %v155, 0.0
    %v268 = vadd.f32 %v156, 0.0
    %v269 = vadd.f32 %v157, 0.0
    %v270 = vadd.f32 %v158, 0.0
    %v271 = vadd.f32 %v159, 0.0
    %v272 = vadd.f32 %v160, 0.0
    %v273 = vadd.f32 %v161, 0.0
    %v274 = vadd.f32 %v162, 0.0
    %v275 = vadd.f32 %v163, 0.0
    %v276 = vadd.f32 %v164, 0.0
    %v277 = vadd.f32 %v165, 0.0
    %v278 = vadd.f32 %v166, 0.0
    %v279 = vadd.f32 %v167, 0.0
    %v280 = vadd.f32 %v168, 0.0
    %v281 = vadd.f32 %v169, 0.0
    %v282 = vadd.f32 %v170, 0.0
    %v283 = vadd.f32 %v171, 0.0
    %v284 = vadd.f32 %v172, 0.0
    %v285 = vadd.f32 %v173, 0.0
    %v286 = vadd.f32 %v174, 0.0
    %v287 = vadd.f32 %v175, 0.0
    %v288 = vadd.f32 %v176, 0.0
    %v289 = vadd.f32 %v177, 0.0
    %v290 = vadd.f32 %v178, 0.0
    %v291 = vadd.f32 %v179, 0.0
    %v292 = vadd.f32 %v180, 0.0
    %v293 = vadd.f32 %v181, 0.0
    %v294 = vadd.f32 %v182, 0.0
    %v295 = vadd.f32 %v183, 0.0
    %v296 = vadd.f32 %v184, 0.0
    %v297 = vadd.f32 %v185, 0.0
    %v298 = vadd.f32 %v186, 0.0
    %v299 = vadd.f32 %v187, 0.0
    %v300 = vadd.f32 %v188, 0.0
    %v301 = vadd.f32 %v189, 0.0
    %v302 = vadd.f32 %v190, 0.0
    %v303 = vadd.f32 %v191, 0.0
    %v304 = vadd.f32 %v192, 0.0
    %v305 = vadd.f32 %v193, 0.0
    %v306 = vadd.f32 %v194, 0.0
    %v307 = vadd.f32 %v195, 0.0
    %v308 = vadd.f32 %v196, 0.0
    %v309 = vadd.f32 %v197, 0.0
    %v310 = vadd.f32 %v198, 0.0
    %v311 = vadd.f32 %v199, 0.0
    %v312 = vadd.f32 %v200, 0.0
    %v313 = vadd.f32 %v201, 0.0
    %v314 = vadd.f32 %v202, 0.0
    %v315 = vadd.f32 %v203, 0.0
    %v316 = vadd.f32 %v204, 0.0
    %v317 = vadd.f32 %v205, 0.0
    %v318 = vadd.f32 %v206, 0.0
    %v319 = vadd.f32 %v207, 0.0
    %v320 = vadd.f32 %v208, 0.0
    %v321 = vadd.f32 %v209, 0.0
    %v322 = vadd.f32 %v210, 0.0
    %v323 = vadd.f32 %v211, 0.0
    %v324 = vadd.f32 %v212, 0.0
    %v325 = vadd.f32 %v213, 0.0
    %v326 = vadd.f32 %v214, 0.0
    %v327 = vadd.f32 %v215, 0.0
    %v328 = vadd.f32 %v216, 0.0
    %v329 = vadd.f32 %v217, 0.0
    %v330 = vadd.f32 %v218, 0.0
    %v331 = vadd.f32 %v219, 0.0
    %v332 = vadd.f32 %v220, 0.0
    %v333 = vadd.f32 %v221, 0.0
    %v334 = vadd.f32 %v222, 0.0
    %v335 = vadd.f32 %v223, 0.0
    %v336 = vadd.f32 %v224, 0.0
    %v337 = vadd.f32 %v225, 0.0
    %v338 = vadd.f32 %v226, 0.0
    %v339 = vadd.f32 %v227, 0.0
    %v340 = vadd.f32 %v228, 0.0
    %v341 = vadd.f32 %v229, 0.0
    %v342 = vadd.f32 %v230, 0.0
    %v343 = vadd.f32 %v231, 0.0
    %v344 = vadd.f32 %v232, 0.0
    %v345 = vadd.f32 %v233, 0.0
    %v346 = vadd.f32 %v234, 0.0
    %v347 = vadd.f32 %v235, 0.0
    %v348 = vadd.f32 %v236, 0.0
    %v349 = vadd.f32 %v237, 0.0
    %v350 = vadd.f32 %v238, 0.0
    %v351 = vadd.f32 %v239, 0.0
    %v352 = vadd.f32 %v240, 0.0
    %v353 = vadd.f32 %v241, 0.0
    %v354 = vadd.f32 %v242, 0.0
    %v355 = vadd.f32 %v243, 0.0
    %v356 = vadd.f32 %v244, 0.0
    %v357 = vadd.f32 %v245, 0.0
    %v358 = vadd.f32 %v246, 0.0
    %v359 = vadd.f32 %v247, 0.0
    %v360 = vadd.f32 %v248, 0.0
    %v361 = vadd.f32 %v249, 0.0
    %v362 = vadd.f32 %v250, 0.0
    %s363 = sld [smem:[#allocation2 + $0x1]]
    %v364 = vld [vmem:[%s25 + $0x1] sm:$0xff]
    %v365 = vld [vmem:[%s25 + $0x9] sm:$0xff]
    %v366 = vld [vmem:[%s25 + $0x11] sm:$0xff]
    %v367 = vld [vmem:[%s25 + $0x19] sm:$0xf]
    %v368 = vld [vmem:[%s25 + $0x21] sm:$0xff]
    %v369 = vld [vmem:[%s25 + $0x29] sm:$0xff]
    %v370 = vld [vmem:[%s25 + $0x31] sm:$0xff]
    %v371 = vld [vmem:[%s25 + $0x39] sm:$0xf]
    %v372 = vld [vmem:[%s25 + $0x41] sm:$0xff]
    %v373 = vld [vmem:[%s25 + $0x49] sm:$0xff]
    %v374 = vld [vmem:[%s25 + $0x51] sm:$0xff]
    %v375 = vld [vmem:[%s25 + $0x59] sm:$0xf]
    %v376 = vld [vmem:[%s25 + $0x61] sm:$0xff]
    %v377 = vld [vmem:[%s25 + $0x69] sm:$0xff]
    %v378 = vld [vmem:[%s25 + $0x71] sm:$0xff]
    %v379 = vld [vmem:[%s25 + $0x79] sm:$0xf]
    %v380 = vld [vmem:[%s25 + $0x81] sm:$0xff]
    %v381 = vld [vmem:[%s25 + $0x89] sm:$0xff]
    %v382 = vld [vmem:[%s25 + $0x91] sm:$0xff]
    %v383 = vld [vmem:[%s25 + $0x99] sm:$0xf]
    %v384 = vld [vmem:[%s25 + $0xa1] sm:$0xff]
    %v385 = vld [vmem:[%s25 + $0xa9] sm:$0xff]
    %v386 = vld [vmem:[%s25 + $0xb1] sm:$0xff]
    %v387 = vld [vmem:[%s25 + $0xb9] sm:$0xf]
    %v388 = vld [vmem:[%s25 + $0xc1] sm:$0xff]
    %v389 = vld [vmem:[%s25 + $0xc9] sm:$0xff]
    %v390 = vld [vmem:[%s25 + $0xd1] sm:$0xff]
    %v391 = vld [vmem:[%s25 + $0xd9] sm:$0xf]
    %v392 = vld [vmem:[%s25 + $0xe1] sm:$0xff]
    %v393 = vld [vmem:[%s25 + $0xe9] sm:$0xff]
    %v394 = vld [vmem:[%s25 + $0xf1] sm:$0xff]
    %v395 = vld [vmem:[%s25 + $0xf9] sm:$0xf]
    %v396 = vld [vmem:[%s25 + $0x101] sm:$0xff]
    %v397 = vld [vmem:[%s25 + $0x109] sm:$0xff]
    %v398 = vld [vmem:[%s25 + $0x111] sm:$0xff]
    %v399 = vld [vmem:[%s25 + $0x119] sm:$0xf]
    %v400 = vld [vmem:[%s25 + $0x121] sm:$0xff]
    %v401 = vld [vmem:[%s25 + $0x129] sm:$0xff]
    %v402 = vld [vmem:[%s25 + $0x131] sm:$0xff]
    %v403 = vld [vmem:[%s25 + $0x139] sm:$0xf]
    %v404 = vld [vmem:[%s25 + $0x141] sm:$0xff]
    %v405 = vld [vmem:[%s25 + $0x149] sm:$0xff]
    %v406 = vld [vmem:[%s25 + $0x151] sm:$0xff]
    %v407 = vld [vmem:[%s25 + $0x159] sm:$0xf]
    %v408 = vld [vmem:[%s25 + $0x161] sm:$0xff]
    %v409 = vld [vmem:[%s25 + $0x169] sm:$0xff]
    %v410 = vld [vmem:[%s25 + $0x171] sm:$0xff]
    %v411 = vld [vmem:[%s25 + $0x179] sm:$0xf]
    %v412 = vld [vmem:[%s25 + $0x181] sm:$0xff]
    %v413 = vld [vmem:[%s25 + $0x189] sm:$0xff]
    %v414 = vld [vmem:[%s25 + $0x191] sm:$0xff]
    %v415 = vld [vmem:[%s25 + $0x199] sm:$0xf]
    %v416 = vld [vmem:[%s25 + $0x1a1] sm:$0xff]
    %v417 = vld [vmem:[%s25 + $0x1a9] sm:$0xff]
    %v418 = vld [vmem:[%s25 + $0x1b1] sm:$0xff]
    %v419 = vld [vmem:[%s25 + $0x1b9] sm:$0xf]
    %v420 = vld [vmem:[%s25 + $0x1c1] sm:$0xff]
    %v421 = vld [vmem:[%s25 + $0x1c9] sm:$0xff]
    %v422 = vld [vmem:[%s25 + $0x1d1] sm:$0xff]
    %v423 = vld [vmem:[%s25 + $0x1d9] sm:$0xf]
    %v424 = vld [vmem:[%s25 + $0x1e1] sm:$0xff]
    %v425 = vld [vmem:[%s25 + $0x1e9] sm:$0xff]
    %v426 = vld [vmem:[%s25 + $0x1f1] sm:$0xff]
    %v427 = vld [vmem:[%s25 + $0x1f9] sm:$0xf]
    %v428 = vld [vmem:[%s25 + $0x201] sm:$0xff]
    %v429 = vld [vmem:[%s25 + $0x209] sm:$0xff]
    %v430 = vld [vmem:[%s25 + $0x211] sm:$0xff]
    %v431 = vld [vmem:[%s25 + $0x219] sm:$0xf]
    %v432 = vld [vmem:[%s25 + $0x221] sm:$0xff]
    %v433 = vld [vmem:[%s25 + $0x229] sm:$0xff]
    %v434 = vld [vmem:[%s25 + $0x231] sm:$0xff]
    %v435 = vld [vmem:[%s25 + $0x239] sm:$0xf]
    %v436 = vld [vmem:[%s25 + $0x241] sm:$0xff]
    %v437 = vld [vmem:[%s25 + $0x249] sm:$0xff]
    %v438 = vld [vmem:[%s25 + $0x251] sm:$0xff]
    %v439 = vld [vmem:[%s25 + $0x259] sm:$0xf]
    %v440 = vld [vmem:[%s25 + $0x261] sm:$0xff]
    %v441 = vld [vmem:[%s25 + $0x269] sm:$0xff]
    %v442 = vld [vmem:[%s25 + $0x271] sm:$0xff]
    %v443 = vld [vmem:[%s25 + $0x279] sm:$0xf]
    %v444 = vld [vmem:[%s25 + $0x281] sm:$0xff]
    %v445 = vld [vmem:[%s25 + $0x289] sm:$0xff]
    %v446 = vld [vmem:[%s25 + $0x291] sm:$0xff]
    %v447 = vld [vmem:[%s25 + $0x299] sm:$0xf]
    %v448 = vld [vmem:[%s25 + $0x2a1] sm:$0xff]
    %v449 = vld [vmem:[%s25 + $0x2a9] sm:$0xff]
    %v450 = vld [vmem:[%s25 + $0x2b1] sm:$0xff]
    %v451 = vld [vmem:[%s25 + $0x2b9] sm:$0xf]
    %v452 = vld [vmem:[%s25 + $0x2c1] sm:$0xff]
    %v453 = vld [vmem:[%s25 + $0x2c9] sm:$0xff]
    %v454 = vld [vmem:[%s25 + $0x2d1] sm:$0xff]
    %v455 = vld [vmem:[%s25 + $0x2d9] sm:$0xf]
    %v456 = vld [vmem:[%s25 + $0x2e1] sm:$0xff]
    %v457 = vld [vmem:[%s25 + $0x2e9] sm:$0xff]
    %v458 = vld [vmem:[%s25 + $0x2f1] sm:$0xff]
    %v459 = vld [vmem:[%s25 + $0x2f9] sm:$0xf]
    %v460 = vld [vmem:[%s25 + $0x301] sm:$0xff]
    %v461 = vld [vmem:[%s25 + $0x309] sm:$0xff]
    %v462 = vld [vmem:[%s25 + $0x311] sm:$0xff]
    %v463 = vld [vmem:[%s25 + $0x319] sm:$0xf]
    %v464 = vld [vmem:[%s25 + $0x321] sm:$0xff]
    %v465 = vld [vmem:[%s25 + $0x329] sm:$0xff]
    %v466 = vld [vmem:[%s25 + $0x331] sm:$0xff]
    %v467 = vld [vmem:[%s25 + $0x339] sm:$0xf]
    %v468 = vld [vmem:[%s25 + $0x341] sm:$0xff]
    %v469 = vld [vmem:[%s25 + $0x349] sm:$0xff]
    %v470 = vld [vmem:[%s25 + $0x351] sm:$0xff]
    %v471 = vld [vmem:[%s25 + $0x359] sm:$0xf]
    %v472 = vld [vmem:[%s25 + $0x361] sm:$0xff]
    %v473 = vld [vmem:[%s25 + $0x369] sm:$0xff]
    %v474 = vld [vmem:[%s25 + $0x371] sm:$0xff]
    %v475 = vld [vmem:[%s25 + $0x379] sm:$0xf]
    %v476 = vstv %s363
    %v477 = vmul.f32 %v476, %v364
    %v478 = vmul.f32 %v476, %v365
    %v479 = vmul.f32 %v476, %v366
    %v480 = vmul.f32 %v476, %v367
    %v481 = vmul.f32 %v476, %v368
    %v482 = vmul.f32 %v476, %v369
    %v483 = vmul.f32 %v476, %v370
    %v484 = vmul.f32 %v476, %v371
    %v485 = vmul.f32 %v476, %v372
    %v486 = vmul.f32 %v476, %v373
    %v487 = vmul.f32 %v476, %v374
    %v488 = vmul.f32 %v476, %v375
    %v489 = vmul.f32 %v476, %v376
    %v490 = vmul.f32 %v476, %v377
    %v491 = vmul.f32 %v476, %v378
    %v492 = vmul.f32 %v476, %v379
    %v493 = vmul.f32 %v476, %v380
    %v494 = vmul.f32 %v476, %v381
    %v495 = vmul.f32 %v476, %v382
    %v496 = vmul.f32 %v476, %v383
    %v497 = vmul.f32 %v476, %v384
    %v498 = vmul.f32 %v476, %v385
    %v499 = vmul.f32 %v476, %v386
    %v500 = vmul.f32 %v476, %v387
    %v501 = vmul.f32 %v476, %v388
    %v502 = vmul.f32 %v476, %v389
    %v503 = vmul.f32 %v476, %v390
    %v504 = vmul.f32 %v476, %v391
    %v505 = vmul.f32 %v476, %v392
    %v506 = vmul.f32 %v476, %v393
    %v507 = vmul.f32 %v476, %v394
    %v508 = vmul.f32 %v476, %v395
    %v509 = vmul.f32 %v476, %v396
    %v510 = vmul.f32 %v476, %v397
    %v511 = vmul.f32 %v476, %v398
    %v512 = vmul.f32 %v476, %v399
    %v513 = vmul.f32 %v476, %v400
    %v514 = vmul.f32 %v476, %v401
    %v515 = vmul.f32 %v476, %v402
    %v516 = vmul.f32 %v476, %v403
    %v517 = vmul.f32 %v476, %v404
    %v518 = vmul.f32 %v476, %v405
    %v519 = vmul.f32 %v476, %v406
    %v520 = vmul.f32 %v476, %v407
    %v521 = vmul.f32 %v476, %v408
    %v522 = vmul.f32 %v476, %v409
    %v523 = vmul.f32 %v476, %v410
    %v524 = vmul.f32 %v476, %v411
    %v525 = vmul.f32 %v476, %v412
    %v526 = vmul.f32 %v476, %v413
    %v527 = vmul.f32 %v476, %v414
    %v528 = vmul.f32 %v476, %v415
    %v529 = vmul.f32 %v476, %v416
    %v530 = vmul.f32 %v476, %v417
    %v531 = vmul.f32 %v476, %v418
    %v532 = vmul.f32 %v476, %v419
    %v533 = vmul.f32 %v476, %v420
    %v534 = vmul.f32 %v476, %v421
    %v535 = vmul.f32 %v476, %v422
    %v536 = vmul.f32 %v476, %v423
    %v537 = vmul.f32 %v476, %v424
    %v538 = vmul.f32 %v476, %v425
    %v539 = vmul.f32 %v476, %v426
    %v540 = vmul.f32 %v476, %v427
    %v541 = vmul.f32 %v476, %v428
    %v542 = vmul.f32 %v476, %v429
    %v543 = vmul.f32 %v476, %v430
    %v544 = vmul.f32 %v476, %v431
    %v545 = vmul.f32 %v476, %v432
    %v546 = vmul.f32 %v476, %v433
    %v547 = vmul.f32 %v476, %v434
    %v548 = vmul.f32 %v476, %v435
    %v549 = vmul.f32 %v476, %v436
    %v550 = vmul.f32 %v476, %v437
    %v551 = vmul.f32 %v476, %v438
    %v552 = vmul.f32 %v476, %v439
    %v553 = vmul.f32 %v476, %v440
    %v554 = vmul.f32 %v476, %v441
    %v555 = vmul.f32 %v476, %v442
    %v556 = vmul.f32 %v476, %v443
    %v557 = vmul.f32 %v476, %v444
    %v558 = vmul.f32 %v476, %v445
    %v559 = vmul.f32 %v476, %v446
    %v560 = vmul.f32 %v476, %v447
    %v561 = vmul.f32 %v476, %v448
    %v562 = vmul.f32 %v476, %v449
    %v563 = vmul.f32 %v476, %v450
    %v564 = vmul.f32 %v476, %v451
    %v565 = vmul.f32 %v476, %v452
    %v566 = vmul.f32 %v476, %v453
    %v567 = vmul.f32 %v476, %v454
    %v568 = vmul.f32 %v476, %v455
    %v569 = vmul.f32 %v476, %v456
    %v570 = vmul.f32 %v476, %v457
    %v571 = vmul.f32 %v476, %v458
    %v572 = vmul.f32 %v476, %v459
    %v573 = vmul.f32 %v476, %v460
    %v574 = vmul.f32 %v476, %v461
    %v575 = vmul.f32 %v476, %v462
    %v576 = vmul.f32 %v476, %v463
    %v577 = vmul.f32 %v476, %v464
    %v578 = vmul.f32 %v476, %v465
    %v579 = vmul.f32 %v476, %v466
    %v580 = vmul.f32 %v476, %v467
    %v581 = vmul.f32 %v476, %v468
    %v582 = vmul.f32 %v476, %v469
    %v583 = vmul.f32 %v476, %v470
    %v584 = vmul.f32 %v476, %v471
    %v585 = vmul.f32 %v476, %v472
    %v586 = vmul.f32 %v476, %v473
    %v587 = vmul.f32 %v476, %v474
    %v588 = vmul.f32 %v476, %v475
    %v589 = vadd.f32 %v251, %v477
    %v590 = vadd.f32 %v252, %v478
    %v591 = vadd.f32 %v253, %v479
    %v592 = vadd.f32 %v254, %v480
    %v593 = vadd.f32 %v255, %v481
    %v594 = vadd.f32 %v256, %v482
    %v595 = vadd.f32 %v257, %v483
    %v596 = vadd.f32 %v258, %v484
    %v597 = vadd.f32 %v259, %v485
    %v598 = vadd.f32 %v260, %v486
    %v599 = vadd.f32 %v261, %v487
    %v600 = vadd.f32 %v262, %v488
    %v601 = vadd.f32 %v263, %v489
    %v602 = vadd.f32 %v264, %v490
    %v603 = vadd.f32 %v265, %v491
    %v604 = vadd.f32 %v266, %v492
    %v605 = vadd.f32 %v267, %v493
    %v606 = vadd.f32 %v268, %v494
    %v607 = vadd.f32 %v269, %v495
    %v608 = vadd.f32 %v270, %v496
    %v609 = vadd.f32 %v271, %v497
    %v610 = vadd.f32 %v272, %v498
    %v611 = vadd.f32 %v273, %v499
    %v612 = vadd.f32 %v274, %v500
    %v613 = vadd.f32 %v275, %v501
    %v614 = vadd.f32 %v276, %v502
    %v615 = vadd.f32 %v277, %v503
    %v616 = vadd.f32 %v278, %v504
    %v617 = vadd.f32 %v279, %v505
    %v618 = vadd.f32 %v280, %v506
    %v619 = vadd.f32 %v281, %v507
    %v620 = vadd.f32 %v282, %v508
    %v621 = vadd.f32 %v283, %v509
    %v622 = vadd.f32 %v284, %v510
    %v623 = vadd.f32 %v285, %v511
    %v624 = vadd.f32 %v286, %v512
    %v625 = vadd.f32 %v287, %v513
    %v626 = vadd.f32 %v288, %v514
    %v627 = vadd.f32 %v289, %v515
    %v628 = vadd.f32 %v290, %v516
    %v629 = vadd.f32 %v291, %v517
    %v630 = vadd.f32 %v292, %v518
    %v631 = vadd.f32 %v293, %v519
    %v632 = vadd.f32 %v294, %v520
    %v633 = vadd.f32 %v295, %v521
    %v634 = vadd.f32 %v296, %v522
    %v635 = vadd.f32 %v297, %v523
    %v636 = vadd.f32 %v298, %v524
    %v637 = vadd.f32 %v299, %v525
    %v638 = vadd.f32 %v300, %v526
    %v639 = vadd.f32 %v301, %v527
    %v640 = vadd.f32 %v302, %v528
    %v641 = vadd.f32 %v303, %v529
    %v642 = vadd.f32 %v304, %v530
    %v643 = vadd.f32 %v305, %v531
    %v644 = vadd.f32 %v306, %v532
    %v645 = vadd.f32 %v307, %v533
    %v646 = vadd.f32 %v308, %v534
    %v647 = vadd.f32 %v309, %v535
    %v648 = vadd.f32 %v310, %v536
    %v649 = vadd.f32 %v311, %v537
    %v650 = vadd.f32 %v312, %v538
    %v651 = vadd.f32 %v313, %v539
    %v652 = vadd.f32 %v314, %v540
    %v653 = vadd.f32 %v315, %v541
    %v654 = vadd.f32 %v316, %v542
    %v655 = vadd.f32 %v317, %v543
    %v656 = vadd.f32 %v318, %v544
    %v657 = vadd.f32 %v319, %v545
    %v658 = vadd.f32 %v320, %v546
    %v659 = vadd.f32 %v321, %v547
    %v660 = vadd.f32 %v322, %v548
    %v661 = vadd.f32 %v323, %v549
    %v662 = vadd.f32 %v324, %v550
    %v663 = vadd.f32 %v325, %v551
    %v664 = vadd.f32 %v326, %v552
    %v665 = vadd.f32 %v327, %v553
    %v666 = vadd.f32 %v328, %v554
    %v667 = vadd.f32 %v329, %v555
    %v668 = vadd.f32 %v330, %v556
    %v669 = vadd.f32 %v331, %v557
    %v670 = vadd.f32 %v332, %v558
    %v671 = vadd.f32 %v333, %v559
    %v672 = vadd.f32 %v334, %v560
    %v673 = vadd.f32 %v335, %v561
    %v674 = vadd.f32 %v336, %v562
    %v675 = vadd.f32 %v337, %v563
    %v676 = vadd.f32 %v338, %v564
    %v677 = vadd.f32 %v339, %v565
    %v678 = vadd.f32 %v340, %v566
    %v679 = vadd.f32 %v341, %v567
    %v680 = vadd.f32 %v342, %v568
    %v681 = vadd.f32 %v343, %v569
    %v682 = vadd.f32 %v344, %v570
    %v683 = vadd.f32 %v345, %v571
    %v684 = vadd.f32 %v346, %v572
    %v685 = vadd.f32 %v347, %v573
    %v686 = vadd.f32 %v348, %v574
    %v687 = vadd.f32 %v349, %v575
    %v688 = vadd.f32 %v350, %v576
    %v689 = vadd.f32 %v351, %v577
    %v690 = vadd.f32 %v352, %v578
    %v691 = vadd.f32 %v353, %v579
    %v692 = vadd.f32 %v354, %v580
    %v693 = vadd.f32 %v355, %v581
    %v694 = vadd.f32 %v356, %v582
    %v695 = vadd.f32 %v357, %v583
    %v696 = vadd.f32 %v358, %v584
    %v697 = vadd.f32 %v359, %v585
    %v698 = vadd.f32 %v360, %v586
    %v699 = vadd.f32 %v361, %v587
    %v700 = vadd.f32 %v362, %v588
    %s701 = sld [smem:[#allocation2 + $0x2]]
    %v702 = vld [vmem:[%s25] sm:$0xff]
    %v703 = vld [vmem:[%s25 + $0x8] sm:$0xff]
    %v704 = vld [vmem:[%s25 + $0x10] sm:$0xff]
    %v705 = vld [vmem:[%s25 + $0x18] sm:$0xf]
    %v706 = vld [vmem:[%s25 + $0x20] sm:$0xff]
    %v707 = vld [vmem:[%s25 + $0x28] sm:$0xff]
    %v708 = vld [vmem:[%s25 + $0x30] sm:$0xff]
    %v709 = vld [vmem:[%s25 + $0x38] sm:$0xf]
    %v710 = vld [vmem:[%s25 + $0x40] sm:$0xff]
    %v711 = vld [vmem:[%s25 + $0x48] sm:$0xff]
    %v712 = vld [vmem:[%s25 + $0x50] sm:$0xff]
    %v713 = vld [vmem:[%s25 + $0x58] sm:$0xf]
    %v714 = vld [vmem:[%s25 + $0x60] sm:$0xff]
    %v715 = vld [vmem:[%s25 + $0x68] sm:$0xff]
    %v716 = vld [vmem:[%s25 + $0x70] sm:$0xff]
    %v717 = vld [vmem:[%s25 + $0x78] sm:$0xf]
    %v718 = vld [vmem:[%s25 + $0x80] sm:$0xff]
    %v719 = vld [vmem:[%s25 + $0x88] sm:$0xff]
    %v720 = vld [vmem:[%s25 + $0x90] sm:$0xff]
    %v721 = vld [vmem:[%s25 + $0x98] sm:$0xf]
    %v722 = vld [vmem:[%s25 + $0xa0] sm:$0xff]
    %v723 = vld [vmem:[%s25 + $0xa8] sm:$0xff]
    %v724 = vld [vmem:[%s25 + $0xb0] sm:$0xff]
    %v725 = vld [vmem:[%s25 + $0xb8] sm:$0xf]
    %v726 = vld [vmem:[%s25 + $0xc0] sm:$0xff]
    %v727 = vld [vmem:[%s25 + $0xc8] sm:$0xff]
    %v728 = vld [vmem:[%s25 + $0xd0] sm:$0xff]
    %v729 = vld [vmem:[%s25 + $0xd8] sm:$0xf]
    %v730 = vld [vmem:[%s25 + $0xe0] sm:$0xff]
    %v731 = vld [vmem:[%s25 + $0xe8] sm:$0xff]
    %v732 = vld [vmem:[%s25 + $0xf0] sm:$0xff]
    %v733 = vld [vmem:[%s25 + $0xf8] sm:$0xf]
    %v734 = vld [vmem:[%s25 + $0x100] sm:$0xff]
    %v735 = vld [vmem:[%s25 + $0x108] sm:$0xff]
    %v736 = vld [vmem:[%s25 + $0x110] sm:$0xff]
    %v737 = vld [vmem:[%s25 + $0x118] sm:$0xf]
    %v738 = vld [vmem:[%s25 + $0x120] sm:$0xff]
    %v739 = vld [vmem:[%s25 + $0x128] sm:$0xff]
    %v740 = vld [vmem:[%s25 + $0x130] sm:$0xff]
    %v741 = vld [vmem:[%s25 + $0x138] sm:$0xf]
    %v742 = vld [vmem:[%s25 + $0x140] sm:$0xff]
    %v743 = vld [vmem:[%s25 + $0x148] sm:$0xff]
    %v744 = vld [vmem:[%s25 + $0x150] sm:$0xff]
    %v745 = vld [vmem:[%s25 + $0x158] sm:$0xf]
    %v746 = vld [vmem:[%s25 + $0x160] sm:$0xff]
    %v747 = vld [vmem:[%s25 + $0x168] sm:$0xff]
    %v748 = vld [vmem:[%s25 + $0x170] sm:$0xff]
    %v749 = vld [vmem:[%s25 + $0x178] sm:$0xf]
    %v750 = vld [vmem:[%s25 + $0x180] sm:$0xff]
    %v751 = vld [vmem:[%s25 + $0x188] sm:$0xff]
    %v752 = vld [vmem:[%s25 + $0x190] sm:$0xff]
    %v753 = vld [vmem:[%s25 + $0x198] sm:$0xf]
    %v754 = vld [vmem:[%s25 + $0x1a0] sm:$0xff]
    %v755 = vld [vmem:[%s25 + $0x1a8] sm:$0xff]
    %v756 = vld [vmem:[%s25 + $0x1b0] sm:$0xff]
    %v757 = vld [vmem:[%s25 + $0x1b8] sm:$0xf]
    %v758 = vld [vmem:[%s25 + $0x1c0] sm:$0xff]
    %v759 = vld [vmem:[%s25 + $0x1c8] sm:$0xff]
    %v760 = vld [vmem:[%s25 + $0x1d0] sm:$0xff]
    %v761 = vld [vmem:[%s25 + $0x1d8] sm:$0xf]
    %v762 = vld [vmem:[%s25 + $0x1e0] sm:$0xff]
    %v763 = vld [vmem:[%s25 + $0x1e8] sm:$0xff]
    %v764 = vld [vmem:[%s25 + $0x1f0] sm:$0xff]
    %v765 = vld [vmem:[%s25 + $0x1f8] sm:$0xf]
    %v766 = vld [vmem:[%s25 + $0x200] sm:$0xff]
    %v767 = vld [vmem:[%s25 + $0x208] sm:$0xff]
    %v768 = vld [vmem:[%s25 + $0x210] sm:$0xff]
    %v769 = vld [vmem:[%s25 + $0x218] sm:$0xf]
    %v770 = vld [vmem:[%s25 + $0x220] sm:$0xff]
    %v771 = vld [vmem:[%s25 + $0x228] sm:$0xff]
    %v772 = vld [vmem:[%s25 + $0x230] sm:$0xff]
    %v773 = vld [vmem:[%s25 + $0x238] sm:$0xf]
    %v774 = vld [vmem:[%s25 + $0x240] sm:$0xff]
    %v775 = vld [vmem:[%s25 + $0x248] sm:$0xff]
    %v776 = vld [vmem:[%s25 + $0x250] sm:$0xff]
    %v777 = vld [vmem:[%s25 + $0x258] sm:$0xf]
    %v778 = vld [vmem:[%s25 + $0x260] sm:$0xff]
    %v779 = vld [vmem:[%s25 + $0x268] sm:$0xff]
    %v780 = vld [vmem:[%s25 + $0x270] sm:$0xff]
    %v781 = vld [vmem:[%s25 + $0x278] sm:$0xf]
    %v782 = vld [vmem:[%s25 + $0x280] sm:$0xff]
    %v783 = vld [vmem:[%s25 + $0x288] sm:$0xff]
    %v784 = vld [vmem:[%s25 + $0x290] sm:$0xff]
    %v785 = vld [vmem:[%s25 + $0x298] sm:$0xf]
    %v786 = vld [vmem:[%s25 + $0x2a0] sm:$0xff]
    %v787 = vld [vmem:[%s25 + $0x2a8] sm:$0xff]
    %v788 = vld [vmem:[%s25 + $0x2b0] sm:$0xff]
    %v789 = vld [vmem:[%s25 + $0x2b8] sm:$0xf]
    %v790 = vld [vmem:[%s25 + $0x2c0] sm:$0xff]
    %v791 = vld [vmem:[%s25 + $0x2c8] sm:$0xff]
    %v792 = vld [vmem:[%s25 + $0x2d0] sm:$0xff]
    %v793 = vld [vmem:[%s25 + $0x2d8] sm:$0xf]
    %v794 = vld [vmem:[%s25 + $0x2e0] sm:$0xff]
    %v795 = vld [vmem:[%s25 + $0x2e8] sm:$0xff]
    %v796 = vld [vmem:[%s25 + $0x2f0] sm:$0xff]
    %v797 = vld [vmem:[%s25 + $0x2f8] sm:$0xf]
    %v798 = vld [vmem:[%s25 + $0x300] sm:$0xff]
    %v799 = vld [vmem:[%s25 + $0x308] sm:$0xff]
    %v800 = vld [vmem:[%s25 + $0x310] sm:$0xff]
    %v801 = vld [vmem:[%s25 + $0x318] sm:$0xf]
    %v802 = vld [vmem:[%s25 + $0x320] sm:$0xff]
    %v803 = vld [vmem:[%s25 + $0x328] sm:$0xff]
    %v804 = vld [vmem:[%s25 + $0x330] sm:$0xff]
    %v805 = vld [vmem:[%s25 + $0x338] sm:$0xf]
    %v806 = vld [vmem:[%s25 + $0x340] sm:$0xff]
    %v807 = vld [vmem:[%s25 + $0x348] sm:$0xff]
    %v808 = vld [vmem:[%s25 + $0x350] sm:$0xff]
    %v809 = vld [vmem:[%s25 + $0x358] sm:$0xf]
    %v810 = vld [vmem:[%s25 + $0x360] sm:$0xff]
    %v811 = vld [vmem:[%s25 + $0x368] sm:$0xff]
    %v812 = vld [vmem:[%s25 + $0x370] sm:$0xff]
    %v813 = vld [vmem:[%s25 + $0x378] sm:$0xf]
    %v814 = vstv %s701
    %v815 = vmul.f32 %v814, %v702
    %v816 = vmul.f32 %v814, %v703
    %v817 = vmul.f32 %v814, %v704
    %v818 = vmul.f32 %v814, %v705
    %v819 = vmul.f32 %v814, %v706
    %v820 = vmul.f32 %v814, %v707
    %v821 = vmul.f32 %v814, %v708
    %v822 = vmul.f32 %v814, %v709
    %v823 = vmul.f32 %v814, %v710
    %v824 = vmul.f32 %v814, %v711
    %v825 = vmul.f32 %v814, %v712
    %v826 = vmul.f32 %v814, %v713
    %v827 = vmul.f32 %v814, %v714
    %v828 = vmul.f32 %v814, %v715
    %v829 = vmul.f32 %v814, %v716
    %v830 = vmul.f32 %v814, %v717
    %v831 = vmul.f32 %v814, %v718
    %v832 = vmul.f32 %v814, %v719
    %v833 = vmul.f32 %v814, %v720
    %v834 = vmul.f32 %v814, %v721
    %v835 = vmul.f32 %v814, %v722
    %v836 = vmul.f32 %v814, %v723
    %v837 = vmul.f32 %v814, %v724
    %v838 = vmul.f32 %v814, %v725
    %v839 = vmul.f32 %v814, %v726
    %v840 = vmul.f32 %v814, %v727
    %v841 = vmul.f32 %v814, %v728
    %v842 = vmul.f32 %v814, %v729
    %v843 = vmul.f32 %v814, %v730
    %v844 = vmul.f32 %v814, %v731
    %v845 = vmul.f32 %v814, %v732
    %v846 = vmul.f32 %v814, %v733
    %v847 = vmul.f32 %v814, %v734
    %v848 = vmul.f32 %v814, %v735
    %v849 = vmul.f32 %v814, %v736
    %v850 = vmul.f32 %v814, %v737
    %v851 = vmul.f32 %v814, %v738
    %v852 = vmul.f32 %v814, %v739
    %v853 = vmul.f32 %v814, %v740
    %v854 = vmul.f32 %v814, %v741
    %v855 = vmul.f32 %v814, %v742
    %v856 = vmul.f32 %v814, %v743
    %v857 = vmul.f32 %v814, %v744
    %v858 = vmul.f32 %v814, %v745
    %v859 = vmul.f32 %v814, %v746
    %v860 = vmul.f32 %v814, %v747
    %v861 = vmul.f32 %v814, %v748
    %v862 = vmul.f32 %v814, %v749
    %v863 = vmul.f32 %v814, %v750
    %v864 = vmul.f32 %v814, %v751
    %v865 = vmul.f32 %v814, %v752
    %v866 = vmul.f32 %v814, %v753
    %v867 = vmul.f32 %v814, %v754
    %v868 = vmul.f32 %v814, %v755
    %v869 = vmul.f32 %v814, %v756
    %v870 = vmul.f32 %v814, %v757
    %v871 = vmul.f32 %v814, %v758
    %v872 = vmul.f32 %v814, %v759
    %v873 = vmul.f32 %v814, %v760
    %v874 = vmul.f32 %v814, %v761
    %v875 = vmul.f32 %v814, %v762
    %v876 = vmul.f32 %v814, %v763
    %v877 = vmul.f32 %v814, %v764
    %v878 = vmul.f32 %v814, %v765
    %v879 = vmul.f32 %v814, %v766
    %v880 = vmul.f32 %v814, %v767
    %v881 = vmul.f32 %v814, %v768
    %v882 = vmul.f32 %v814, %v769
    %v883 = vmul.f32 %v814, %v770
    %v884 = vmul.f32 %v814, %v771
    %v885 = vmul.f32 %v814, %v772
    %v886 = vmul.f32 %v814, %v773
    %v887 = vmul.f32 %v814, %v774
    %v888 = vmul.f32 %v814, %v775
    %v889 = vmul.f32 %v814, %v776
    %v890 = vmul.f32 %v814, %v777
    %v891 = vmul.f32 %v814, %v778
    %v892 = vmul.f32 %v814, %v779
    %v893 = vmul.f32 %v814, %v780
    %v894 = vmul.f32 %v814, %v781
    %v895 = vmul.f32 %v814, %v782
    %v896 = vmul.f32 %v814, %v783
    %v897 = vmul.f32 %v814, %v784
    %v898 = vmul.f32 %v814, %v785
    %v899 = vmul.f32 %v814, %v786
    %v900 = vmul.f32 %v814, %v787
    %v901 = vmul.f32 %v814, %v788
    %v902 = vmul.f32 %v814, %v789
    %v903 = vmul.f32 %v814, %v790
    %v904 = vmul.f32 %v814, %v791
    %v905 = vmul.f32 %v814, %v792
    %v906 = vmul.f32 %v814, %v793
    %v907 = vmul.f32 %v814, %v794
    %v908 = vmul.f32 %v814, %v795
    %v909 = vmul.f32 %v814, %v796
    %v910 = vmul.f32 %v814, %v797
    %v911 = vmul.f32 %v814, %v798
    %v912 = vmul.f32 %v814, %v799
    %v913 = vmul.f32 %v814, %v800
    %v914 = vmul.f32 %v814, %v801
    %v915 = vmul.f32 %v814, %v802
    %v916 = vmul.f32 %v814, %v803
    %v917 = vmul.f32 %v814, %v804
    %v918 = vmul.f32 %v814, %v805
    %v919 = vmul.f32 %v814, %v806
    %v920 = vmul.f32 %v814, %v807
    %v921 = vmul.f32 %v814, %v808
    %v922 = vmul.f32 %v814, %v809
    %v923 = vmul.f32 %v814, %v810
    %v924 = vmul.f32 %v814, %v811
    %v925 = vmul.f32 %v814, %v812
    %v926 = vmul.f32 %v814, %v813
    %v927 = vadd.f32 %v589, %v815
    %v928 = vadd.f32 %v590, %v816
    %v929 = vadd.f32 %v591, %v817
    %v930 = vadd.f32 %v592, %v818
    %v931 = vadd.f32 %v593, %v819
    %v932 = vadd.f32 %v594, %v820
    %v933 = vadd.f32 %v595, %v821
    %v934 = vadd.f32 %v596, %v822
    %v935 = vadd.f32 %v597, %v823
    %v936 = vadd.f32 %v598, %v824
    %v937 = vadd.f32 %v599, %v825
    %v938 = vadd.f32 %v600, %v826
    %v939 = vadd.f32 %v601, %v827
    %v940 = vadd.f32 %v602, %v828
    %v941 = vadd.f32 %v603, %v829
    %v942 = vadd.f32 %v604, %v830
    %v943 = vadd.f32 %v605, %v831
    %v944 = vadd.f32 %v606, %v832
    %v945 = vadd.f32 %v607, %v833
    %v946 = vadd.f32 %v608, %v834
    %v947 = vadd.f32 %v609, %v835
    %v948 = vadd.f32 %v610, %v836
    %v949 = vadd.f32 %v611, %v837
    %v950 = vadd.f32 %v612, %v838
    %v951 = vadd.f32 %v613, %v839
    %v952 = vadd.f32 %v614, %v840
    %v953 = vadd.f32 %v615, %v841
    %v954 = vadd.f32 %v616, %v842
    %v955 = vadd.f32 %v617, %v843
    %v956 = vadd.f32 %v618, %v844
    %v957 = vadd.f32 %v619, %v845
    %v958 = vadd.f32 %v620, %v846
    %v959 = vadd.f32 %v621, %v847
    %v960 = vadd.f32 %v622, %v848
    %v961 = vadd.f32 %v623, %v849
    %v962 = vadd.f32 %v624, %v850
    %v963 = vadd.f32 %v625, %v851
    %v964 = vadd.f32 %v626, %v852
    %v965 = vadd.f32 %v627, %v853
    %v966 = vadd.f32 %v628, %v854
    %v967 = vadd.f32 %v629, %v855
    %v968 = vadd.f32 %v630, %v856
    %v969 = vadd.f32 %v631, %v857
    %v970 = vadd.f32 %v632, %v858
    %v971 = vadd.f32 %v633, %v859
    %v972 = vadd.f32 %v634, %v860
    %v973 = vadd.f32 %v635, %v861
    %v974 = vadd.f32 %v636, %v862
    %v975 = vadd.f32 %v637, %v863
    %v976 = vadd.f32 %v638, %v864
    %v977 = vadd.f32 %v639, %v865
    %v978 = vadd.f32 %v640, %v866
    %v979 = vadd.f32 %v641, %v867
    %v980 = vadd.f32 %v642, %v868
    %v981 = vadd.f32 %v643, %v869
    %v982 = vadd.f32 %v644, %v870
    %v983 = vadd.f32 %v645, %v871
    %v984 = vadd.f32 %v646, %v872
    %v985 = vadd.f32 %v647, %v873
    %v986 = vadd.f32 %v648, %v874
    %v987 = vadd.f32 %v649, %v875
    %v988 = vadd.f32 %v650, %v876
    %v989 = vadd.f32 %v651, %v877
    %v990 = vadd.f32 %v652, %v878
    %v991 = vadd.f32 %v653, %v879
    %v992 = vadd.f32 %v654, %v880
    %v993 = vadd.f32 %v655, %v881
    %v994 = vadd.f32 %v656, %v882
    %v995 = vadd.f32 %v657, %v883
    %v996 = vadd.f32 %v658, %v884
    %v997 = vadd.f32 %v659, %v885
    %v998 = vadd.f32 %v660, %v886
    %v999 = vadd.f32 %v661, %v887
    %v1000 = vadd.f32 %v662, %v888
    %v1001 = vadd.f32 %v663, %v889
    %v1002 = vadd.f32 %v664, %v890
    %v1003 = vadd.f32 %v665, %v891
    %v1004 = vadd.f32 %v666, %v892
    %v1005 = vadd.f32 %v667, %v893
    %v1006 = vadd.f32 %v668, %v894
    %v1007 = vadd.f32 %v669, %v895
    %v1008 = vadd.f32 %v670, %v896
    %v1009 = vadd.f32 %v671, %v897
    %v1010 = vadd.f32 %v672, %v898
    %v1011 = vadd.f32 %v673, %v899
    %v1012 = vadd.f32 %v674, %v900
    %v1013 = vadd.f32 %v675, %v901
    %v1014 = vadd.f32 %v676, %v902
    %v1015 = vadd.f32 %v677, %v903
    %v1016 = vadd.f32 %v678, %v904
    %v1017 = vadd.f32 %v679, %v905
    %v1018 = vadd.f32 %v680, %v906
    %v1019 = vadd.f32 %v681, %v907
    %v1020 = vadd.f32 %v682, %v908
    %v1021 = vadd.f32 %v683, %v909
    %v1022 = vadd.f32 %v684, %v910
    %v1023 = vadd.f32 %v685, %v911
    %v1024 = vadd.f32 %v686, %v912
    %v1025 = vadd.f32 %v687, %v913
    %v1026 = vadd.f32 %v688, %v914
    %v1027 = vadd.f32 %v689, %v915
    %v1028 = vadd.f32 %v690, %v916
    %v1029 = vadd.f32 %v691, %v917
    %v1030 = vadd.f32 %v692, %v918
    %v1031 = vadd.f32 %v693, %v919
    %v1032 = vadd.f32 %v694, %v920
    %v1033 = vadd.f32 %v695, %v921
    %v1034 = vadd.f32 %v696, %v922
    %v1035 = vadd.f32 %v697, %v923
    %v1036 = vadd.f32 %v698, %v924
    %v1037 = vadd.f32 %v699, %v925
    %v1038 = vadd.f32 %v700, %v926
    %s1039 = sld [smem:[#allocation2 + $0x80]]
    %s1040 = scalar_lea.vmem %s0, 32
    %v1041 = vld [vmem:[%s1040 + $0x2] sm:$0xff]
    %v1042 = vld [vmem:[%s1040 + $0xa] sm:$0xff]
    %v1043 = vld [vmem:[%s1040 + $0x12] sm:$0xff]
    %v1044 = vld [vmem:[%s1040 + $0x1a] sm:$0xf]
    %v1045 = vld [vmem:[%s1040 + $0x22] sm:$0xff]
    %v1046 = vld [vmem:[%s1040 + $0x2a] sm:$0xff]
    %v1047 = vld [vmem:[%s1040 + $0x32] sm:$0xff]
    %v1048 = vld [vmem:[%s1040 + $0x3a] sm:$0xf]
    %v1049 = vld [vmem:[%s1040 + $0x42] sm:$0xff]
    %v1050 = vld [vmem:[%s1040 + $0x4a] sm:$0xff]
    %v1051 = vld [vmem:[%s1040 + $0x52] sm:$0xff]
    %v1052 = vld [vmem:[%s1040 + $0x5a] sm:$0xf]
    %v1053 = vld [vmem:[%s1040 + $0x62] sm:$0xff]
    %v1054 = vld [vmem:[%s1040 + $0x6a] sm:$0xff]
    %v1055 = vld [vmem:[%s1040 + $0x72] sm:$0xff]
    %v1056 = vld [vmem:[%s1040 + $0x7a] sm:$0xf]
    %v1057 = vld [vmem:[%s1040 + $0x82] sm:$0xff]
    %v1058 = vld [vmem:[%s1040 + $0x8a] sm:$0xff]
    %v1059 = vld [vmem:[%s1040 + $0x92] sm:$0xff]
    %v1060 = vld [vmem:[%s1040 + $0x9a] sm:$0xf]
    %v1061 = vld [vmem:[%s1040 + $0xa2] sm:$0xff]
    %v1062 = vld [vmem:[%s1040 + $0xaa] sm:$0xff]
    %v1063 = vld [vmem:[%s1040 + $0xb2] sm:$0xff]
    %v1064 = vld [vmem:[%s1040 + $0xba] sm:$0xf]
    %v1065 = vld [vmem:[%s1040 + $0xc2] sm:$0xff]
    %v1066 = vld [vmem:[%s1040 + $0xca] sm:$0xff]
    %v1067 = vld [vmem:[%s1040 + $0xd2] sm:$0xff]
    %v1068 = vld [vmem:[%s1040 + $0xda] sm:$0xf]
    %v1069 = vld [vmem:[%s1040 + $0xe2] sm:$0xff]
    %v1070 = vld [vmem:[%s1040 + $0xea] sm:$0xff]
    %v1071 = vld [vmem:[%s1040 + $0xf2] sm:$0xff]
    %v1072 = vld [vmem:[%s1040 + $0xfa] sm:$0xf]
    %v1073 = vld [vmem:[%s1040 + $0x102] sm:$0xff]
    %v1074 = vld [vmem:[%s1040 + $0x10a] sm:$0xff]
    %v1075 = vld [vmem:[%s1040 + $0x112] sm:$0xff]
    %v1076 = vld [vmem:[%s1040 + $0x11a] sm:$0xf]
    %v1077 = vld [vmem:[%s1040 + $0x122] sm:$0xff]
    %v1078 = vld [vmem:[%s1040 + $0x12a] sm:$0xff]
    %v1079 = vld [vmem:[%s1040 + $0x132] sm:$0xff]
    %v1080 = vld [vmem:[%s1040 + $0x13a] sm:$0xf]
    %v1081 = vld [vmem:[%s1040 + $0x142] sm:$0xff]
    %v1082 = vld [vmem:[%s1040 + $0x14a] sm:$0xff]
    %v1083 = vld [vmem:[%s1040 + $0x152] sm:$0xff]
    %v1084 = vld [vmem:[%s1040 + $0x15a] sm:$0xf]
    %v1085 = vld [vmem:[%s1040 + $0x162] sm:$0xff]
    %v1086 = vld [vmem:[%s1040 + $0x16a] sm:$0xff]
    %v1087 = vld [vmem:[%s1040 + $0x172] sm:$0xff]
    %v1088 = vld [vmem:[%s1040 + $0x17a] sm:$0xf]
    %v1089 = vld [vmem:[%s1040 + $0x182] sm:$0xff]
    %v1090 = vld [vmem:[%s1040 + $0x18a] sm:$0xff]
    %v1091 = vld [vmem:[%s1040 + $0x192] sm:$0xff]
    %v1092 = vld [vmem:[%s1040 + $0x19a] sm:$0xf]
    %v1093 = vld [vmem:[%s1040 + $0x1a2] sm:$0xff]
    %v1094 = vld [vmem:[%s1040 + $0x1aa] sm:$0xff]
    %v1095 = vld [vmem:[%s1040 + $0x1b2] sm:$0xff]
    %v1096 = vld [vmem:[%s1040 + $0x1ba] sm:$0xf]
    %v1097 = vld [vmem:[%s1040 + $0x1c2] sm:$0xff]
    %v1098 = vld [vmem:[%s1040 + $0x1ca] sm:$0xff]
    %v1099 = vld [vmem:[%s1040 + $0x1d2] sm:$0xff]
    %v1100 = vld [vmem:[%s1040 + $0x1da] sm:$0xf]
    %v1101 = vld [vmem:[%s1040 + $0x1e2] sm:$0xff]
    %v1102 = vld [vmem:[%s1040 + $0x1ea] sm:$0xff]
    %v1103 = vld [vmem:[%s1040 + $0x1f2] sm:$0xff]
    %v1104 = vld [vmem:[%s1040 + $0x1fa] sm:$0xf]
    %v1105 = vld [vmem:[%s1040 + $0x202] sm:$0xff]
    %v1106 = vld [vmem:[%s1040 + $0x20a] sm:$0xff]
    %v1107 = vld [vmem:[%s1040 + $0x212] sm:$0xff]
    %v1108 = vld [vmem:[%s1040 + $0x21a] sm:$0xf]
    %v1109 = vld [vmem:[%s1040 + $0x222] sm:$0xff]
    %v1110 = vld [vmem:[%s1040 + $0x22a] sm:$0xff]
    %v1111 = vld [vmem:[%s1040 + $0x232] sm:$0xff]
    %v1112 = vld [vmem:[%s1040 + $0x23a] sm:$0xf]
    %v1113 = vld [vmem:[%s1040 + $0x242] sm:$0xff]
    %v1114 = vld [vmem:[%s1040 + $0x24a] sm:$0xff]
    %v1115 = vld [vmem:[%s1040 + $0x252] sm:$0xff]
    %v1116 = vld [vmem:[%s1040 + $0x25a] sm:$0xf]
    %v1117 = vld [vmem:[%s1040 + $0x262] sm:$0xff]
    %v1118 = vld [vmem:[%s1040 + $0x26a] sm:$0xff]
    %v1119 = vld [vmem:[%s1040 + $0x272] sm:$0xff]
    %v1120 = vld [vmem:[%s1040 + $0x27a] sm:$0xf]
    %v1121 = vld [vmem:[%s1040 + $0x282] sm:$0xff]
    %v1122 = vld [vmem:[%s1040 + $0x28a] sm:$0xff]
    %v1123 = vld [vmem:[%s1040 + $0x292] sm:$0xff]
    %v1124 = vld [vmem:[%s1040 + $0x29a] sm:$0xf]
    %v1125 = vld [vmem:[%s1040 + $0x2a2] sm:$0xff]
    %v1126 = vld [vmem:[%s1040 + $0x2aa] sm:$0xff]
    %v1127 = vld [vmem:[%s1040 + $0x2b2] sm:$0xff]
    %v1128 = vld [vmem:[%s1040 + $0x2ba] sm:$0xf]
    %v1129 = vld [vmem:[%s1040 + $0x2c2] sm:$0xff]
    %v1130 = vld [vmem:[%s1040 + $0x2ca] sm:$0xff]
    %v1131 = vld [vmem:[%s1040 + $0x2d2] sm:$0xff]
    %v1132 = vld [vmem:[%s1040 + $0x2da] sm:$0xf]
    %v1133 = vld [vmem:[%s1040 + $0x2e2] sm:$0xff]
    %v1134 = vld [vmem:[%s1040 + $0x2ea] sm:$0xff]
    %v1135 = vld [vmem:[%s1040 + $0x2f2] sm:$0xff]
    %v1136 = vld [vmem:[%s1040 + $0x2fa] sm:$0xf]
    %v1137 = vld [vmem:[%s1040 + $0x302] sm:$0xff]
    %v1138 = vld [vmem:[%s1040 + $0x30a] sm:$0xff]
    %v1139 = vld [vmem:[%s1040 + $0x312] sm:$0xff]
    %v1140 = vld [vmem:[%s1040 + $0x31a] sm:$0xf]
    %v1141 = vld [vmem:[%s1040 + $0x322] sm:$0xff]
    %v1142 = vld [vmem:[%s1040 + $0x32a] sm:$0xff]
    %v1143 = vld [vmem:[%s1040 + $0x332] sm:$0xff]
    %v1144 = vld [vmem:[%s1040 + $0x33a] sm:$0xf]
    %v1145 = vld [vmem:[%s1040 + $0x342] sm:$0xff]
    %v1146 = vld [vmem:[%s1040 + $0x34a] sm:$0xff]
    %v1147 = vld [vmem:[%s1040 + $0x352] sm:$0xff]
    %v1148 = vld [vmem:[%s1040 + $0x35a] sm:$0xf]
    %v1149 = vld [vmem:[%s1040 + $0x362] sm:$0xff]
    %v1150 = vld [vmem:[%s1040 + $0x36a] sm:$0xff]
    %v1151 = vld [vmem:[%s1040 + $0x372] sm:$0xff]
    %v1152 = vld [vmem:[%s1040 + $0x37a] sm:$0xf]
    %v1153 = vstv %s1039
    %v1154 = vmul.f32 %v1153, %v1041
    %v1155 = vmul.f32 %v1153, %v1042
    %v1156 = vmul.f32 %v1153, %v1043
    %v1157 = vmul.f32 %v1153, %v1044
    %v1158 = vmul.f32 %v1153, %v1045
    %v1159 = vmul.f32 %v1153, %v1046
    %v1160 = vmul.f32 %v1153, %v1047
    %v1161 = vmul.f32 %v1153, %v1048
    %v1162 = vmul.f32 %v1153, %v1049
    %v1163 = vmul.f32 %v1153, %v1050
    %v1164 = vmul.f32 %v1153, %v1051
    %v1165 = vmul.f32 %v1153, %v1052
    %v1166 = vmul.f32 %v1153, %v1053
    %v1167 = vmul.f32 %v1153, %v1054
    %v1168 = vmul.f32 %v1153, %v1055
    %v1169 = vmul.f32 %v1153, %v1056
    %v1170 = vmul.f32 %v1153, %v1057
    %v1171 = vmul.f32 %v1153, %v1058
    %v1172 = vmul.f32 %v1153, %v1059
    %v1173 = vmul.f32 %v1153, %v1060
    %v1174 = vmul.f32 %v1153, %v1061
    %v1175 = vmul.f32 %v1153, %v1062
    %v1176 = vmul.f32 %v1153, %v1063
    %v1177 = vmul.f32 %v1153, %v1064
    %v1178 = vmul.f32 %v1153, %v1065
    %v1179 = vmul.f32 %v1153, %v1066
    %v1180 = vmul.f32 %v1153, %v1067
    %v1181 = vmul.f32 %v1153, %v1068
    %v1182 = vmul.f32 %v1153, %v1069
    %v1183 = vmul.f32 %v1153, %v1070
    %v1184 = vmul.f32 %v1153, %v1071
    %v1185 = vmul.f32 %v1153, %v1072
    %v1186 = vmul.f32 %v1153, %v1073
    %v1187 = vmul.f32 %v1153, %v1074
    %v1188 = vmul.f32 %v1153, %v1075
    %v1189 = vmul.f32 %v1153, %v1076
    %v1190 = vmul.f32 %v1153, %v1077
    %v1191 = vmul.f32 %v1153, %v1078
    %v1192 = vmul.f32 %v1153, %v1079
    %v1193 = vmul.f32 %v1153, %v1080
    %v1194 = vmul.f32 %v1153, %v1081
    %v1195 = vmul.f32 %v1153, %v1082
    %v1196 = vmul.f32 %v1153, %v1083
    %v1197 = vmul.f32 %v1153, %v1084
    %v1198 = vmul.f32 %v1153, %v1085
    %v1199 = vmul.f32 %v1153, %v1086
    %v1200 = vmul.f32 %v1153, %v1087
    %v1201 = vmul.f32 %v1153, %v1088
    %v1202 = vmul.f32 %v1153, %v1089
    %v1203 = vmul.f32 %v1153, %v1090
    %v1204 = vmul.f32 %v1153, %v1091
    %v1205 = vmul.f32 %v1153, %v1092
    %v1206 = vmul.f32 %v1153, %v1093
    %v1207 = vmul.f32 %v1153, %v1094
    %v1208 = vmul.f32 %v1153, %v1095
    %v1209 = vmul.f32 %v1153, %v1096
    %v1210 = vmul.f32 %v1153, %v1097
    %v1211 = vmul.f32 %v1153, %v1098
    %v1212 = vmul.f32 %v1153, %v1099
    %v1213 = vmul.f32 %v1153, %v1100
    %v1214 = vmul.f32 %v1153, %v1101
    %v1215 = vmul.f32 %v1153, %v1102
    %v1216 = vmul.f32 %v1153, %v1103
    %v1217 = vmul.f32 %v1153, %v1104
    %v1218 = vmul.f32 %v1153, %v1105
    %v1219 = vmul.f32 %v1153, %v1106
    %v1220 = vmul.f32 %v1153, %v1107
    %v1221 = vmul.f32 %v1153, %v1108
    %v1222 = vmul.f32 %v1153, %v1109
    %v1223 = vmul.f32 %v1153, %v1110
    %v1224 = vmul.f32 %v1153, %v1111
    %v1225 = vmul.f32 %v1153, %v1112
    %v1226 = vmul.f32 %v1153, %v1113
    %v1227 = vmul.f32 %v1153, %v1114
    %v1228 = vmul.f32 %v1153, %v1115
    %v1229 = vmul.f32 %v1153, %v1116
    %v1230 = vmul.f32 %v1153, %v1117
    %v1231 = vmul.f32 %v1153, %v1118
    %v1232 = vmul.f32 %v1153, %v1119
    %v1233 = vmul.f32 %v1153, %v1120
    %v1234 = vmul.f32 %v1153, %v1121
    %v1235 = vmul.f32 %v1153, %v1122
    %v1236 = vmul.f32 %v1153, %v1123
    %v1237 = vmul.f32 %v1153, %v1124
    %v1238 = vmul.f32 %v1153, %v1125
    %v1239 = vmul.f32 %v1153, %v1126
    %v1240 = vmul.f32 %v1153, %v1127
    %v1241 = vmul.f32 %v1153, %v1128
    %v1242 = vmul.f32 %v1153, %v1129
    %v1243 = vmul.f32 %v1153, %v1130
    %v1244 = vmul.f32 %v1153, %v1131
    %v1245 = vmul.f32 %v1153, %v1132
    %v1246 = vmul.f32 %v1153, %v1133
    %v1247 = vmul.f32 %v1153, %v1134
    %v1248 = vmul.f32 %v1153, %v1135
    %v1249 = vmul.f32 %v1153, %v1136
    %v1250 = vmul.f32 %v1153, %v1137
    %v1251 = vmul.f32 %v1153, %v1138
    %v1252 = vmul.f32 %v1153, %v1139
    %v1253 = vmul.f32 %v1153, %v1140
    %v1254 = vmul.f32 %v1153, %v1141
    %v1255 = vmul.f32 %v1153, %v1142
    %v1256 = vmul.f32 %v1153, %v1143
    %v1257 = vmul.f32 %v1153, %v1144
    %v1258 = vmul.f32 %v1153, %v1145
    %v1259 = vmul.f32 %v1153, %v1146
    %v1260 = vmul.f32 %v1153, %v1147
    %v1261 = vmul.f32 %v1153, %v1148
    %v1262 = vmul.f32 %v1153, %v1149
    %v1263 = vmul.f32 %v1153, %v1150
    %v1264 = vmul.f32 %v1153, %v1151
    %v1265 = vmul.f32 %v1153, %v1152
    %v1266 = vadd.f32 %v927, %v1154
    %v1267 = vadd.f32 %v928, %v1155
    %v1268 = vadd.f32 %v929, %v1156
    %v1269 = vadd.f32 %v930, %v1157
    %v1270 = vadd.f32 %v931, %v1158
    %v1271 = vadd.f32 %v932, %v1159
    %v1272 = vadd.f32 %v933, %v1160
    %v1273 = vadd.f32 %v934, %v1161
    %v1274 = vadd.f32 %v935, %v1162
    %v1275 = vadd.f32 %v936, %v1163
    %v1276 = vadd.f32 %v937, %v1164
    %v1277 = vadd.f32 %v938, %v1165
    %v1278 = vadd.f32 %v939, %v1166
    %v1279 = vadd.f32 %v940, %v1167
    %v1280 = vadd.f32 %v941, %v1168
    %v1281 = vadd.f32 %v942, %v1169
    %v1282 = vadd.f32 %v943, %v1170
    %v1283 = vadd.f32 %v944, %v1171
    %v1284 = vadd.f32 %v945, %v1172
    %v1285 = vadd.f32 %v946, %v1173
    %v1286 = vadd.f32 %v947, %v1174
    %v1287 = vadd.f32 %v948, %v1175
    %v1288 = vadd.f32 %v949, %v1176
    %v1289 = vadd.f32 %v950, %v1177
    %v1290 = vadd.f32 %v951, %v1178
    %v1291 = vadd.f32 %v952, %v1179
    %v1292 = vadd.f32 %v953, %v1180
    %v1293 = vadd.f32 %v954, %v1181
    %v1294 = vadd.f32 %v955, %v1182
    %v1295 = vadd.f32 %v956, %v1183
    %v1296 = vadd.f32 %v957, %v1184
    %v1297 = vadd.f32 %v958, %v1185
    %v1298 = vadd.f32 %v959, %v1186
    %v1299 = vadd.f32 %v960, %v1187
    %v1300 = vadd.f32 %v961, %v1188
    %v1301 = vadd.f32 %v962, %v1189
    %v1302 = vadd.f32 %v963, %v1190
    %v1303 = vadd.f32 %v964, %v1191
    %v1304 = vadd.f32 %v965, %v1192
    %v1305 = vadd.f32 %v966, %v1193
    %v1306 = vadd.f32 %v967, %v1194
    %v1307 = vadd.f32 %v968, %v1195
    %v1308 = vadd.f32 %v969, %v1196
    %v1309 = vadd.f32 %v970, %v1197
    %v1310 = vadd.f32 %v971, %v1198
    %v1311 = vadd.f32 %v972, %v1199
    %v1312 = vadd.f32 %v973, %v1200
    %v1313 = vadd.f32 %v974, %v1201
    %v1314 = vadd.f32 %v975, %v1202
    %v1315 = vadd.f32 %v976, %v1203
    %v1316 = vadd.f32 %v977, %v1204
    %v1317 = vadd.f32 %v978, %v1205
    %v1318 = vadd.f32 %v979, %v1206
    %v1319 = vadd.f32 %v980, %v1207
    %v1320 = vadd.f32 %v981, %v1208
    %v1321 = vadd.f32 %v982, %v1209
    %v1322 = vadd.f32 %v983, %v1210
    %v1323 = vadd.f32 %v984, %v1211
    %v1324 = vadd.f32 %v985, %v1212
    %v1325 = vadd.f32 %v986, %v1213
    %v1326 = vadd.f32 %v987, %v1214
    %v1327 = vadd.f32 %v988, %v1215
    %v1328 = vadd.f32 %v989, %v1216
    %v1329 = vadd.f32 %v990, %v1217
    %v1330 = vadd.f32 %v991, %v1218
    %v1331 = vadd.f32 %v992, %v1219
    %v1332 = vadd.f32 %v993, %v1220
    %v1333 = vadd.f32 %v994, %v1221
    %v1334 = vadd.f32 %v995, %v1222
    %v1335 = vadd.f32 %v996, %v1223
    %v1336 = vadd.f32 %v997, %v1224
    %v1337 = vadd.f32 %v998, %v1225
    %v1338 = vadd.f32 %v999, %v1226
    %v1339 = vadd.f32 %v1000, %v1227
    %v1340 = vadd.f32 %v1001, %v1228
    %v1341 = vadd.f32 %v1002, %v1229
    %v1342 = vadd.f32 %v1003, %v1230
    %v1343 = vadd.f32 %v1004, %v1231
    %v1344 = vadd.f32 %v1005, %v1232
    %v1345 = vadd.f32 %v1006, %v1233
    %v1346 = vadd.f32 %v1007, %v1234
    %v1347 = vadd.f32 %v1008, %v1235
    %v1348 = vadd.f32 %v1009, %v1236
    %v1349 = vadd.f32 %v1010, %v1237
    %v1350 = vadd.f32 %v1011, %v1238
    %v1351 = vadd.f32 %v1012, %v1239
    %v1352 = vadd.f32 %v1013, %v1240
    %v1353 = vadd.f32 %v1014, %v1241
    %v1354 = vadd.f32 %v1015, %v1242
    %v1355 = vadd.f32 %v1016, %v1243
    %v1356 = vadd.f32 %v1017, %v1244
    %v1357 = vadd.f32 %v1018, %v1245
    %v1358 = vadd.f32 %v1019, %v1246
    %v1359 = vadd.f32 %v1020, %v1247
    %v1360 = vadd.f32 %v1021, %v1248
    %v1361 = vadd.f32 %v1022, %v1249
    %v1362 = vadd.f32 %v1023, %v1250
    %v1363 = vadd.f32 %v1024, %v1251
    %v1364 = vadd.f32 %v1025, %v1252
    %v1365 = vadd.f32 %v1026, %v1253
    %v1366 = vadd.f32 %v1027, %v1254
    %v1367 = vadd.f32 %v1028, %v1255
    %v1368 = vadd.f32 %v1029, %v1256
    %v1369 = vadd.f32 %v1030, %v1257
    %v1370 = vadd.f32 %v1031, %v1258
    %v1371 = vadd.f32 %v1032, %v1259
    %v1372 = vadd.f32 %v1033, %v1260
    %v1373 = vadd.f32 %v1034, %v1261
    %v1374 = vadd.f32 %v1035, %v1262
    %v1375 = vadd.f32 %v1036, %v1263
    %v1376 = vadd.f32 %v1037, %v1264
    %v1377 = vadd.f32 %v1038, %v1265
    %s1378 = sld [smem:[#allocation2 + $0x81]]
    %v1379 = vld [vmem:[%s1040 + $0x1] sm:$0xff]
    %v1380 = vld [vmem:[%s1040 + $0x9] sm:$0xff]
    %v1381 = vld [vmem:[%s1040 + $0x11] sm:$0xff]
    %v1382 = vld [vmem:[%s1040 + $0x19] sm:$0xf]
    %v1383 = vld [vmem:[%s1040 + $0x21] sm:$0xff]
    %v1384 = vld [vmem:[%s1040 + $0x29] sm:$0xff]
    %v1385 = vld [vmem:[%s1040 + $0x31] sm:$0xff]
    %v1386 = vld [vmem:[%s1040 + $0x39] sm:$0xf]
    %v1387 = vld [vmem:[%s1040 + $0x41] sm:$0xff]
    %v1388 = vld [vmem:[%s1040 + $0x49] sm:$0xff]
    %v1389 = vld [vmem:[%s1040 + $0x51] sm:$0xff]
    %v1390 = vld [vmem:[%s1040 + $0x59] sm:$0xf]
    %v1391 = vld [vmem:[%s1040 + $0x61] sm:$0xff]
    %v1392 = vld [vmem:[%s1040 + $0x69] sm:$0xff]
    %v1393 = vld [vmem:[%s1040 + $0x71] sm:$0xff]
    %v1394 = vld [vmem:[%s1040 + $0x79] sm:$0xf]
    %v1395 = vld [vmem:[%s1040 + $0x81] sm:$0xff]
    %v1396 = vld [vmem:[%s1040 + $0x89] sm:$0xff]
    %v1397 = vld [vmem:[%s1040 + $0x91] sm:$0xff]
    %v1398 = vld [vmem:[%s1040 + $0x99] sm:$0xf]
    %v1399 = vld [vmem:[%s1040 + $0xa1] sm:$0xff]
    %v1400 = vld [vmem:[%s1040 + $0xa9] sm:$0xff]
    %v1401 = vld [vmem:[%s1040 + $0xb1] sm:$0xff]
    %v1402 = vld [vmem:[%s1040 + $0xb9] sm:$0xf]
    %v1403 = vld [vmem:[%s1040 + $0xc1] sm:$0xff]
    %v1404 = vld [vmem:[%s1040 + $0xc9] sm:$0xff]
    %v1405 = vld [vmem:[%s1040 + $0xd1] sm:$0xff]
    %v1406 = vld [vmem:[%s1040 + $0xd9] sm:$0xf]
    %v1407 = vld [vmem:[%s1040 + $0xe1] sm:$0xff]
    %v1408 = vld [vmem:[%s1040 + $0xe9] sm:$0xff]
    %v1409 = vld [vmem:[%s1040 + $0xf1] sm:$0xff]
    %v1410 = vld [vmem:[%s1040 + $0xf9] sm:$0xf]
    %v1411 = vld [vmem:[%s1040 + $0x101] sm:$0xff]
    %v1412 = vld [vmem:[%s1040 + $0x109] sm:$0xff]
    %v1413 = vld [vmem:[%s1040 + $0x111] sm:$0xff]
    %v1414 = vld [vmem:[%s1040 + $0x119] sm:$0xf]
    %v1415 = vld [vmem:[%s1040 + $0x121] sm:$0xff]
    %v1416 = vld [vmem:[%s1040 + $0x129] sm:$0xff]
    %v1417 = vld [vmem:[%s1040 + $0x131] sm:$0xff]
    %v1418 = vld [vmem:[%s1040 + $0x139] sm:$0xf]
    %v1419 = vld [vmem:[%s1040 + $0x141] sm:$0xff]
    %v1420 = vld [vmem:[%s1040 + $0x149] sm:$0xff]
    %v1421 = vld [vmem:[%s1040 + $0x151] sm:$0xff]
    %v1422 = vld [vmem:[%s1040 + $0x159] sm:$0xf]
    %v1423 = vld [vmem:[%s1040 + $0x161] sm:$0xff]
    %v1424 = vld [vmem:[%s1040 + $0x169] sm:$0xff]
    %v1425 = vld [vmem:[%s1040 + $0x171] sm:$0xff]
    %v1426 = vld [vmem:[%s1040 + $0x179] sm:$0xf]
    %v1427 = vld [vmem:[%s1040 + $0x181] sm:$0xff]
    %v1428 = vld [vmem:[%s1040 + $0x189] sm:$0xff]
    %v1429 = vld [vmem:[%s1040 + $0x191] sm:$0xff]
    %v1430 = vld [vmem:[%s1040 + $0x199] sm:$0xf]
    %v1431 = vld [vmem:[%s1040 + $0x1a1] sm:$0xff]
    %v1432 = vld [vmem:[%s1040 + $0x1a9] sm:$0xff]
    %v1433 = vld [vmem:[%s1040 + $0x1b1] sm:$0xff]
    %v1434 = vld [vmem:[%s1040 + $0x1b9] sm:$0xf]
    %v1435 = vld [vmem:[%s1040 + $0x1c1] sm:$0xff]
    %v1436 = vld [vmem:[%s1040 + $0x1c9] sm:$0xff]
    %v1437 = vld [vmem:[%s1040 + $0x1d1] sm:$0xff]
    %v1438 = vld [vmem:[%s1040 + $0x1d9] sm:$0xf]
    %v1439 = vld [vmem:[%s1040 + $0x1e1] sm:$0xff]
    %v1440 = vld [vmem:[%s1040 + $0x1e9] sm:$0xff]
    %v1441 = vld [vmem:[%s1040 + $0x1f1] sm:$0xff]
    %v1442 = vld [vmem:[%s1040 + $0x1f9] sm:$0xf]
    %v1443 = vld [vmem:[%s1040 + $0x201] sm:$0xff]
    %v1444 = vld [vmem:[%s1040 + $0x209] sm:$0xff]
    %v1445 = vld [vmem:[%s1040 + $0x211] sm:$0xff]
    %v1446 = vld [vmem:[%s1040 + $0x219] sm:$0xf]
    %v1447 = vld [vmem:[%s1040 + $0x221] sm:$0xff]
    %v1448 = vld [vmem:[%s1040 + $0x229] sm:$0xff]
    %v1449 = vld [vmem:[%s1040 + $0x231] sm:$0xff]
    %v1450 = vld [vmem:[%s1040 + $0x239] sm:$0xf]
    %v1451 = vld [vmem:[%s1040 + $0x241] sm:$0xff]
    %v1452 = vld [vmem:[%s1040 + $0x249] sm:$0xff]
    %v1453 = vld [vmem:[%s1040 + $0x251] sm:$0xff]
    %v1454 = vld [vmem:[%s1040 + $0x259] sm:$0xf]
    %v1455 = vld [vmem:[%s1040 + $0x261] sm:$0xff]
    %v1456 = vld [vmem:[%s1040 + $0x269] sm:$0xff]
    %v1457 = vld [vmem:[%s1040 + $0x271] sm:$0xff]
    %v1458 = vld [vmem:[%s1040 + $0x279] sm:$0xf]
    %v1459 = vld [vmem:[%s1040 + $0x281] sm:$0xff]
    %v1460 = vld [vmem:[%s1040 + $0x289] sm:$0xff]
    %v1461 = vld [vmem:[%s1040 + $0x291] sm:$0xff]
    %v1462 = vld [vmem:[%s1040 + $0x299] sm:$0xf]
    %v1463 = vld [vmem:[%s1040 + $0x2a1] sm:$0xff]
    %v1464 = vld [vmem:[%s1040 + $0x2a9] sm:$0xff]
    %v1465 = vld [vmem:[%s1040 + $0x2b1] sm:$0xff]
    %v1466 = vld [vmem:[%s1040 + $0x2b9] sm:$0xf]
    %v1467 = vld [vmem:[%s1040 + $0x2c1] sm:$0xff]
    %v1468 = vld [vmem:[%s1040 + $0x2c9] sm:$0xff]
    %v1469 = vld [vmem:[%s1040 + $0x2d1] sm:$0xff]
    %v1470 = vld [vmem:[%s1040 + $0x2d9] sm:$0xf]
    %v1471 = vld [vmem:[%s1040 + $0x2e1] sm:$0xff]
    %v1472 = vld [vmem:[%s1040 + $0x2e9] sm:$0xff]
    %v1473 = vld [vmem:[%s1040 + $0x2f1] sm:$0xff]
    %v1474 = vld [vmem:[%s1040 + $0x2f9] sm:$0xf]
    %v1475 = vld [vmem:[%s1040 + $0x301] sm:$0xff]
    %v1476 = vld [vmem:[%s1040 + $0x309] sm:$0xff]
    %v1477 = vld [vmem:[%s1040 + $0x311] sm:$0xff]
    %v1478 = vld [vmem:[%s1040 + $0x319] sm:$0xf]
    %v1479 = vld [vmem:[%s1040 + $0x321] sm:$0xff]
    %v1480 = vld [vmem:[%s1040 + $0x329] sm:$0xff]
    %v1481 = vld [vmem:[%s1040 + $0x331] sm:$0xff]
    %v1482 = vld [vmem:[%s1040 + $0x339] sm:$0xf]
    %v1483 = vld [vmem:[%s1040 + $0x341] sm:$0xff]
    %v1484 = vld [vmem:[%s1040 + $0x349] sm:$0xff]
    %v1485 = vld [vmem:[%s1040 + $0x351] sm:$0xff]
    %v1486 = vld [vmem:[%s1040 + $0x359] sm:$0xf]
    %v1487 = vld [vmem:[%s1040 + $0x361] sm:$0xff]
    %v1488 = vld [vmem:[%s1040 + $0x369] sm:$0xff]
    %v1489 = vld [vmem:[%s1040 + $0x371] sm:$0xff]
    %v1490 = vld [vmem:[%s1040 + $0x379] sm:$0xf]
    %v1491 = vstv %s1378
    %v1492 = vmul.f32 %v1491, %v1379
    %v1493 = vmul.f32 %v1491, %v1380
    %v1494 = vmul.f32 %v1491, %v1381
    %v1495 = vmul.f32 %v1491, %v1382
    %v1496 = vmul.f32 %v1491, %v1383
    %v1497 = vmul.f32 %v1491, %v1384
    %v1498 = vmul.f32 %v1491, %v1385
    %v1499 = vmul.f32 %v1491, %v1386
    %v1500 = vmul.f32 %v1491, %v1387
    %v1501 = vmul.f32 %v1491, %v1388
    %v1502 = vmul.f32 %v1491, %v1389
    %v1503 = vmul.f32 %v1491, %v1390
    %v1504 = vmul.f32 %v1491, %v1391
    %v1505 = vmul.f32 %v1491, %v1392
    %v1506 = vmul.f32 %v1491, %v1393
    %v1507 = vmul.f32 %v1491, %v1394
    %v1508 = vmul.f32 %v1491, %v1395
    %v1509 = vmul.f32 %v1491, %v1396
    %v1510 = vmul.f32 %v1491, %v1397
    %v1511 = vmul.f32 %v1491, %v1398
    %v1512 = vmul.f32 %v1491, %v1399
    %v1513 = vmul.f32 %v1491, %v1400
    %v1514 = vmul.f32 %v1491, %v1401
    %v1515 = vmul.f32 %v1491, %v1402
    %v1516 = vmul.f32 %v1491, %v1403
    %v1517 = vmul.f32 %v1491, %v1404
    %v1518 = vmul.f32 %v1491, %v1405
    %v1519 = vmul.f32 %v1491, %v1406
    %v1520 = vmul.f32 %v1491, %v1407
    %v1521 = vmul.f32 %v1491, %v1408
    %v1522 = vmul.f32 %v1491, %v1409
    %v1523 = vmul.f32 %v1491, %v1410
    %v1524 = vmul.f32 %v1491, %v1411
    %v1525 = vmul.f32 %v1491, %v1412
    %v1526 = vmul.f32 %v1491, %v1413
    %v1527 = vmul.f32 %v1491, %v1414
    %v1528 = vmul.f32 %v1491, %v1415
    %v1529 = vmul.f32 %v1491, %v1416
    %v1530 = vmul.f32 %v1491, %v1417
    %v1531 = vmul.f32 %v1491, %v1418
    %v1532 = vmul.f32 %v1491, %v1419
    %v1533 = vmul.f32 %v1491, %v1420
    %v1534 = vmul.f32 %v1491, %v1421
    %v1535 = vmul.f32 %v1491, %v1422
    %v1536 = vmul.f32 %v1491, %v1423
    %v1537 = vmul.f32 %v1491, %v1424
    %v1538 = vmul.f32 %v1491, %v1425
    %v1539 = vmul.f32 %v1491, %v1426
    %v1540 = vmul.f32 %v1491, %v1427
    %v1541 = vmul.f32 %v1491, %v1428
    %v1542 = vmul.f32 %v1491, %v1429
    %v1543 = vmul.f32 %v1491, %v1430
    %v1544 = vmul.f32 %v1491, %v1431
    %v1545 = vmul.f32 %v1491, %v1432
    %v1546 = vmul.f32 %v1491, %v1433
    %v1547 = vmul.f32 %v1491, %v1434
    %v1548 = vmul.f32 %v1491, %v1435
    %v1549 = vmul.f32 %v1491, %v1436
    %v1550 = vmul.f32 %v1491, %v1437
    %v1551 = vmul.f32 %v1491, %v1438
    %v1552 = vmul.f32 %v1491, %v1439
    %v1553 = vmul.f32 %v1491, %v1440
    %v1554 = vmul.f32 %v1491, %v1441
    %v1555 = vmul.f32 %v1491, %v1442
    %v1556 = vmul.f32 %v1491, %v1443
    %v1557 = vmul.f32 %v1491, %v1444
    %v1558 = vmul.f32 %v1491, %v1445
    %v1559 = vmul.f32 %v1491, %v1446
    %v1560 = vmul.f32 %v1491, %v1447
    %v1561 = vmul.f32 %v1491, %v1448
    %v1562 = vmul.f32 %v1491, %v1449
    %v1563 = vmul.f32 %v1491, %v1450
    %v1564 = vmul.f32 %v1491, %v1451
    %v1565 = vmul.f32 %v1491, %v1452
    %v1566 = vmul.f32 %v1491, %v1453
    %v1567 = vmul.f32 %v1491, %v1454
    %v1568 = vmul.f32 %v1491, %v1455
    %v1569 = vmul.f32 %v1491, %v1456
    %v1570 = vmul.f32 %v1491, %v1457
    %v1571 = vmul.f32 %v1491, %v1458
    %v1572 = vmul.f32 %v1491, %v1459
    %v1573 = vmul.f32 %v1491, %v1460
    %v1574 = vmul.f32 %v1491, %v1461
    %v1575 = vmul.f32 %v1491, %v1462
    %v1576 = vmul.f32 %v1491, %v1463
    %v1577 = vmul.f32 %v1491, %v1464
    %v1578 = vmul.f32 %v1491, %v1465
    %v1579 = vmul.f32 %v1491, %v1466
    %v1580 = vmul.f32 %v1491, %v1467
    %v1581 = vmul.f32 %v1491, %v1468
    %v1582 = vmul.f32 %v1491, %v1469
    %v1583 = vmul.f32 %v1491, %v1470
    %v1584 = vmul.f32 %v1491, %v1471
    %v1585 = vmul.f32 %v1491, %v1472
    %v1586 = vmul.f32 %v1491, %v1473
    %v1587 = vmul.f32 %v1491, %v1474
    %v1588 = vmul.f32 %v1491, %v1475
    %v1589 = vmul.f32 %v1491, %v1476
    %v1590 = vmul.f32 %v1491, %v1477
    %v1591 = vmul.f32 %v1491, %v1478
    %v1592 = vmul.f32 %v1491, %v1479
    %v1593 = vmul.f32 %v1491, %v1480
    %v1594 = vmul.f32 %v1491, %v1481
    %v1595 = vmul.f32 %v1491, %v1482
    %v1596 = vmul.f32 %v1491, %v1483
    %v1597 = vmul.f32 %v1491, %v1484
    %v1598 = vmul.f32 %v1491, %v1485
    %v1599 = vmul.f32 %v1491, %v1486
    %v1600 = vmul.f32 %v1491, %v1487
    %v1601 = vmul.f32 %v1491, %v1488
    %v1602 = vmul.f32 %v1491, %v1489
    %v1603 = vmul.f32 %v1491, %v1490
    %v1604 = vadd.f32 %v1266, %v1492
    %v1605 = vadd.f32 %v1267, %v1493
    %v1606 = vadd.f32 %v1268, %v1494
    %v1607 = vadd.f32 %v1269, %v1495
    %v1608 = vadd.f32 %v1270, %v1496
    %v1609 = vadd.f32 %v1271, %v1497
    %v1610 = vadd.f32 %v1272, %v1498
    %v1611 = vadd.f32 %v1273, %v1499
    %v1612 = vadd.f32 %v1274, %v1500
    %v1613 = vadd.f32 %v1275, %v1501
    %v1614 = vadd.f32 %v1276, %v1502
    %v1615 = vadd.f32 %v1277, %v1503
    %v1616 = vadd.f32 %v1278, %v1504
    %v1617 = vadd.f32 %v1279, %v1505
    %v1618 = vadd.f32 %v1280, %v1506
    %v1619 = vadd.f32 %v1281, %v1507
    %v1620 = vadd.f32 %v1282, %v1508
    %v1621 = vadd.f32 %v1283, %v1509
    %v1622 = vadd.f32 %v1284, %v1510
    %v1623 = vadd.f32 %v1285, %v1511
    %v1624 = vadd.f32 %v1286, %v1512
    %v1625 = vadd.f32 %v1287, %v1513
    %v1626 = vadd.f32 %v1288, %v1514
    %v1627 = vadd.f32 %v1289, %v1515
    %v1628 = vadd.f32 %v1290, %v1516
    %v1629 = vadd.f32 %v1291, %v1517
    %v1630 = vadd.f32 %v1292, %v1518
    %v1631 = vadd.f32 %v1293, %v1519
    %v1632 = vadd.f32 %v1294, %v1520
    %v1633 = vadd.f32 %v1295, %v1521
    %v1634 = vadd.f32 %v1296, %v1522
    %v1635 = vadd.f32 %v1297, %v1523
    %v1636 = vadd.f32 %v1298, %v1524
    %v1637 = vadd.f32 %v1299, %v1525
    %v1638 = vadd.f32 %v1300, %v1526
    %v1639 = vadd.f32 %v1301, %v1527
    %v1640 = vadd.f32 %v1302, %v1528
    %v1641 = vadd.f32 %v1303, %v1529
    %v1642 = vadd.f32 %v1304, %v1530
    %v1643 = vadd.f32 %v1305, %v1531
    %v1644 = vadd.f32 %v1306, %v1532
    %v1645 = vadd.f32 %v1307, %v1533
    %v1646 = vadd.f32 %v1308, %v1534
    %v1647 = vadd.f32 %v1309, %v1535
    %v1648 = vadd.f32 %v1310, %v1536
    %v1649 = vadd.f32 %v1311, %v1537
    %v1650 = vadd.f32 %v1312, %v1538
    %v1651 = vadd.f32 %v1313, %v1539
    %v1652 = vadd.f32 %v1314, %v1540
    %v1653 = vadd.f32 %v1315, %v1541
    %v1654 = vadd.f32 %v1316, %v1542
    %v1655 = vadd.f32 %v1317, %v1543
    %v1656 = vadd.f32 %v1318, %v1544
    %v1657 = vadd.f32 %v1319, %v1545
    %v1658 = vadd.f32 %v1320, %v1546
    %v1659 = vadd.f32 %v1321, %v1547
    %v1660 = vadd.f32 %v1322, %v1548
    %v1661 = vadd.f32 %v1323, %v1549
    %v1662 = vadd.f32 %v1324, %v1550
    %v1663 = vadd.f32 %v1325, %v1551
    %v1664 = vadd.f32 %v1326, %v1552
    %v1665 = vadd.f32 %v1327, %v1553
    %v1666 = vadd.f32 %v1328, %v1554
    %v1667 = vadd.f32 %v1329, %v1555
    %v1668 = vadd.f32 %v1330, %v1556
    %v1669 = vadd.f32 %v1331, %v1557
    %v1670 = vadd.f32 %v1332, %v1558
    %v1671 = vadd.f32 %v1333, %v1559
    %v1672 = vadd.f32 %v1334, %v1560
    %v1673 = vadd.f32 %v1335, %v1561
    %v1674 = vadd.f32 %v1336, %v1562
    %v1675 = vadd.f32 %v1337, %v1563
    %v1676 = vadd.f32 %v1338, %v1564
    %v1677 = vadd.f32 %v1339, %v1565
    %v1678 = vadd.f32 %v1340, %v1566
    %v1679 = vadd.f32 %v1341, %v1567
    %v1680 = vadd.f32 %v1342, %v1568
    %v1681 = vadd.f32 %v1343, %v1569
    %v1682 = vadd.f32 %v1344, %v1570
    %v1683 = vadd.f32 %v1345, %v1571
    %v1684 = vadd.f32 %v1346, %v1572
    %v1685 = vadd.f32 %v1347, %v1573
    %v1686 = vadd.f32 %v1348, %v1574
    %v1687 = vadd.f32 %v1349, %v1575
    %v1688 = vadd.f32 %v1350, %v1576
    %v1689 = vadd.f32 %v1351, %v1577
    %v1690 = vadd.f32 %v1352, %v1578
    %v1691 = vadd.f32 %v1353, %v1579
    %v1692 = vadd.f32 %v1354, %v1580
    %v1693 = vadd.f32 %v1355, %v1581
    %v1694 = vadd.f32 %v1356, %v1582
    %v1695 = vadd.f32 %v1357, %v1583
    %v1696 = vadd.f32 %v1358, %v1584
    %v1697 = vadd.f32 %v1359, %v1585
    %v1698 = vadd.f32 %v1360, %v1586
    %v1699 = vadd.f32 %v1361, %v1587
    %v1700 = vadd.f32 %v1362, %v1588
    %v1701 = vadd.f32 %v1363, %v1589
    %v1702 = vadd.f32 %v1364, %v1590
    %v1703 = vadd.f32 %v1365, %v1591
    %v1704 = vadd.f32 %v1366, %v1592
    %v1705 = vadd.f32 %v1367, %v1593
    %v1706 = vadd.f32 %v1368, %v1594
    %v1707 = vadd.f32 %v1369, %v1595
    %v1708 = vadd.f32 %v1370, %v1596
    %v1709 = vadd.f32 %v1371, %v1597
    %v1710 = vadd.f32 %v1372, %v1598
    %v1711 = vadd.f32 %v1373, %v1599
    %v1712 = vadd.f32 %v1374, %v1600
    %v1713 = vadd.f32 %v1375, %v1601
    %v1714 = vadd.f32 %v1376, %v1602
    %v1715 = vadd.f32 %v1377, %v1603
    %s1716 = sld [smem:[#allocation2 + $0x82]]
    %v1717 = vld [vmem:[%s1040] sm:$0xff]
    %v1718 = vld [vmem:[%s1040 + $0x8] sm:$0xff]
    %v1719 = vld [vmem:[%s1040 + $0x10] sm:$0xff]
    %v1720 = vld [vmem:[%s1040 + $0x18] sm:$0xf]
    %v1721 = vld [vmem:[%s1040 + $0x20] sm:$0xff]
    %v1722 = vld [vmem:[%s1040 + $0x28] sm:$0xff]
    %v1723 = vld [vmem:[%s1040 + $0x30] sm:$0xff]
    %v1724 = vld [vmem:[%s1040 + $0x38] sm:$0xf]
    %v1725 = vld [vmem:[%s1040 + $0x40] sm:$0xff]
    %v1726 = vld [vmem:[%s1040 + $0x48] sm:$0xff]
    %v1727 = vld [vmem:[%s1040 + $0x50] sm:$0xff]
    %v1728 = vld [vmem:[%s1040 + $0x58] sm:$0xf]
    %v1729 = vld [vmem:[%s1040 + $0x60] sm:$0xff]
    %v1730 = vld [vmem:[%s1040 + $0x68] sm:$0xff]
    %v1731 = vld [vmem:[%s1040 + $0x70] sm:$0xff]
    %v1732 = vld [vmem:[%s1040 + $0x78] sm:$0xf]
    %v1733 = vld [vmem:[%s1040 + $0x80] sm:$0xff]
    %v1734 = vld [vmem:[%s1040 + $0x88] sm:$0xff]
    %v1735 = vld [vmem:[%s1040 + $0x90] sm:$0xff]
    %v1736 = vld [vmem:[%s1040 + $0x98] sm:$0xf]
    %v1737 = vld [vmem:[%s1040 + $0xa0] sm:$0xff]
    %v1738 = vld [vmem:[%s1040 + $0xa8] sm:$0xff]
    %v1739 = vld [vmem:[%s1040 + $0xb0] sm:$0xff]
    %v1740 = vld [vmem:[%s1040 + $0xb8] sm:$0xf]
    %v1741 = vld [vmem:[%s1040 + $0xc0] sm:$0xff]
    %v1742 = vld [vmem:[%s1040 + $0xc8] sm:$0xff]
    %v1743 = vld [vmem:[%s1040 + $0xd0] sm:$0xff]
    %v1744 = vld [vmem:[%s1040 + $0xd8] sm:$0xf]
    %v1745 = vld [vmem:[%s1040 + $0xe0] sm:$0xff]
    %v1746 = vld [vmem:[%s1040 + $0xe8] sm:$0xff]
    %v1747 = vld [vmem:[%s1040 + $0xf0] sm:$0xff]
    %v1748 = vld [vmem:[%s1040 + $0xf8] sm:$0xf]
    %v1749 = vld [vmem:[%s1040 + $0x100] sm:$0xff]
    %v1750 = vld [vmem:[%s1040 + $0x108] sm:$0xff]
    %v1751 = vld [vmem:[%s1040 + $0x110] sm:$0xff]
    %v1752 = vld [vmem:[%s1040 + $0x118] sm:$0xf]
    %v1753 = vld [vmem:[%s1040 + $0x120] sm:$0xff]
    %v1754 = vld [vmem:[%s1040 + $0x128] sm:$0xff]
    %v1755 = vld [vmem:[%s1040 + $0x130] sm:$0xff]
    %v1756 = vld [vmem:[%s1040 + $0x138] sm:$0xf]
    %v1757 = vld [vmem:[%s1040 + $0x140] sm:$0xff]
    %v1758 = vld [vmem:[%s1040 + $0x148] sm:$0xff]
    %v1759 = vld [vmem:[%s1040 + $0x150] sm:$0xff]
    %v1760 = vld [vmem:[%s1040 + $0x158] sm:$0xf]
    %v1761 = vld [vmem:[%s1040 + $0x160] sm:$0xff]
    %v1762 = vld [vmem:[%s1040 + $0x168] sm:$0xff]
    %v1763 = vld [vmem:[%s1040 + $0x170] sm:$0xff]
    %v1764 = vld [vmem:[%s1040 + $0x178] sm:$0xf]
    %v1765 = vld [vmem:[%s1040 + $0x180] sm:$0xff]
    %v1766 = vld [vmem:[%s1040 + $0x188] sm:$0xff]
    %v1767 = vld [vmem:[%s1040 + $0x190] sm:$0xff]
    %v1768 = vld [vmem:[%s1040 + $0x198] sm:$0xf]
    %v1769 = vld [vmem:[%s1040 + $0x1a0] sm:$0xff]
    %v1770 = vld [vmem:[%s1040 + $0x1a8] sm:$0xff]
    %v1771 = vld [vmem:[%s1040 + $0x1b0] sm:$0xff]
    %v1772 = vld [vmem:[%s1040 + $0x1b8] sm:$0xf]
    %v1773 = vld [vmem:[%s1040 + $0x1c0] sm:$0xff]
    %v1774 = vld [vmem:[%s1040 + $0x1c8] sm:$0xff]
    %v1775 = vld [vmem:[%s1040 + $0x1d0] sm:$0xff]
    %v1776 = vld [vmem:[%s1040 + $0x1d8] sm:$0xf]
    %v1777 = vld [vmem:[%s1040 + $0x1e0] sm:$0xff]
    %v1778 = vld [vmem:[%s1040 + $0x1e8] sm:$0xff]
    %v1779 = vld [vmem:[%s1040 + $0x1f0] sm:$0xff]
    %v1780 = vld [vmem:[%s1040 + $0x1f8] sm:$0xf]
    %v1781 = vld [vmem:[%s1040 + $0x200] sm:$0xff]
    %v1782 = vld [vmem:[%s1040 + $0x208] sm:$0xff]
    %v1783 = vld [vmem:[%s1040 + $0x210] sm:$0xff]
    %v1784 = vld [vmem:[%s1040 + $0x218] sm:$0xf]
    %v1785 = vld [vmem:[%s1040 + $0x220] sm:$0xff]
    %v1786 = vld [vmem:[%s1040 + $0x228] sm:$0xff]
    %v1787 = vld [vmem:[%s1040 + $0x230] sm:$0xff]
    %v1788 = vld [vmem:[%s1040 + $0x238] sm:$0xf]
    %v1789 = vld [vmem:[%s1040 + $0x240] sm:$0xff]
    %v1790 = vld [vmem:[%s1040 + $0x248] sm:$0xff]
    %v1791 = vld [vmem:[%s1040 + $0x250] sm:$0xff]
    %v1792 = vld [vmem:[%s1040 + $0x258] sm:$0xf]
    %v1793 = vld [vmem:[%s1040 + $0x260] sm:$0xff]
    %v1794 = vld [vmem:[%s1040 + $0x268] sm:$0xff]
    %v1795 = vld [vmem:[%s1040 + $0x270] sm:$0xff]
    %v1796 = vld [vmem:[%s1040 + $0x278] sm:$0xf]
    %v1797 = vld [vmem:[%s1040 + $0x280] sm:$0xff]
    %v1798 = vld [vmem:[%s1040 + $0x288] sm:$0xff]
    %v1799 = vld [vmem:[%s1040 + $0x290] sm:$0xff]
    %v1800 = vld [vmem:[%s1040 + $0x298] sm:$0xf]
    %v1801 = vld [vmem:[%s1040 + $0x2a0] sm:$0xff]
    %v1802 = vld [vmem:[%s1040 + $0x2a8] sm:$0xff]
    %v1803 = vld [vmem:[%s1040 + $0x2b0] sm:$0xff]
    %v1804 = vld [vmem:[%s1040 + $0x2b8] sm:$0xf]
    %v1805 = vld [vmem:[%s1040 + $0x2c0] sm:$0xff]
    %v1806 = vld [vmem:[%s1040 + $0x2c8] sm:$0xff]
    %v1807 = vld [vmem:[%s1040 + $0x2d0] sm:$0xff]
    %v1808 = vld [vmem:[%s1040 + $0x2d8] sm:$0xf]
    %v1809 = vld [vmem:[%s1040 + $0x2e0] sm:$0xff]
    %v1810 = vld [vmem:[%s1040 + $0x2e8] sm:$0xff]
    %v1811 = vld [vmem:[%s1040 + $0x2f0] sm:$0xff]
    %v1812 = vld [vmem:[%s1040 + $0x2f8] sm:$0xf]
    %v1813 = vld [vmem:[%s1040 + $0x300] sm:$0xff]
    %v1814 = vld [vmem:[%s1040 + $0x308] sm:$0xff]
    %v1815 = vld [vmem:[%s1040 + $0x310] sm:$0xff]
    %v1816 = vld [vmem:[%s1040 + $0x318] sm:$0xf]
    %v1817 = vld [vmem:[%s1040 + $0x320] sm:$0xff]
    %v1818 = vld [vmem:[%s1040 + $0x328] sm:$0xff]
    %v1819 = vld [vmem:[%s1040 + $0x330] sm:$0xff]
    %v1820 = vld [vmem:[%s1040 + $0x338] sm:$0xf]
    %v1821 = vld [vmem:[%s1040 + $0x340] sm:$0xff]
    %v1822 = vld [vmem:[%s1040 + $0x348] sm:$0xff]
    %v1823 = vld [vmem:[%s1040 + $0x350] sm:$0xff]
    %v1824 = vld [vmem:[%s1040 + $0x358] sm:$0xf]
    %v1825 = vld [vmem:[%s1040 + $0x360] sm:$0xff]
    %v1826 = vld [vmem:[%s1040 + $0x368] sm:$0xff]
    %v1827 = vld [vmem:[%s1040 + $0x370] sm:$0xff]
    %v1828 = vld [vmem:[%s1040 + $0x378] sm:$0xf]
    %v1829 = vstv %s1716
    %v1830 = vmul.f32 %v1829, %v1717
    %v1831 = vmul.f32 %v1829, %v1718
    %v1832 = vmul.f32 %v1829, %v1719
    %v1833 = vmul.f32 %v1829, %v1720
    %v1834 = vmul.f32 %v1829, %v1721
    %v1835 = vmul.f32 %v1829, %v1722
    %v1836 = vmul.f32 %v1829, %v1723
    %v1837 = vmul.f32 %v1829, %v1724
    %v1838 = vmul.f32 %v1829, %v1725
    %v1839 = vmul.f32 %v1829, %v1726
    %v1840 = vmul.f32 %v1829, %v1727
    %v1841 = vmul.f32 %v1829, %v1728
    %v1842 = vmul.f32 %v1829, %v1729
    %v1843 = vmul.f32 %v1829, %v1730
    %v1844 = vmul.f32 %v1829, %v1731
    %v1845 = vmul.f32 %v1829, %v1732
    %v1846 = vmul.f32 %v1829, %v1733
    %v1847 = vmul.f32 %v1829, %v1734
    %v1848 = vmul.f32 %v1829, %v1735
    %v1849 = vmul.f32 %v1829, %v1736
    %v1850 = vmul.f32 %v1829, %v1737
    %v1851 = vmul.f32 %v1829, %v1738
    %v1852 = vmul.f32 %v1829, %v1739
    %v1853 = vmul.f32 %v1829, %v1740
    %v1854 = vmul.f32 %v1829, %v1741
    %v1855 = vmul.f32 %v1829, %v1742
    %v1856 = vmul.f32 %v1829, %v1743
    %v1857 = vmul.f32 %v1829, %v1744
    %v1858 = vmul.f32 %v1829, %v1745
    %v1859 = vmul.f32 %v1829, %v1746
    %v1860 = vmul.f32 %v1829, %v1747
    %v1861 = vmul.f32 %v1829, %v1748
    %v1862 = vmul.f32 %v1829, %v1749
    %v1863 = vmul.f32 %v1829, %v1750
    %v1864 = vmul.f32 %v1829, %v1751
    %v1865 = vmul.f32 %v1829, %v1752
    %v1866 = vmul.f32 %v1829, %v1753
    %v1867 = vmul.f32 %v1829, %v1754
    %v1868 = vmul.f32 %v1829, %v1755
    %v1869 = vmul.f32 %v1829, %v1756
    %v1870 = vmul.f32 %v1829, %v1757
    %v1871 = vmul.f32 %v1829, %v1758
    %v1872 = vmul.f32 %v1829, %v1759
    %v1873 = vmul.f32 %v1829, %v1760
    %v1874 = vmul.f32 %v1829, %v1761
    %v1875 = vmul.f32 %v1829, %v1762
    %v1876 = vmul.f32 %v1829, %v1763
    %v1877 = vmul.f32 %v1829, %v1764
    %v1878 = vmul.f32 %v1829, %v1765
    %v1879 = vmul.f32 %v1829, %v1766
    %v1880 = vmul.f32 %v1829, %v1767
    %v1881 = vmul.f32 %v1829, %v1768
    %v1882 = vmul.f32 %v1829, %v1769
    %v1883 = vmul.f32 %v1829, %v1770
    %v1884 = vmul.f32 %v1829, %v1771
    %v1885 = vmul.f32 %v1829, %v1772
    %v1886 = vmul.f32 %v1829, %v1773
    %v1887 = vmul.f32 %v1829, %v1774
    %v1888 = vmul.f32 %v1829, %v1775
    %v1889 = vmul.f32 %v1829, %v1776
    %v1890 = vmul.f32 %v1829, %v1777
    %v1891 = vmul.f32 %v1829, %v1778
    %v1892 = vmul.f32 %v1829, %v1779
    %v1893 = vmul.f32 %v1829, %v1780
    %v1894 = vmul.f32 %v1829, %v1781
    %v1895 = vmul.f32 %v1829, %v1782
    %v1896 = vmul.f32 %v1829, %v1783
    %v1897 = vmul.f32 %v1829, %v1784
    %v1898 = vmul.f32 %v1829, %v1785
    %v1899 = vmul.f32 %v1829, %v1786
    %v1900 = vmul.f32 %v1829, %v1787
    %v1901 = vmul.f32 %v1829, %v1788
    %v1902 = vmul.f32 %v1829, %v1789
    %v1903 = vmul.f32 %v1829, %v1790
    %v1904 = vmul.f32 %v1829, %v1791
    %v1905 = vmul.f32 %v1829, %v1792
    %v1906 = vmul.f32 %v1829, %v1793
    %v1907 = vmul.f32 %v1829, %v1794
    %v1908 = vmul.f32 %v1829, %v1795
    %v1909 = vmul.f32 %v1829, %v1796
    %v1910 = vmul.f32 %v1829, %v1797
    %v1911 = vmul.f32 %v1829, %v1798
    %v1912 = vmul.f32 %v1829, %v1799
    %v1913 = vmul.f32 %v1829, %v1800
    %v1914 = vmul.f32 %v1829, %v1801
    %v1915 = vmul.f32 %v1829, %v1802
    %v1916 = vmul.f32 %v1829, %v1803
    %v1917 = vmul.f32 %v1829, %v1804
    %v1918 = vmul.f32 %v1829, %v1805
    %v1919 = vmul.f32 %v1829, %v1806
    %v1920 = vmul.f32 %v1829, %v1807
    %v1921 = vmul.f32 %v1829, %v1808
    %v1922 = vmul.f32 %v1829, %v1809
    %v1923 = vmul.f32 %v1829, %v1810
    %v1924 = vmul.f32 %v1829, %v1811
    %v1925 = vmul.f32 %v1829, %v1812
    %v1926 = vmul.f32 %v1829, %v1813
    %v1927 = vmul.f32 %v1829, %v1814
    %v1928 = vmul.f32 %v1829, %v1815
    %v1929 = vmul.f32 %v1829, %v1816
    %v1930 = vmul.f32 %v1829, %v1817
    %v1931 = vmul.f32 %v1829, %v1818
    %v1932 = vmul.f32 %v1829, %v1819
    %v1933 = vmul.f32 %v1829, %v1820
    %v1934 = vmul.f32 %v1829, %v1821
    %v1935 = vmul.f32 %v1829, %v1822
    %v1936 = vmul.f32 %v1829, %v1823
    %v1937 = vmul.f32 %v1829, %v1824
    %v1938 = vmul.f32 %v1829, %v1825
    %v1939 = vmul.f32 %v1829, %v1826
    %v1940 = vmul.f32 %v1829, %v1827
    %v1941 = vmul.f32 %v1829, %v1828
    %v1942 = vadd.f32 %v1604, %v1830
    %v1943 = vadd.f32 %v1605, %v1831
    %v1944 = vadd.f32 %v1606, %v1832
    %v1945 = vadd.f32 %v1607, %v1833
    %v1946 = vadd.f32 %v1608, %v1834
    %v1947 = vadd.f32 %v1609, %v1835
    %v1948 = vadd.f32 %v1610, %v1836
    %v1949 = vadd.f32 %v1611, %v1837
    %v1950 = vadd.f32 %v1612, %v1838
    %v1951 = vadd.f32 %v1613, %v1839
    %v1952 = vadd.f32 %v1614, %v1840
    %v1953 = vadd.f32 %v1615, %v1841
    %v1954 = vadd.f32 %v1616, %v1842
    %v1955 = vadd.f32 %v1617, %v1843
    %v1956 = vadd.f32 %v1618, %v1844
    %v1957 = vadd.f32 %v1619, %v1845
    %v1958 = vadd.f32 %v1620, %v1846
    %v1959 = vadd.f32 %v1621, %v1847
    %v1960 = vadd.f32 %v1622, %v1848
    %v1961 = vadd.f32 %v1623, %v1849
    %v1962 = vadd.f32 %v1624, %v1850
    %v1963 = vadd.f32 %v1625, %v1851
    %v1964 = vadd.f32 %v1626, %v1852
    %v1965 = vadd.f32 %v1627, %v1853
    %v1966 = vadd.f32 %v1628, %v1854
    %v1967 = vadd.f32 %v1629, %v1855
    %v1968 = vadd.f32 %v1630, %v1856
    %v1969 = vadd.f32 %v1631, %v1857
    %v1970 = vadd.f32 %v1632, %v1858
    %v1971 = vadd.f32 %v1633, %v1859
    %v1972 = vadd.f32 %v1634, %v1860
    %v1973 = vadd.f32 %v1635, %v1861
    %v1974 = vadd.f32 %v1636, %v1862
    %v1975 = vadd.f32 %v1637, %v1863
    %v1976 = vadd.f32 %v1638, %v1864
    %v1977 = vadd.f32 %v1639, %v1865
    %v1978 = vadd.f32 %v1640, %v1866
    %v1979 = vadd.f32 %v1641, %v1867
    %v1980 = vadd.f32 %v1642, %v1868
    %v1981 = vadd.f32 %v1643, %v1869
    %v1982 = vadd.f32 %v1644, %v1870
    %v1983 = vadd.f32 %v1645, %v1871
    %v1984 = vadd.f32 %v1646, %v1872
    %v1985 = vadd.f32 %v1647, %v1873
    %v1986 = vadd.f32 %v1648, %v1874
    %v1987 = vadd.f32 %v1649, %v1875
    %v1988 = vadd.f32 %v1650, %v1876
    %v1989 = vadd.f32 %v1651, %v1877
    %v1990 = vadd.f32 %v1652, %v1878
    %v1991 = vadd.f32 %v1653, %v1879
    %v1992 = vadd.f32 %v1654, %v1880
    %v1993 = vadd.f32 %v1655, %v1881
    %v1994 = vadd.f32 %v1656, %v1882
    %v1995 = vadd.f32 %v1657, %v1883
    %v1996 = vadd.f32 %v1658, %v1884
    %v1997 = vadd.f32 %v1659, %v1885
    %v1998 = vadd.f32 %v1660, %v1886
    %v1999 = vadd.f32 %v1661, %v1887
    %v2000 = vadd.f32 %v1662, %v1888
    %v2001 = vadd.f32 %v1663, %v1889
    %v2002 = vadd.f32 %v1664, %v1890
    %v2003 = vadd.f32 %v1665, %v1891
    %v2004 = vadd.f32 %v1666, %v1892
    %v2005 = vadd.f32 %v1667, %v1893
    %v2006 = vadd.f32 %v1668, %v1894
    %v2007 = vadd.f32 %v1669, %v1895
    %v2008 = vadd.f32 %v1670, %v1896
    %v2009 = vadd.f32 %v1671, %v1897
    %v2010 = vadd.f32 %v1672, %v1898
    %v2011 = vadd.f32 %v1673, %v1899
    %v2012 = vadd.f32 %v1674, %v1900
    %v2013 = vadd.f32 %v1675, %v1901
    %v2014 = vadd.f32 %v1676, %v1902
    %v2015 = vadd.f32 %v1677, %v1903
    %v2016 = vadd.f32 %v1678, %v1904
    %v2017 = vadd.f32 %v1679, %v1905
    %v2018 = vadd.f32 %v1680, %v1906
    %v2019 = vadd.f32 %v1681, %v1907
    %v2020 = vadd.f32 %v1682, %v1908
    %v2021 = vadd.f32 %v1683, %v1909
    %v2022 = vadd.f32 %v1684, %v1910
    %v2023 = vadd.f32 %v1685, %v1911
    %v2024 = vadd.f32 %v1686, %v1912
    %v2025 = vadd.f32 %v1687, %v1913
    %v2026 = vadd.f32 %v1688, %v1914
    %v2027 = vadd.f32 %v1689, %v1915
    %v2028 = vadd.f32 %v1690, %v1916
    %v2029 = vadd.f32 %v1691, %v1917
    %v2030 = vadd.f32 %v1692, %v1918
    %v2031 = vadd.f32 %v1693, %v1919
    %v2032 = vadd.f32 %v1694, %v1920
    %v2033 = vadd.f32 %v1695, %v1921
    %v2034 = vadd.f32 %v1696, %v1922
    %v2035 = vadd.f32 %v1697, %v1923
    %v2036 = vadd.f32 %v1698, %v1924
    %v2037 = vadd.f32 %v1699, %v1925
    %v2038 = vadd.f32 %v1700, %v1926
    %v2039 = vadd.f32 %v1701, %v1927
    %v2040 = vadd.f32 %v1702, %v1928
    %v2041 = vadd.f32 %v1703, %v1929
    %v2042 = vadd.f32 %v1704, %v1930
    %v2043 = vadd.f32 %v1705, %v1931
    %v2044 = vadd.f32 %v1706, %v1932
    %v2045 = vadd.f32 %v1707, %v1933
    %v2046 = vadd.f32 %v1708, %v1934
    %v2047 = vadd.f32 %v1709, %v1935
    %v2048 = vadd.f32 %v1710, %v1936
    %v2049 = vadd.f32 %v1711, %v1937
    %v2050 = vadd.f32 %v1712, %v1938
    %v2051 = vadd.f32 %v1713, %v1939
    %v2052 = vadd.f32 %v1714, %v1940
    %v2053 = vadd.f32 %v1715, %v1941
    %s2054 = sld [smem:[#allocation2 + $0x100]]
    %v2055 = vld [vmem:[%s0 + $0x2] sm:$0xff]
    %v2056 = vld [vmem:[%s0 + $0xa] sm:$0xff]
    %v2057 = vld [vmem:[%s0 + $0x12] sm:$0xff]
    %v2058 = vld [vmem:[%s0 + $0x1a] sm:$0xf]
    %v2059 = vld [vmem:[%s0 + $0x22] sm:$0xff]
    %v2060 = vld [vmem:[%s0 + $0x2a] sm:$0xff]
    %v2061 = vld [vmem:[%s0 + $0x32] sm:$0xff]
    %v2062 = vld [vmem:[%s0 + $0x3a] sm:$0xf]
    %v2063 = vld [vmem:[%s0 + $0x42] sm:$0xff]
    %v2064 = vld [vmem:[%s0 + $0x4a] sm:$0xff]
    %v2065 = vld [vmem:[%s0 + $0x52] sm:$0xff]
    %v2066 = vld [vmem:[%s0 + $0x5a] sm:$0xf]
    %v2067 = vld [vmem:[%s0 + $0x62] sm:$0xff]
    %v2068 = vld [vmem:[%s0 + $0x6a] sm:$0xff]
    %v2069 = vld [vmem:[%s0 + $0x72] sm:$0xff]
    %v2070 = vld [vmem:[%s0 + $0x7a] sm:$0xf]
    %v2071 = vld [vmem:[%s0 + $0x82] sm:$0xff]
    %v2072 = vld [vmem:[%s0 + $0x8a] sm:$0xff]
    %v2073 = vld [vmem:[%s0 + $0x92] sm:$0xff]
    %v2074 = vld [vmem:[%s0 + $0x9a] sm:$0xf]
    %v2075 = vld [vmem:[%s0 + $0xa2] sm:$0xff]
    %v2076 = vld [vmem:[%s0 + $0xaa] sm:$0xff]
    %v2077 = vld [vmem:[%s0 + $0xb2] sm:$0xff]
    %v2078 = vld [vmem:[%s0 + $0xba] sm:$0xf]
    %v2079 = vld [vmem:[%s0 + $0xc2] sm:$0xff]
    %v2080 = vld [vmem:[%s0 + $0xca] sm:$0xff]
    %v2081 = vld [vmem:[%s0 + $0xd2] sm:$0xff]
    %v2082 = vld [vmem:[%s0 + $0xda] sm:$0xf]
    %v2083 = vld [vmem:[%s0 + $0xe2] sm:$0xff]
    %v2084 = vld [vmem:[%s0 + $0xea] sm:$0xff]
    %v2085 = vld [vmem:[%s0 + $0xf2] sm:$0xff]
    %v2086 = vld [vmem:[%s0 + $0xfa] sm:$0xf]
    %v2087 = vld [vmem:[%s0 + $0x102] sm:$0xff]
    %v2088 = vld [vmem:[%s0 + $0x10a] sm:$0xff]
    %v2089 = vld [vmem:[%s0 + $0x112] sm:$0xff]
    %v2090 = vld [vmem:[%s0 + $0x11a] sm:$0xf]
    %v2091 = vld [vmem:[%s0 + $0x122] sm:$0xff]
    %v2092 = vld [vmem:[%s0 + $0x12a] sm:$0xff]
    %v2093 = vld [vmem:[%s0 + $0x132] sm:$0xff]
    %v2094 = vld [vmem:[%s0 + $0x13a] sm:$0xf]
    %v2095 = vld [vmem:[%s0 + $0x142] sm:$0xff]
    %v2096 = vld [vmem:[%s0 + $0x14a] sm:$0xff]
    %v2097 = vld [vmem:[%s0 + $0x152] sm:$0xff]
    %v2098 = vld [vmem:[%s0 + $0x15a] sm:$0xf]
    %v2099 = vld [vmem:[%s0 + $0x162] sm:$0xff]
    %v2100 = vld [vmem:[%s0 + $0x16a] sm:$0xff]
    %v2101 = vld [vmem:[%s0 + $0x172] sm:$0xff]
    %v2102 = vld [vmem:[%s0 + $0x17a] sm:$0xf]
    %v2103 = vld [vmem:[%s0 + $0x182] sm:$0xff]
    %v2104 = vld [vmem:[%s0 + $0x18a] sm:$0xff]
    %v2105 = vld [vmem:[%s0 + $0x192] sm:$0xff]
    %v2106 = vld [vmem:[%s0 + $0x19a] sm:$0xf]
    %v2107 = vld [vmem:[%s0 + $0x1a2] sm:$0xff]
    %v2108 = vld [vmem:[%s0 + $0x1aa] sm:$0xff]
    %v2109 = vld [vmem:[%s0 + $0x1b2] sm:$0xff]
    %v2110 = vld [vmem:[%s0 + $0x1ba] sm:$0xf]
    %v2111 = vld [vmem:[%s0 + $0x1c2] sm:$0xff]
    %v2112 = vld [vmem:[%s0 + $0x1ca] sm:$0xff]
    %v2113 = vld [vmem:[%s0 + $0x1d2] sm:$0xff]
    %v2114 = vld [vmem:[%s0 + $0x1da] sm:$0xf]
    %v2115 = vld [vmem:[%s0 + $0x1e2] sm:$0xff]
    %v2116 = vld [vmem:[%s0 + $0x1ea] sm:$0xff]
    %v2117 = vld [vmem:[%s0 + $0x1f2] sm:$0xff]
    %v2118 = vld [vmem:[%s0 + $0x1fa] sm:$0xf]
    %v2119 = vld [vmem:[%s0 + $0x202] sm:$0xff]
    %v2120 = vld [vmem:[%s0 + $0x20a] sm:$0xff]
    %v2121 = vld [vmem:[%s0 + $0x212] sm:$0xff]
    %v2122 = vld [vmem:[%s0 + $0x21a] sm:$0xf]
    %v2123 = vld [vmem:[%s0 + $0x222] sm:$0xff]
    %v2124 = vld [vmem:[%s0 + $0x22a] sm:$0xff]
    %v2125 = vld [vmem:[%s0 + $0x232] sm:$0xff]
    %v2126 = vld [vmem:[%s0 + $0x23a] sm:$0xf]
    %v2127 = vld [vmem:[%s0 + $0x242] sm:$0xff]
    %v2128 = vld [vmem:[%s0 + $0x24a] sm:$0xff]
    %v2129 = vld [vmem:[%s0 + $0x252] sm:$0xff]
    %v2130 = vld [vmem:[%s0 + $0x25a] sm:$0xf]
    %v2131 = vld [vmem:[%s0 + $0x262] sm:$0xff]
    %v2132 = vld [vmem:[%s0 + $0x26a] sm:$0xff]
    %v2133 = vld [vmem:[%s0 + $0x272] sm:$0xff]
    %v2134 = vld [vmem:[%s0 + $0x27a] sm:$0xf]
    %v2135 = vld [vmem:[%s0 + $0x282] sm:$0xff]
    %v2136 = vld [vmem:[%s0 + $0x28a] sm:$0xff]
    %v2137 = vld [vmem:[%s0 + $0x292] sm:$0xff]
    %v2138 = vld [vmem:[%s0 + $0x29a] sm:$0xf]
    %v2139 = vld [vmem:[%s0 + $0x2a2] sm:$0xff]
    %v2140 = vld [vmem:[%s0 + $0x2aa] sm:$0xff]
    %v2141 = vld [vmem:[%s0 + $0x2b2] sm:$0xff]
    %v2142 = vld [vmem:[%s0 + $0x2ba] sm:$0xf]
    %v2143 = vld [vmem:[%s0 + $0x2c2] sm:$0xff]
    %v2144 = vld [vmem:[%s0 + $0x2ca] sm:$0xff]
    %v2145 = vld [vmem:[%s0 + $0x2d2] sm:$0xff]
    %v2146 = vld [vmem:[%s0 + $0x2da] sm:$0xf]
    %v2147 = vld [vmem:[%s0 + $0x2e2] sm:$0xff]
    %v2148 = vld [vmem:[%s0 + $0x2ea] sm:$0xff]
    %v2149 = vld [vmem:[%s0 + $0x2f2] sm:$0xff]
    %v2150 = vld [vmem:[%s0 + $0x2fa] sm:$0xf]
    %v2151 = vld [vmem:[%s0 + $0x302] sm:$0xff]
    %v2152 = vld [vmem:[%s0 + $0x30a] sm:$0xff]
    %v2153 = vld [vmem:[%s0 + $0x312] sm:$0xff]
    %v2154 = vld [vmem:[%s0 + $0x31a] sm:$0xf]
    %v2155 = vld [vmem:[%s0 + $0x322] sm:$0xff]
    %v2156 = vld [vmem:[%s0 + $0x32a] sm:$0xff]
    %v2157 = vld [vmem:[%s0 + $0x332] sm:$0xff]
    %v2158 = vld [vmem:[%s0 + $0x33a] sm:$0xf]
    %v2159 = vld [vmem:[%s0 + $0x342] sm:$0xff]
    %v2160 = vld [vmem:[%s0 + $0x34a] sm:$0xff]
    %v2161 = vld [vmem:[%s0 + $0x352] sm:$0xff]
    %v2162 = vld [vmem:[%s0 + $0x35a] sm:$0xf]
    %v2163 = vld [vmem:[%s0 + $0x362] sm:$0xff]
    %v2164 = vld [vmem:[%s0 + $0x36a] sm:$0xff]
    %v2165 = vld [vmem:[%s0 + $0x372] sm:$0xff]
    %v2166 = vld [vmem:[%s0 + $0x37a] sm:$0xf]
    %v2167 = vstv %s2054
    %v2168 = vmul.f32 %v2167, %v2055
    %v2169 = vmul.f32 %v2167, %v2056
    %v2170 = vmul.f32 %v2167, %v2057
    %v2171 = vmul.f32 %v2167, %v2058
    %v2172 = vmul.f32 %v2167, %v2059
    %v2173 = vmul.f32 %v2167, %v2060
    %v2174 = vmul.f32 %v2167, %v2061
    %v2175 = vmul.f32 %v2167, %v2062
    %v2176 = vmul.f32 %v2167, %v2063
    %v2177 = vmul.f32 %v2167, %v2064
    %v2178 = vmul.f32 %v2167, %v2065
    %v2179 = vmul.f32 %v2167, %v2066
    %v2180 = vmul.f32 %v2167, %v2067
    %v2181 = vmul.f32 %v2167, %v2068
    %v2182 = vmul.f32 %v2167, %v2069
    %v2183 = vmul.f32 %v2167, %v2070
    %v2184 = vmul.f32 %v2167, %v2071
    %v2185 = vmul.f32 %v2167, %v2072
    %v2186 = vmul.f32 %v2167, %v2073
    %v2187 = vmul.f32 %v2167, %v2074
    %v2188 = vmul.f32 %v2167, %v2075
    %v2189 = vmul.f32 %v2167, %v2076
    %v2190 = vmul.f32 %v2167, %v2077
    %v2191 = vmul.f32 %v2167, %v2078
    %v2192 = vmul.f32 %v2167, %v2079
    %v2193 = vmul.f32 %v2167, %v2080
    %v2194 = vmul.f32 %v2167, %v2081
    %v2195 = vmul.f32 %v2167, %v2082
    %v2196 = vmul.f32 %v2167, %v2083
    %v2197 = vmul.f32 %v2167, %v2084
    %v2198 = vmul.f32 %v2167, %v2085
    %v2199 = vmul.f32 %v2167, %v2086
    %v2200 = vmul.f32 %v2167, %v2087
    %v2201 = vmul.f32 %v2167, %v2088
    %v2202 = vmul.f32 %v2167, %v2089
    %v2203 = vmul.f32 %v2167, %v2090
    %v2204 = vmul.f32 %v2167, %v2091
    %v2205 = vmul.f32 %v2167, %v2092
    %v2206 = vmul.f32 %v2167, %v2093
    %v2207 = vmul.f32 %v2167, %v2094
    %v2208 = vmul.f32 %v2167, %v2095
    %v2209 = vmul.f32 %v2167, %v2096
    %v2210 = vmul.f32 %v2167, %v2097
    %v2211 = vmul.f32 %v2167, %v2098
    %v2212 = vmul.f32 %v2167, %v2099
    %v2213 = vmul.f32 %v2167, %v2100
    %v2214 = vmul.f32 %v2167, %v2101
    %v2215 = vmul.f32 %v2167, %v2102
    %v2216 = vmul.f32 %v2167, %v2103
    %v2217 = vmul.f32 %v2167, %v2104
    %v2218 = vmul.f32 %v2167, %v2105
    %v2219 = vmul.f32 %v2167, %v2106
    %v2220 = vmul.f32 %v2167, %v2107
    %v2221 = vmul.f32 %v2167, %v2108
    %v2222 = vmul.f32 %v2167, %v2109
    %v2223 = vmul.f32 %v2167, %v2110
    %v2224 = vmul.f32 %v2167, %v2111
    %v2225 = vmul.f32 %v2167, %v2112
    %v2226 = vmul.f32 %v2167, %v2113
    %v2227 = vmul.f32 %v2167, %v2114
    %v2228 = vmul.f32 %v2167, %v2115
    %v2229 = vmul.f32 %v2167, %v2116
    %v2230 = vmul.f32 %v2167, %v2117
    %v2231 = vmul.f32 %v2167, %v2118
    %v2232 = vmul.f32 %v2167, %v2119
    %v2233 = vmul.f32 %v2167, %v2120
    %v2234 = vmul.f32 %v2167, %v2121
    %v2235 = vmul.f32 %v2167, %v2122
    %v2236 = vmul.f32 %v2167, %v2123
    %v2237 = vmul.f32 %v2167, %v2124
    %v2238 = vmul.f32 %v2167, %v2125
    %v2239 = vmul.f32 %v2167, %v2126
    %v2240 = vmul.f32 %v2167, %v2127
    %v2241 = vmul.f32 %v2167, %v2128
    %v2242 = vmul.f32 %v2167, %v2129
    %v2243 = vmul.f32 %v2167, %v2130
    %v2244 = vmul.f32 %v2167, %v2131
    %v2245 = vmul.f32 %v2167, %v2132
    %v2246 = vmul.f32 %v2167, %v2133
    %v2247 = vmul.f32 %v2167, %v2134
    %v2248 = vmul.f32 %v2167, %v2135
    %v2249 = vmul.f32 %v2167, %v2136
    %v2250 = vmul.f32 %v2167, %v2137
    %v2251 = vmul.f32 %v2167, %v2138
    %v2252 = vmul.f32 %v2167, %v2139
    %v2253 = vmul.f32 %v2167, %v2140
    %v2254 = vmul.f32 %v2167, %v2141
    %v2255 = vmul.f32 %v2167, %v2142
    %v2256 = vmul.f32 %v2167, %v2143
    %v2257 = vmul.f32 %v2167, %v2144
    %v2258 = vmul.f32 %v2167, %v2145
    %v2259 = vmul.f32 %v2167, %v2146
    %v2260 = vmul.f32 %v2167, %v2147
    %v2261 = vmul.f32 %v2167, %v2148
    %v2262 = vmul.f32 %v2167, %v2149
    %v2263 = vmul.f32 %v2167, %v2150
    %v2264 = vmul.f32 %v2167, %v2151
    %v2265 = vmul.f32 %v2167, %v2152
    %v2266 = vmul.f32 %v2167, %v2153
    %v2267 = vmul.f32 %v2167, %v2154
    %v2268 = vmul.f32 %v2167, %v2155
    %v2269 = vmul.f32 %v2167, %v2156
    %v2270 = vmul.f32 %v2167, %v2157
    %v2271 = vmul.f32 %v2167, %v2158
    %v2272 = vmul.f32 %v2167, %v2159
    %v2273 = vmul.f32 %v2167, %v2160
    %v2274 = vmul.f32 %v2167, %v2161
    %v2275 = vmul.f32 %v2167, %v2162
    %v2276 = vmul.f32 %v2167, %v2163
    %v2277 = vmul.f32 %v2167, %v2164
    %v2278 = vmul.f32 %v2167, %v2165
    %v2279 = vmul.f32 %v2167, %v2166
    %v2280 = vadd.f32 %v1942, %v2168
    %v2281 = vadd.f32 %v1943, %v2169
    %v2282 = vadd.f32 %v1944, %v2170
    %v2283 = vadd.f32 %v1945, %v2171
    %v2284 = vadd.f32 %v1946, %v2172
    %v2285 = vadd.f32 %v1947, %v2173
    %v2286 = vadd.f32 %v1948, %v2174
    %v2287 = vadd.f32 %v1949, %v2175
    %v2288 = vadd.f32 %v1950, %v2176
    %v2289 = vadd.f32 %v1951, %v2177
    %v2290 = vadd.f32 %v1952, %v2178
    %v2291 = vadd.f32 %v1953, %v2179
    %v2292 = vadd.f32 %v1954, %v2180
    %v2293 = vadd.f32 %v1955, %v2181
    %v2294 = vadd.f32 %v1956, %v2182
    %v2295 = vadd.f32 %v1957, %v2183
    %v2296 = vadd.f32 %v1958, %v2184
    %v2297 = vadd.f32 %v1959, %v2185
    %v2298 = vadd.f32 %v1960, %v2186
    %v2299 = vadd.f32 %v1961, %v2187
    %v2300 = vadd.f32 %v1962, %v2188
    %v2301 = vadd.f32 %v1963, %v2189
    %v2302 = vadd.f32 %v1964, %v2190
    %v2303 = vadd.f32 %v1965, %v2191
    %v2304 = vadd.f32 %v1966, %v2192
    %v2305 = vadd.f32 %v1967, %v2193
    %v2306 = vadd.f32 %v1968, %v2194
    %v2307 = vadd.f32 %v1969, %v2195
    %v2308 = vadd.f32 %v1970, %v2196
    %v2309 = vadd.f32 %v1971, %v2197
    %v2310 = vadd.f32 %v1972, %v2198
    %v2311 = vadd.f32 %v1973, %v2199
    %v2312 = vadd.f32 %v1974, %v2200
    %v2313 = vadd.f32 %v1975, %v2201
    %v2314 = vadd.f32 %v1976, %v2202
    %v2315 = vadd.f32 %v1977, %v2203
    %v2316 = vadd.f32 %v1978, %v2204
    %v2317 = vadd.f32 %v1979, %v2205
    %v2318 = vadd.f32 %v1980, %v2206
    %v2319 = vadd.f32 %v1981, %v2207
    %v2320 = vadd.f32 %v1982, %v2208
    %v2321 = vadd.f32 %v1983, %v2209
    %v2322 = vadd.f32 %v1984, %v2210
    %v2323 = vadd.f32 %v1985, %v2211
    %v2324 = vadd.f32 %v1986, %v2212
    %v2325 = vadd.f32 %v1987, %v2213
    %v2326 = vadd.f32 %v1988, %v2214
    %v2327 = vadd.f32 %v1989, %v2215
    %v2328 = vadd.f32 %v1990, %v2216
    %v2329 = vadd.f32 %v1991, %v2217
    %v2330 = vadd.f32 %v1992, %v2218
    %v2331 = vadd.f32 %v1993, %v2219
    %v2332 = vadd.f32 %v1994, %v2220
    %v2333 = vadd.f32 %v1995, %v2221
    %v2334 = vadd.f32 %v1996, %v2222
    %v2335 = vadd.f32 %v1997, %v2223
    %v2336 = vadd.f32 %v1998, %v2224
    %v2337 = vadd.f32 %v1999, %v2225
    %v2338 = vadd.f32 %v2000, %v2226
    %v2339 = vadd.f32 %v2001, %v2227
    %v2340 = vadd.f32 %v2002, %v2228
    %v2341 = vadd.f32 %v2003, %v2229
    %v2342 = vadd.f32 %v2004, %v2230
    %v2343 = vadd.f32 %v2005, %v2231
    %v2344 = vadd.f32 %v2006, %v2232
    %v2345 = vadd.f32 %v2007, %v2233
    %v2346 = vadd.f32 %v2008, %v2234
    %v2347 = vadd.f32 %v2009, %v2235
    %v2348 = vadd.f32 %v2010, %v2236
    %v2349 = vadd.f32 %v2011, %v2237
    %v2350 = vadd.f32 %v2012, %v2238
    %v2351 = vadd.f32 %v2013, %v2239
    %v2352 = vadd.f32 %v2014, %v2240
    %v2353 = vadd.f32 %v2015, %v2241
    %v2354 = vadd.f32 %v2016, %v2242
    %v2355 = vadd.f32 %v2017, %v2243
    %v2356 = vadd.f32 %v2018, %v2244
    %v2357 = vadd.f32 %v2019, %v2245
    %v2358 = vadd.f32 %v2020, %v2246
    %v2359 = vadd.f32 %v2021, %v2247
    %v2360 = vadd.f32 %v2022, %v2248
    %v2361 = vadd.f32 %v2023, %v2249
    %v2362 = vadd.f32 %v2024, %v2250
    %v2363 = vadd.f32 %v2025, %v2251
    %v2364 = vadd.f32 %v2026, %v2252
    %v2365 = vadd.f32 %v2027, %v2253
    %v2366 = vadd.f32 %v2028, %v2254
    %v2367 = vadd.f32 %v2029, %v2255
    %v2368 = vadd.f32 %v2030, %v2256
    %v2369 = vadd.f32 %v2031, %v2257
    %v2370 = vadd.f32 %v2032, %v2258
    %v2371 = vadd.f32 %v2033, %v2259
    %v2372 = vadd.f32 %v2034, %v2260
    %v2373 = vadd.f32 %v2035, %v2261
    %v2374 = vadd.f32 %v2036, %v2262
    %v2375 = vadd.f32 %v2037, %v2263
    %v2376 = vadd.f32 %v2038, %v2264
    %v2377 = vadd.f32 %v2039, %v2265
    %v2378 = vadd.f32 %v2040, %v2266
    %v2379 = vadd.f32 %v2041, %v2267
    %v2380 = vadd.f32 %v2042, %v2268
    %v2381 = vadd.f32 %v2043, %v2269
    %v2382 = vadd.f32 %v2044, %v2270
    %v2383 = vadd.f32 %v2045, %v2271
    %v2384 = vadd.f32 %v2046, %v2272
    %v2385 = vadd.f32 %v2047, %v2273
    %v2386 = vadd.f32 %v2048, %v2274
    %v2387 = vadd.f32 %v2049, %v2275
    %v2388 = vadd.f32 %v2050, %v2276
    %v2389 = vadd.f32 %v2051, %v2277
    %v2390 = vadd.f32 %v2052, %v2278
    %v2391 = vadd.f32 %v2053, %v2279
    %s2392 = sld [smem:[#allocation2 + $0x101]]
    %v2393 = vld [vmem:[%s0 + $0x1] sm:$0xff]
    %v2394 = vld [vmem:[%s0 + $0x9] sm:$0xff]
    %v2395 = vld [vmem:[%s0 + $0x11] sm:$0xff]
    %v2396 = vld [vmem:[%s0 + $0x19] sm:$0xf]
    %v2397 = vld [vmem:[%s0 + $0x21] sm:$0xff]
    %v2398 = vld [vmem:[%s0 + $0x29] sm:$0xff]
    %v2399 = vld [vmem:[%s0 + $0x31] sm:$0xff]
    %v2400 = vld [vmem:[%s0 + $0x39] sm:$0xf]
    %v2401 = vld [vmem:[%s0 + $0x41] sm:$0xff]
    %v2402 = vld [vmem:[%s0 + $0x49] sm:$0xff]
    %v2403 = vld [vmem:[%s0 + $0x51] sm:$0xff]
    %v2404 = vld [vmem:[%s0 + $0x59] sm:$0xf]
    %v2405 = vld [vmem:[%s0 + $0x61] sm:$0xff]
    %v2406 = vld [vmem:[%s0 + $0x69] sm:$0xff]
    %v2407 = vld [vmem:[%s0 + $0x71] sm:$0xff]
    %v2408 = vld [vmem:[%s0 + $0x79] sm:$0xf]
    %v2409 = vld [vmem:[%s0 + $0x81] sm:$0xff]
    %v2410 = vld [vmem:[%s0 + $0x89] sm:$0xff]
    %v2411 = vld [vmem:[%s0 + $0x91] sm:$0xff]
    %v2412 = vld [vmem:[%s0 + $0x99] sm:$0xf]
    %v2413 = vld [vmem:[%s0 + $0xa1] sm:$0xff]
    %v2414 = vld [vmem:[%s0 + $0xa9] sm:$0xff]
    %v2415 = vld [vmem:[%s0 + $0xb1] sm:$0xff]
    %v2416 = vld [vmem:[%s0 + $0xb9] sm:$0xf]
    %v2417 = vld [vmem:[%s0 + $0xc1] sm:$0xff]
    %v2418 = vld [vmem:[%s0 + $0xc9] sm:$0xff]
    %v2419 = vld [vmem:[%s0 + $0xd1] sm:$0xff]
    %v2420 = vld [vmem:[%s0 + $0xd9] sm:$0xf]
    %v2421 = vld [vmem:[%s0 + $0xe1] sm:$0xff]
    %v2422 = vld [vmem:[%s0 + $0xe9] sm:$0xff]
    %v2423 = vld [vmem:[%s0 + $0xf1] sm:$0xff]
    %v2424 = vld [vmem:[%s0 + $0xf9] sm:$0xf]
    %v2425 = vld [vmem:[%s0 + $0x101] sm:$0xff]
    %v2426 = vld [vmem:[%s0 + $0x109] sm:$0xff]
    %v2427 = vld [vmem:[%s0 + $0x111] sm:$0xff]
    %v2428 = vld [vmem:[%s0 + $0x119] sm:$0xf]
    %v2429 = vld [vmem:[%s0 + $0x121] sm:$0xff]
    %v2430 = vld [vmem:[%s0 + $0x129] sm:$0xff]
    %v2431 = vld [vmem:[%s0 + $0x131] sm:$0xff]
    %v2432 = vld [vmem:[%s0 + $0x139] sm:$0xf]
    %v2433 = vld [vmem:[%s0 + $0x141] sm:$0xff]
    %v2434 = vld [vmem:[%s0 + $0x149] sm:$0xff]
    %v2435 = vld [vmem:[%s0 + $0x151] sm:$0xff]
    %v2436 = vld [vmem:[%s0 + $0x159] sm:$0xf]
    %v2437 = vld [vmem:[%s0 + $0x161] sm:$0xff]
    %v2438 = vld [vmem:[%s0 + $0x169] sm:$0xff]
    %v2439 = vld [vmem:[%s0 + $0x171] sm:$0xff]
    %v2440 = vld [vmem:[%s0 + $0x179] sm:$0xf]
    %v2441 = vld [vmem:[%s0 + $0x181] sm:$0xff]
    %v2442 = vld [vmem:[%s0 + $0x189] sm:$0xff]
    %v2443 = vld [vmem:[%s0 + $0x191] sm:$0xff]
    %v2444 = vld [vmem:[%s0 + $0x199] sm:$0xf]
    %v2445 = vld [vmem:[%s0 + $0x1a1] sm:$0xff]
    %v2446 = vld [vmem:[%s0 + $0x1a9] sm:$0xff]
    %v2447 = vld [vmem:[%s0 + $0x1b1] sm:$0xff]
    %v2448 = vld [vmem:[%s0 + $0x1b9] sm:$0xf]
    %v2449 = vld [vmem:[%s0 + $0x1c1] sm:$0xff]
    %v2450 = vld [vmem:[%s0 + $0x1c9] sm:$0xff]
    %v2451 = vld [vmem:[%s0 + $0x1d1] sm:$0xff]
    %v2452 = vld [vmem:[%s0 + $0x1d9] sm:$0xf]
    %v2453 = vld [vmem:[%s0 + $0x1e1] sm:$0xff]
    %v2454 = vld [vmem:[%s0 + $0x1e9] sm:$0xff]
    %v2455 = vld [vmem:[%s0 + $0x1f1] sm:$0xff]
    %v2456 = vld [vmem:[%s0 + $0x1f9] sm:$0xf]
    %v2457 = vld [vmem:[%s0 + $0x201] sm:$0xff]
    %v2458 = vld [vmem:[%s0 + $0x209] sm:$0xff]
    %v2459 = vld [vmem:[%s0 + $0x211] sm:$0xff]
    %v2460 = vld [vmem:[%s0 + $0x219] sm:$0xf]
    %v2461 = vld [vmem:[%s0 + $0x221] sm:$0xff]
    %v2462 = vld [vmem:[%s0 + $0x229] sm:$0xff]
    %v2463 = vld [vmem:[%s0 + $0x231] sm:$0xff]
    %v2464 = vld [vmem:[%s0 + $0x239] sm:$0xf]
    %v2465 = vld [vmem:[%s0 + $0x241] sm:$0xff]
    %v2466 = vld [vmem:[%s0 + $0x249] sm:$0xff]
    %v2467 = vld [vmem:[%s0 + $0x251] sm:$0xff]
    %v2468 = vld [vmem:[%s0 + $0x259] sm:$0xf]
    %v2469 = vld [vmem:[%s0 + $0x261] sm:$0xff]
    %v2470 = vld [vmem:[%s0 + $0x269] sm:$0xff]
    %v2471 = vld [vmem:[%s0 + $0x271] sm:$0xff]
    %v2472 = vld [vmem:[%s0 + $0x279] sm:$0xf]
    %v2473 = vld [vmem:[%s0 + $0x281] sm:$0xff]
    %v2474 = vld [vmem:[%s0 + $0x289] sm:$0xff]
    %v2475 = vld [vmem:[%s0 + $0x291] sm:$0xff]
    %v2476 = vld [vmem:[%s0 + $0x299] sm:$0xf]
    %v2477 = vld [vmem:[%s0 + $0x2a1] sm:$0xff]
    %v2478 = vld [vmem:[%s0 + $0x2a9] sm:$0xff]
    %v2479 = vld [vmem:[%s0 + $0x2b1] sm:$0xff]
    %v2480 = vld [vmem:[%s0 + $0x2b9] sm:$0xf]
    %v2481 = vld [vmem:[%s0 + $0x2c1] sm:$0xff]
    %v2482 = vld [vmem:[%s0 + $0x2c9] sm:$0xff]
    %v2483 = vld [vmem:[%s0 + $0x2d1] sm:$0xff]
    %v2484 = vld [vmem:[%s0 + $0x2d9] sm:$0xf]
    %v2485 = vld [vmem:[%s0 + $0x2e1] sm:$0xff]
    %v2486 = vld [vmem:[%s0 + $0x2e9] sm:$0xff]
    %v2487 = vld [vmem:[%s0 + $0x2f1] sm:$0xff]
    %v2488 = vld [vmem:[%s0 + $0x2f9] sm:$0xf]
    %v2489 = vld [vmem:[%s0 + $0x301] sm:$0xff]
    %v2490 = vld [vmem:[%s0 + $0x309] sm:$0xff]
    %v2491 = vld [vmem:[%s0 + $0x311] sm:$0xff]
    %v2492 = vld [vmem:[%s0 + $0x319] sm:$0xf]
    %v2493 = vld [vmem:[%s0 + $0x321] sm:$0xff]
    %v2494 = vld [vmem:[%s0 + $0x329] sm:$0xff]
    %v2495 = vld [vmem:[%s0 + $0x331] sm:$0xff]
    %v2496 = vld [vmem:[%s0 + $0x339] sm:$0xf]
    %v2497 = vld [vmem:[%s0 + $0x341] sm:$0xff]
    %v2498 = vld [vmem:[%s0 + $0x349] sm:$0xff]
    %v2499 = vld [vmem:[%s0 + $0x351] sm:$0xff]
    %v2500 = vld [vmem:[%s0 + $0x359] sm:$0xf]
    %v2501 = vld [vmem:[%s0 + $0x361] sm:$0xff]
    %v2502 = vld [vmem:[%s0 + $0x369] sm:$0xff]
    %v2503 = vld [vmem:[%s0 + $0x371] sm:$0xff]
    %v2504 = vld [vmem:[%s0 + $0x379] sm:$0xf]
    %v2505 = vstv %s2392
    %v2506 = vmul.f32 %v2505, %v2393
    %v2507 = vmul.f32 %v2505, %v2394
    %v2508 = vmul.f32 %v2505, %v2395
    %v2509 = vmul.f32 %v2505, %v2396
    %v2510 = vmul.f32 %v2505, %v2397
    %v2511 = vmul.f32 %v2505, %v2398
    %v2512 = vmul.f32 %v2505, %v2399
    %v2513 = vmul.f32 %v2505, %v2400
    %v2514 = vmul.f32 %v2505, %v2401
    %v2515 = vmul.f32 %v2505, %v2402
    %v2516 = vmul.f32 %v2505, %v2403
    %v2517 = vmul.f32 %v2505, %v2404
    %v2518 = vmul.f32 %v2505, %v2405
    %v2519 = vmul.f32 %v2505, %v2406
    %v2520 = vmul.f32 %v2505, %v2407
    %v2521 = vmul.f32 %v2505, %v2408
    %v2522 = vmul.f32 %v2505, %v2409
    %v2523 = vmul.f32 %v2505, %v2410
    %v2524 = vmul.f32 %v2505, %v2411
    %v2525 = vmul.f32 %v2505, %v2412
    %v2526 = vmul.f32 %v2505, %v2413
    %v2527 = vmul.f32 %v2505, %v2414
    %v2528 = vmul.f32 %v2505, %v2415
    %v2529 = vmul.f32 %v2505, %v2416
    %v2530 = vmul.f32 %v2505, %v2417
    %v2531 = vmul.f32 %v2505, %v2418
    %v2532 = vmul.f32 %v2505, %v2419
    %v2533 = vmul.f32 %v2505, %v2420
    %v2534 = vmul.f32 %v2505, %v2421
    %v2535 = vmul.f32 %v2505, %v2422
    %v2536 = vmul.f32 %v2505, %v2423
    %v2537 = vmul.f32 %v2505, %v2424
    %v2538 = vmul.f32 %v2505, %v2425
    %v2539 = vmul.f32 %v2505, %v2426
    %v2540 = vmul.f32 %v2505, %v2427
    %v2541 = vmul.f32 %v2505, %v2428
    %v2542 = vmul.f32 %v2505, %v2429
    %v2543 = vmul.f32 %v2505, %v2430
    %v2544 = vmul.f32 %v2505, %v2431
    %v2545 = vmul.f32 %v2505, %v2432
    %v2546 = vmul.f32 %v2505, %v2433
    %v2547 = vmul.f32 %v2505, %v2434
    %v2548 = vmul.f32 %v2505, %v2435
    %v2549 = vmul.f32 %v2505, %v2436
    %v2550 = vmul.f32 %v2505, %v2437
    %v2551 = vmul.f32 %v2505, %v2438
    %v2552 = vmul.f32 %v2505, %v2439
    %v2553 = vmul.f32 %v2505, %v2440
    %v2554 = vmul.f32 %v2505, %v2441
    %v2555 = vmul.f32 %v2505, %v2442
    %v2556 = vmul.f32 %v2505, %v2443
    %v2557 = vmul.f32 %v2505, %v2444
    %v2558 = vmul.f32 %v2505, %v2445
    %v2559 = vmul.f32 %v2505, %v2446
    %v2560 = vmul.f32 %v2505, %v2447
    %v2561 = vmul.f32 %v2505, %v2448
    %v2562 = vmul.f32 %v2505, %v2449
    %v2563 = vmul.f32 %v2505, %v2450
    %v2564 = vmul.f32 %v2505, %v2451
    %v2565 = vmul.f32 %v2505, %v2452
    %v2566 = vmul.f32 %v2505, %v2453
    %v2567 = vmul.f32 %v2505, %v2454
    %v2568 = vmul.f32 %v2505, %v2455
    %v2569 = vmul.f32 %v2505, %v2456
    %v2570 = vmul.f32 %v2505, %v2457
    %v2571 = vmul.f32 %v2505, %v2458
    %v2572 = vmul.f32 %v2505, %v2459
    %v2573 = vmul.f32 %v2505, %v2460
    %v2574 = vmul.f32 %v2505, %v2461
    %v2575 = vmul.f32 %v2505, %v2462
    %v2576 = vmul.f32 %v2505, %v2463
    %v2577 = vmul.f32 %v2505, %v2464
    %v2578 = vmul.f32 %v2505, %v2465
    %v2579 = vmul.f32 %v2505, %v2466
    %v2580 = vmul.f32 %v2505, %v2467
    %v2581 = vmul.f32 %v2505, %v2468
    %v2582 = vmul.f32 %v2505, %v2469
    %v2583 = vmul.f32 %v2505, %v2470
    %v2584 = vmul.f32 %v2505, %v2471
    %v2585 = vmul.f32 %v2505, %v2472
    %v2586 = vmul.f32 %v2505, %v2473
    %v2587 = vmul.f32 %v2505, %v2474
    %v2588 = vmul.f32 %v2505, %v2475
    %v2589 = vmul.f32 %v2505, %v2476
    %v2590 = vmul.f32 %v2505, %v2477
    %v2591 = vmul.f32 %v2505, %v2478
    %v2592 = vmul.f32 %v2505, %v2479
    %v2593 = vmul.f32 %v2505, %v2480
    %v2594 = vmul.f32 %v2505, %v2481
    %v2595 = vmul.f32 %v2505, %v2482
    %v2596 = vmul.f32 %v2505, %v2483
    %v2597 = vmul.f32 %v2505, %v2484
    %v2598 = vmul.f32 %v2505, %v2485
    %v2599 = vmul.f32 %v2505, %v2486
    %v2600 = vmul.f32 %v2505, %v2487
    %v2601 = vmul.f32 %v2505, %v2488
    %v2602 = vmul.f32 %v2505, %v2489
    %v2603 = vmul.f32 %v2505, %v2490
    %v2604 = vmul.f32 %v2505, %v2491
    %v2605 = vmul.f32 %v2505, %v2492
    %v2606 = vmul.f32 %v2505, %v2493
    %v2607 = vmul.f32 %v2505, %v2494
    %v2608 = vmul.f32 %v2505, %v2495
    %v2609 = vmul.f32 %v2505, %v2496
    %v2610 = vmul.f32 %v2505, %v2497
    %v2611 = vmul.f32 %v2505, %v2498
    %v2612 = vmul.f32 %v2505, %v2499
    %v2613 = vmul.f32 %v2505, %v2500
    %v2614 = vmul.f32 %v2505, %v2501
    %v2615 = vmul.f32 %v2505, %v2502
    %v2616 = vmul.f32 %v2505, %v2503
    %v2617 = vmul.f32 %v2505, %v2504
    %v2618 = vadd.f32 %v2280, %v2506
    %v2619 = vadd.f32 %v2281, %v2507
    %v2620 = vadd.f32 %v2282, %v2508
    %v2621 = vadd.f32 %v2283, %v2509
    %v2622 = vadd.f32 %v2284, %v2510
    %v2623 = vadd.f32 %v2285, %v2511
    %v2624 = vadd.f32 %v2286, %v2512
    %v2625 = vadd.f32 %v2287, %v2513
    %v2626 = vadd.f32 %v2288, %v2514
    %v2627 = vadd.f32 %v2289, %v2515
    %v2628 = vadd.f32 %v2290, %v2516
    %v2629 = vadd.f32 %v2291, %v2517
    %v2630 = vadd.f32 %v2292, %v2518
    %v2631 = vadd.f32 %v2293, %v2519
    %v2632 = vadd.f32 %v2294, %v2520
    %v2633 = vadd.f32 %v2295, %v2521
    %v2634 = vadd.f32 %v2296, %v2522
    %v2635 = vadd.f32 %v2297, %v2523
    %v2636 = vadd.f32 %v2298, %v2524
    %v2637 = vadd.f32 %v2299, %v2525
    %v2638 = vadd.f32 %v2300, %v2526
    %v2639 = vadd.f32 %v2301, %v2527
    %v2640 = vadd.f32 %v2302, %v2528
    %v2641 = vadd.f32 %v2303, %v2529
    %v2642 = vadd.f32 %v2304, %v2530
    %v2643 = vadd.f32 %v2305, %v2531
    %v2644 = vadd.f32 %v2306, %v2532
    %v2645 = vadd.f32 %v2307, %v2533
    %v2646 = vadd.f32 %v2308, %v2534
    %v2647 = vadd.f32 %v2309, %v2535
    %v2648 = vadd.f32 %v2310, %v2536
    %v2649 = vadd.f32 %v2311, %v2537
    %v2650 = vadd.f32 %v2312, %v2538
    %v2651 = vadd.f32 %v2313, %v2539
    %v2652 = vadd.f32 %v2314, %v2540
    %v2653 = vadd.f32 %v2315, %v2541
    %v2654 = vadd.f32 %v2316, %v2542
    %v2655 = vadd.f32 %v2317, %v2543
    %v2656 = vadd.f32 %v2318, %v2544
    %v2657 = vadd.f32 %v2319, %v2545
    %v2658 = vadd.f32 %v2320, %v2546
    %v2659 = vadd.f32 %v2321, %v2547
    %v2660 = vadd.f32 %v2322, %v2548
    %v2661 = vadd.f32 %v2323, %v2549
    %v2662 = vadd.f32 %v2324, %v2550
    %v2663 = vadd.f32 %v2325, %v2551
    %v2664 = vadd.f32 %v2326, %v2552
    %v2665 = vadd.f32 %v2327, %v2553
    %v2666 = vadd.f32 %v2328, %v2554
    %v2667 = vadd.f32 %v2329, %v2555
    %v2668 = vadd.f32 %v2330, %v2556
    %v2669 = vadd.f32 %v2331, %v2557
    %v2670 = vadd.f32 %v2332, %v2558
    %v2671 = vadd.f32 %v2333, %v2559
    %v2672 = vadd.f32 %v2334, %v2560
    %v2673 = vadd.f32 %v2335, %v2561
    %v2674 = vadd.f32 %v2336, %v2562
    %v2675 = vadd.f32 %v2337, %v2563
    %v2676 = vadd.f32 %v2338, %v2564
    %v2677 = vadd.f32 %v2339, %v2565
    %v2678 = vadd.f32 %v2340, %v2566
    %v2679 = vadd.f32 %v2341, %v2567
    %v2680 = vadd.f32 %v2342, %v2568
    %v2681 = vadd.f32 %v2343, %v2569
    %v2682 = vadd.f32 %v2344, %v2570
    %v2683 = vadd.f32 %v2345, %v2571
    %v2684 = vadd.f32 %v2346, %v2572
    %v2685 = vadd.f32 %v2347, %v2573
    %v2686 = vadd.f32 %v2348, %v2574
    %v2687 = vadd.f32 %v2349, %v2575
    %v2688 = vadd.f32 %v2350, %v2576
    %v2689 = vadd.f32 %v2351, %v2577
    %v2690 = vadd.f32 %v2352, %v2578
    %v2691 = vadd.f32 %v2353, %v2579
    %v2692 = vadd.f32 %v2354, %v2580
    %v2693 = vadd.f32 %v2355, %v2581
    %v2694 = vadd.f32 %v2356, %v2582
    %v2695 = vadd.f32 %v2357, %v2583
    %v2696 = vadd.f32 %v2358, %v2584
    %v2697 = vadd.f32 %v2359, %v2585
    %v2698 = vadd.f32 %v2360, %v2586
    %v2699 = vadd.f32 %v2361, %v2587
    %v2700 = vadd.f32 %v2362, %v2588
    %v2701 = vadd.f32 %v2363, %v2589
    %v2702 = vadd.f32 %v2364, %v2590
    %v2703 = vadd.f32 %v2365, %v2591
    %v2704 = vadd.f32 %v2366, %v2592
    %v2705 = vadd.f32 %v2367, %v2593
    %v2706 = vadd.f32 %v2368, %v2594
    %v2707 = vadd.f32 %v2369, %v2595
    %v2708 = vadd.f32 %v2370, %v2596
    %v2709 = vadd.f32 %v2371, %v2597
    %v2710 = vadd.f32 %v2372, %v2598
    %v2711 = vadd.f32 %v2373, %v2599
    %v2712 = vadd.f32 %v2374, %v2600
    %v2713 = vadd.f32 %v2375, %v2601
    %v2714 = vadd.f32 %v2376, %v2602
    %v2715 = vadd.f32 %v2377, %v2603
    %v2716 = vadd.f32 %v2378, %v2604
    %v2717 = vadd.f32 %v2379, %v2605
    %v2718 = vadd.f32 %v2380, %v2606
    %v2719 = vadd.f32 %v2381, %v2607
    %v2720 = vadd.f32 %v2382, %v2608
    %v2721 = vadd.f32 %v2383, %v2609
    %v2722 = vadd.f32 %v2384, %v2610
    %v2723 = vadd.f32 %v2385, %v2611
    %v2724 = vadd.f32 %v2386, %v2612
    %v2725 = vadd.f32 %v2387, %v2613
    %v2726 = vadd.f32 %v2388, %v2614
    %v2727 = vadd.f32 %v2389, %v2615
    %v2728 = vadd.f32 %v2390, %v2616
    %v2729 = vadd.f32 %v2391, %v2617
    %s2730 = sld [smem:[#allocation2 + $0x102]]
    %v2731 = vld [vmem:[%s0] sm:$0xff]
    %v2732 = vld [vmem:[%s0 + $0x8] sm:$0xff]
    %v2733 = vld [vmem:[%s0 + $0x10] sm:$0xff]
    %v2734 = vld [vmem:[%s0 + $0x18] sm:$0xf]
    %v2735 = vld [vmem:[%s0 + $0x20] sm:$0xff]
    %v2736 = vld [vmem:[%s0 + $0x28] sm:$0xff]
    %v2737 = vld [vmem:[%s0 + $0x30] sm:$0xff]
    %v2738 = vld [vmem:[%s0 + $0x38] sm:$0xf]
    %v2739 = vld [vmem:[%s0 + $0x40] sm:$0xff]
    %v2740 = vld [vmem:[%s0 + $0x48] sm:$0xff]
    %v2741 = vld [vmem:[%s0 + $0x50] sm:$0xff]
    %v2742 = vld [vmem:[%s0 + $0x58] sm:$0xf]
    %v2743 = vld [vmem:[%s0 + $0x60] sm:$0xff]
    %v2744 = vld [vmem:[%s0 + $0x68] sm:$0xff]
    %v2745 = vld [vmem:[%s0 + $0x70] sm:$0xff]
    %v2746 = vld [vmem:[%s0 + $0x78] sm:$0xf]
    %v2747 = vld [vmem:[%s0 + $0x80] sm:$0xff]
    %v2748 = vld [vmem:[%s0 + $0x88] sm:$0xff]
    %v2749 = vld [vmem:[%s0 + $0x90] sm:$0xff]
    %v2750 = vld [vmem:[%s0 + $0x98] sm:$0xf]
    %v2751 = vld [vmem:[%s0 + $0xa0] sm:$0xff]
    %v2752 = vld [vmem:[%s0 + $0xa8] sm:$0xff]
    %v2753 = vld [vmem:[%s0 + $0xb0] sm:$0xff]
    %v2754 = vld [vmem:[%s0 + $0xb8] sm:$0xf]
    %v2755 = vld [vmem:[%s0 + $0xc0] sm:$0xff]
    %v2756 = vld [vmem:[%s0 + $0xc8] sm:$0xff]
    %v2757 = vld [vmem:[%s0 + $0xd0] sm:$0xff]
    %v2758 = vld [vmem:[%s0 + $0xd8] sm:$0xf]
    %v2759 = vld [vmem:[%s0 + $0xe0] sm:$0xff]
    %v2760 = vld [vmem:[%s0 + $0xe8] sm:$0xff]
    %v2761 = vld [vmem:[%s0 + $0xf0] sm:$0xff]
    %v2762 = vld [vmem:[%s0 + $0xf8] sm:$0xf]
    %v2763 = vld [vmem:[%s0 + $0x100] sm:$0xff]
    %v2764 = vld [vmem:[%s0 + $0x108] sm:$0xff]
    %v2765 = vld [vmem:[%s0 + $0x110] sm:$0xff]
    %v2766 = vld [vmem:[%s0 + $0x118] sm:$0xf]
    %v2767 = vld [vmem:[%s0 + $0x120] sm:$0xff]
    %v2768 = vld [vmem:[%s0 + $0x128] sm:$0xff]
    %v2769 = vld [vmem:[%s0 + $0x130] sm:$0xff]
    %v2770 = vld [vmem:[%s0 + $0x138] sm:$0xf]
    %v2771 = vld [vmem:[%s0 + $0x140] sm:$0xff]
    %v2772 = vld [vmem:[%s0 + $0x148] sm:$0xff]
    %v2773 = vld [vmem:[%s0 + $0x150] sm:$0xff]
    %v2774 = vld [vmem:[%s0 + $0x158] sm:$0xf]
    %v2775 = vld [vmem:[%s0 + $0x160] sm:$0xff]
    %v2776 = vld [vmem:[%s0 + $0x168] sm:$0xff]
    %v2777 = vld [vmem:[%s0 + $0x170] sm:$0xff]
    %v2778 = vld [vmem:[%s0 + $0x178] sm:$0xf]
    %v2779 = vld [vmem:[%s0 + $0x180] sm:$0xff]
    %v2780 = vld [vmem:[%s0 + $0x188] sm:$0xff]
    %v2781 = vld [vmem:[%s0 + $0x190] sm:$0xff]
    %v2782 = vld [vmem:[%s0 + $0x198] sm:$0xf]
    %v2783 = vld [vmem:[%s0 + $0x1a0] sm:$0xff]
    %v2784 = vld [vmem:[%s0 + $0x1a8] sm:$0xff]
    %v2785 = vld [vmem:[%s0 + $0x1b0] sm:$0xff]
    %v2786 = vld [vmem:[%s0 + $0x1b8] sm:$0xf]
    %v2787 = vld [vmem:[%s0 + $0x1c0] sm:$0xff]
    %v2788 = vld [vmem:[%s0 + $0x1c8] sm:$0xff]
    %v2789 = vld [vmem:[%s0 + $0x1d0] sm:$0xff]
    %v2790 = vld [vmem:[%s0 + $0x1d8] sm:$0xf]
    %v2791 = vld [vmem:[%s0 + $0x1e0] sm:$0xff]
    %v2792 = vld [vmem:[%s0 + $0x1e8] sm:$0xff]
    %v2793 = vld [vmem:[%s0 + $0x1f0] sm:$0xff]
    %v2794 = vld [vmem:[%s0 + $0x1f8] sm:$0xf]
    %v2795 = vld [vmem:[%s0 + $0x200] sm:$0xff]
    %v2796 = vld [vmem:[%s0 + $0x208] sm:$0xff]
    %v2797 = vld [vmem:[%s0 + $0x210] sm:$0xff]
    %v2798 = vld [vmem:[%s0 + $0x218] sm:$0xf]
    %v2799 = vld [vmem:[%s0 + $0x220] sm:$0xff]
    %v2800 = vld [vmem:[%s0 + $0x228] sm:$0xff]
    %v2801 = vld [vmem:[%s0 + $0x230] sm:$0xff]
    %v2802 = vld [vmem:[%s0 + $0x238] sm:$0xf]
    %v2803 = vld [vmem:[%s0 + $0x240] sm:$0xff]
    %v2804 = vld [vmem:[%s0 + $0x248] sm:$0xff]
    %v2805 = vld [vmem:[%s0 + $0x250] sm:$0xff]
    %v2806 = vld [vmem:[%s0 + $0x258] sm:$0xf]
    %v2807 = vld [vmem:[%s0 + $0x260] sm:$0xff]
    %v2808 = vld [vmem:[%s0 + $0x268] sm:$0xff]
    %v2809 = vld [vmem:[%s0 + $0x270] sm:$0xff]
    %v2810 = vld [vmem:[%s0 + $0x278] sm:$0xf]
    %v2811 = vld [vmem:[%s0 + $0x280] sm:$0xff]
    %v2812 = vld [vmem:[%s0 + $0x288] sm:$0xff]
    %v2813 = vld [vmem:[%s0 + $0x290] sm:$0xff]
    %v2814 = vld [vmem:[%s0 + $0x298] sm:$0xf]
    %v2815 = vld [vmem:[%s0 + $0x2a0] sm:$0xff]
    %v2816 = vld [vmem:[%s0 + $0x2a8] sm:$0xff]
    %v2817 = vld [vmem:[%s0 + $0x2b0] sm:$0xff]
    %v2818 = vld [vmem:[%s0 + $0x2b8] sm:$0xf]
    %v2819 = vld [vmem:[%s0 + $0x2c0] sm:$0xff]
    %v2820 = vld [vmem:[%s0 + $0x2c8] sm:$0xff]
    %v2821 = vld [vmem:[%s0 + $0x2d0] sm:$0xff]
    %v2822 = vld [vmem:[%s0 + $0x2d8] sm:$0xf]
    %v2823 = vld [vmem:[%s0 + $0x2e0] sm:$0xff]
    %v2824 = vld [vmem:[%s0 + $0x2e8] sm:$0xff]
    %v2825 = vld [vmem:[%s0 + $0x2f0] sm:$0xff]
    %v2826 = vld [vmem:[%s0 + $0x2f8] sm:$0xf]
    %v2827 = vld [vmem:[%s0 + $0x300] sm:$0xff]
    %v2828 = vld [vmem:[%s0 + $0x308] sm:$0xff]
    %v2829 = vld [vmem:[%s0 + $0x310] sm:$0xff]
    %v2830 = vld [vmem:[%s0 + $0x318] sm:$0xf]
    %v2831 = vld [vmem:[%s0 + $0x320] sm:$0xff]
    %v2832 = vld [vmem:[%s0 + $0x328] sm:$0xff]
    %v2833 = vld [vmem:[%s0 + $0x330] sm:$0xff]
    %v2834 = vld [vmem:[%s0 + $0x338] sm:$0xf]
    %v2835 = vld [vmem:[%s0 + $0x340] sm:$0xff]
    %v2836 = vld [vmem:[%s0 + $0x348] sm:$0xff]
    %v2837 = vld [vmem:[%s0 + $0x350] sm:$0xff]
    %v2838 = vld [vmem:[%s0 + $0x358] sm:$0xf]
    %v2839 = vld [vmem:[%s0 + $0x360] sm:$0xff]
    %v2840 = vld [vmem:[%s0 + $0x368] sm:$0xff]
    %v2841 = vld [vmem:[%s0 + $0x370] sm:$0xff]
    %v2842 = vld [vmem:[%s0 + $0x378] sm:$0xf]
    %v2843 = vstv %s2730
    %v2844 = vmul.f32 %v2843, %v2731
    %v2845 = vmul.f32 %v2843, %v2732
    %v2846 = vmul.f32 %v2843, %v2733
    %v2847 = vmul.f32 %v2843, %v2734
    %v2848 = vmul.f32 %v2843, %v2735
    %v2849 = vmul.f32 %v2843, %v2736
    %v2850 = vmul.f32 %v2843, %v2737
    %v2851 = vmul.f32 %v2843, %v2738
    %v2852 = vmul.f32 %v2843, %v2739
    %v2853 = vmul.f32 %v2843, %v2740
    %v2854 = vmul.f32 %v2843, %v2741
    %v2855 = vmul.f32 %v2843, %v2742
    %v2856 = vmul.f32 %v2843, %v2743
    %v2857 = vmul.f32 %v2843, %v2744
    %v2858 = vmul.f32 %v2843, %v2745
    %v2859 = vmul.f32 %v2843, %v2746
    %v2860 = vmul.f32 %v2843, %v2747
    %v2861 = vmul.f32 %v2843, %v2748
    %v2862 = vmul.f32 %v2843, %v2749
    %v2863 = vmul.f32 %v2843, %v2750
    %v2864 = vmul.f32 %v2843, %v2751
    %v2865 = vmul.f32 %v2843, %v2752
    %v2866 = vmul.f32 %v2843, %v2753
    %v2867 = vmul.f32 %v2843, %v2754
    %v2868 = vmul.f32 %v2843, %v2755
    %v2869 = vmul.f32 %v2843, %v2756
    %v2870 = vmul.f32 %v2843, %v2757
    %v2871 = vmul.f32 %v2843, %v2758
    %v2872 = vmul.f32 %v2843, %v2759
    %v2873 = vmul.f32 %v2843, %v2760
    %v2874 = vmul.f32 %v2843, %v2761
    %v2875 = vmul.f32 %v2843, %v2762
    %v2876 = vmul.f32 %v2843, %v2763
    %v2877 = vmul.f32 %v2843, %v2764
    %v2878 = vmul.f32 %v2843, %v2765
    %v2879 = vmul.f32 %v2843, %v2766
    %v2880 = vmul.f32 %v2843, %v2767
    %v2881 = vmul.f32 %v2843, %v2768
    %v2882 = vmul.f32 %v2843, %v2769
    %v2883 = vmul.f32 %v2843, %v2770
    %v2884 = vmul.f32 %v2843, %v2771
    %v2885 = vmul.f32 %v2843, %v2772
    %v2886 = vmul.f32 %v2843, %v2773
    %v2887 = vmul.f32 %v2843, %v2774
    %v2888 = vmul.f32 %v2843, %v2775
    %v2889 = vmul.f32 %v2843, %v2776
    %v2890 = vmul.f32 %v2843, %v2777
    %v2891 = vmul.f32 %v2843, %v2778
    %v2892 = vmul.f32 %v2843, %v2779
    %v2893 = vmul.f32 %v2843, %v2780
    %v2894 = vmul.f32 %v2843, %v2781
    %v2895 = vmul.f32 %v2843, %v2782
    %v2896 = vmul.f32 %v2843, %v2783
    %v2897 = vmul.f32 %v2843, %v2784
    %v2898 = vmul.f32 %v2843, %v2785
    %v2899 = vmul.f32 %v2843, %v2786
    %v2900 = vmul.f32 %v2843, %v2787
    %v2901 = vmul.f32 %v2843, %v2788
    %v2902 = vmul.f32 %v2843, %v2789
    %v2903 = vmul.f32 %v2843, %v2790
    %v2904 = vmul.f32 %v2843, %v2791
    %v2905 = vmul.f32 %v2843, %v2792
    %v2906 = vmul.f32 %v2843, %v2793
    %v2907 = vmul.f32 %v2843, %v2794
    %v2908 = vmul.f32 %v2843, %v2795
    %v2909 = vmul.f32 %v2843, %v2796
    %v2910 = vmul.f32 %v2843, %v2797
    %v2911 = vmul.f32 %v2843, %v2798
    %v2912 = vmul.f32 %v2843, %v2799
    %v2913 = vmul.f32 %v2843, %v2800
    %v2914 = vmul.f32 %v2843, %v2801
    %v2915 = vmul.f32 %v2843, %v2802
    %v2916 = vmul.f32 %v2843, %v2803
    %v2917 = vmul.f32 %v2843, %v2804
    %v2918 = vmul.f32 %v2843, %v2805
    %v2919 = vmul.f32 %v2843, %v2806
    %v2920 = vmul.f32 %v2843, %v2807
    %v2921 = vmul.f32 %v2843, %v2808
    %v2922 = vmul.f32 %v2843, %v2809
    %v2923 = vmul.f32 %v2843, %v2810
    %v2924 = vmul.f32 %v2843, %v2811
    %v2925 = vmul.f32 %v2843, %v2812
    %v2926 = vmul.f32 %v2843, %v2813
    %v2927 = vmul.f32 %v2843, %v2814
    %v2928 = vmul.f32 %v2843, %v2815
    %v2929 = vmul.f32 %v2843, %v2816
    %v2930 = vmul.f32 %v2843, %v2817
    %v2931 = vmul.f32 %v2843, %v2818
    %v2932 = vmul.f32 %v2843, %v2819
    %v2933 = vmul.f32 %v2843, %v2820
    %v2934 = vmul.f32 %v2843, %v2821
    %v2935 = vmul.f32 %v2843, %v2822
    %v2936 = vmul.f32 %v2843, %v2823
    %v2937 = vmul.f32 %v2843, %v2824
    %v2938 = vmul.f32 %v2843, %v2825
    %v2939 = vmul.f32 %v2843, %v2826
    %v2940 = vmul.f32 %v2843, %v2827
    %v2941 = vmul.f32 %v2843, %v2828
    %v2942 = vmul.f32 %v2843, %v2829
    %v2943 = vmul.f32 %v2843, %v2830
    %v2944 = vmul.f32 %v2843, %v2831
    %v2945 = vmul.f32 %v2843, %v2832
    %v2946 = vmul.f32 %v2843, %v2833
    %v2947 = vmul.f32 %v2843, %v2834
    %v2948 = vmul.f32 %v2843, %v2835
    %v2949 = vmul.f32 %v2843, %v2836
    %v2950 = vmul.f32 %v2843, %v2837
    %v2951 = vmul.f32 %v2843, %v2838
    %v2952 = vmul.f32 %v2843, %v2839
    %v2953 = vmul.f32 %v2843, %v2840
    %v2954 = vmul.f32 %v2843, %v2841
    %v2955 = vmul.f32 %v2843, %v2842
    %v2956 = vadd.f32 %v2618, %v2844
    %v2957 = vadd.f32 %v2619, %v2845
    %v2958 = vadd.f32 %v2620, %v2846
    %v2959 = vadd.f32 %v2621, %v2847
    %v2960 = vadd.f32 %v2622, %v2848
    %v2961 = vadd.f32 %v2623, %v2849
    %v2962 = vadd.f32 %v2624, %v2850
    %v2963 = vadd.f32 %v2625, %v2851
    %v2964 = vadd.f32 %v2626, %v2852
    %v2965 = vadd.f32 %v2627, %v2853
    %v2966 = vadd.f32 %v2628, %v2854
    %v2967 = vadd.f32 %v2629, %v2855
    %v2968 = vadd.f32 %v2630, %v2856
    %v2969 = vadd.f32 %v2631, %v2857
    %v2970 = vadd.f32 %v2632, %v2858
    %v2971 = vadd.f32 %v2633, %v2859
    %v2972 = vadd.f32 %v2634, %v2860
    %v2973 = vadd.f32 %v2635, %v2861
    %v2974 = vadd.f32 %v2636, %v2862
    %v2975 = vadd.f32 %v2637, %v2863
    %v2976 = vadd.f32 %v2638, %v2864
    %v2977 = vadd.f32 %v2639, %v2865
    %v2978 = vadd.f32 %v2640, %v2866
    %v2979 = vadd.f32 %v2641, %v2867
    %v2980 = vadd.f32 %v2642, %v2868
    %v2981 = vadd.f32 %v2643, %v2869
    %v2982 = vadd.f32 %v2644, %v2870
    %v2983 = vadd.f32 %v2645, %v2871
    %v2984 = vadd.f32 %v2646, %v2872
    %v2985 = vadd.f32 %v2647, %v2873
    %v2986 = vadd.f32 %v2648, %v2874
    %v2987 = vadd.f32 %v2649, %v2875
    %v2988 = vadd.f32 %v2650, %v2876
    %v2989 = vadd.f32 %v2651, %v2877
    %v2990 = vadd.f32 %v2652, %v2878
    %v2991 = vadd.f32 %v2653, %v2879
    %v2992 = vadd.f32 %v2654, %v2880
    %v2993 = vadd.f32 %v2655, %v2881
    %v2994 = vadd.f32 %v2656, %v2882
    %v2995 = vadd.f32 %v2657, %v2883
    %v2996 = vadd.f32 %v2658, %v2884
    %v2997 = vadd.f32 %v2659, %v2885
    %v2998 = vadd.f32 %v2660, %v2886
    %v2999 = vadd.f32 %v2661, %v2887
    %v3000 = vadd.f32 %v2662, %v2888
    %v3001 = vadd.f32 %v2663, %v2889
    %v3002 = vadd.f32 %v2664, %v2890
    %v3003 = vadd.f32 %v2665, %v2891
    %v3004 = vadd.f32 %v2666, %v2892
    %v3005 = vadd.f32 %v2667, %v2893
    %v3006 = vadd.f32 %v2668, %v2894
    %v3007 = vadd.f32 %v2669, %v2895
    %v3008 = vadd.f32 %v2670, %v2896
    %v3009 = vadd.f32 %v2671, %v2897
    %v3010 = vadd.f32 %v2672, %v2898
    %v3011 = vadd.f32 %v2673, %v2899
    %v3012 = vadd.f32 %v2674, %v2900
    %v3013 = vadd.f32 %v2675, %v2901
    %v3014 = vadd.f32 %v2676, %v2902
    %v3015 = vadd.f32 %v2677, %v2903
    %v3016 = vadd.f32 %v2678, %v2904
    %v3017 = vadd.f32 %v2679, %v2905
    %v3018 = vadd.f32 %v2680, %v2906
    %v3019 = vadd.f32 %v2681, %v2907
    %v3020 = vadd.f32 %v2682, %v2908
    %v3021 = vadd.f32 %v2683, %v2909
    %v3022 = vadd.f32 %v2684, %v2910
    %v3023 = vadd.f32 %v2685, %v2911
    %v3024 = vadd.f32 %v2686, %v2912
    %v3025 = vadd.f32 %v2687, %v2913
    %v3026 = vadd.f32 %v2688, %v2914
    %v3027 = vadd.f32 %v2689, %v2915
    %v3028 = vadd.f32 %v2690, %v2916
    %v3029 = vadd.f32 %v2691, %v2917
    %v3030 = vadd.f32 %v2692, %v2918
    %v3031 = vadd.f32 %v2693, %v2919
    %v3032 = vadd.f32 %v2694, %v2920
    %v3033 = vadd.f32 %v2695, %v2921
    %v3034 = vadd.f32 %v2696, %v2922
    %v3035 = vadd.f32 %v2697, %v2923
    %v3036 = vadd.f32 %v2698, %v2924
    %v3037 = vadd.f32 %v2699, %v2925
    %v3038 = vadd.f32 %v2700, %v2926
    %v3039 = vadd.f32 %v2701, %v2927
    %v3040 = vadd.f32 %v2702, %v2928
    %v3041 = vadd.f32 %v2703, %v2929
    %v3042 = vadd.f32 %v2704, %v2930
    %v3043 = vadd.f32 %v2705, %v2931
    %v3044 = vadd.f32 %v2706, %v2932
    %v3045 = vadd.f32 %v2707, %v2933
    %v3046 = vadd.f32 %v2708, %v2934
    %v3047 = vadd.f32 %v2709, %v2935
    %v3048 = vadd.f32 %v2710, %v2936
    %v3049 = vadd.f32 %v2711, %v2937
    %v3050 = vadd.f32 %v2712, %v2938
    %v3051 = vadd.f32 %v2713, %v2939
    %v3052 = vadd.f32 %v2714, %v2940
    %v3053 = vadd.f32 %v2715, %v2941
    %v3054 = vadd.f32 %v2716, %v2942
    %v3055 = vadd.f32 %v2717, %v2943
    %v3056 = vadd.f32 %v2718, %v2944
    %v3057 = vadd.f32 %v2719, %v2945
    %v3058 = vadd.f32 %v2720, %v2946
    %v3059 = vadd.f32 %v2721, %v2947
    %v3060 = vadd.f32 %v2722, %v2948
    %v3061 = vadd.f32 %v2723, %v2949
    %v3062 = vadd.f32 %v2724, %v2950
    %v3063 = vadd.f32 %v2725, %v2951
    %v3064 = vadd.f32 %v2726, %v2952
    %v3065 = vadd.f32 %v2727, %v2953
    %v3066 = vadd.f32 %v2728, %v2954
    %v3067 = vadd.f32 %v2729, %v2955
    %3068 = vst [vmem:[%s2] sm:$0xff] %v2956
    %3069 = vst [vmem:[%s2 + $0x8] sm:$0xff] %v2957
    %3070 = vst [vmem:[%s2 + $0x10] sm:$0xff] %v2958
    %3071 = vst [vmem:[%s2 + $0x18] sm:$0xf] %v2959
    %3072 = vst [vmem:[%s2 + $0x20] sm:$0xff] %v2960
    %3073 = vst [vmem:[%s2 + $0x28] sm:$0xff] %v2961
    %3074 = vst [vmem:[%s2 + $0x30] sm:$0xff] %v2962
    %3075 = vst [vmem:[%s2 + $0x38] sm:$0xf] %v2963
    %3076 = vst [vmem:[%s2 + $0x40] sm:$0xff] %v2964
    %3077 = vst [vmem:[%s2 + $0x48] sm:$0xff] %v2965
    %3078 = vst [vmem:[%s2 + $0x50] sm:$0xff] %v2966
    %3079 = vst [vmem:[%s2 + $0x58] sm:$0xf] %v2967
    %3080 = vst [vmem:[%s2 + $0x60] sm:$0xff] %v2968
    %3081 = vst [vmem:[%s2 + $0x68] sm:$0xff] %v2969
    %3082 = vst [vmem:[%s2 + $0x70] sm:$0xff] %v2970
    %3083 = vst [vmem:[%s2 + $0x78] sm:$0xf] %v2971
    %3084 = vst [vmem:[%s2 + $0x80] sm:$0xff] %v2972
    %3085 = vst [vmem:[%s2 + $0x88] sm:$0xff] %v2973
    %3086 = vst [vmem:[%s2 + $0x90] sm:$0xff] %v2974
    %3087 = vst [vmem:[%s2 + $0x98] sm:$0xf] %v2975
    %3088 = vst [vmem:[%s2 + $0xa0] sm:$0xff] %v2976
    %3089 = vst [vmem:[%s2 + $0xa8] sm:$0xff] %v2977
    %3090 = vst [vmem:[%s2 + $0xb0] sm:$0xff] %v2978
    %3091 = vst [vmem:[%s2 + $0xb8] sm:$0xf] %v2979
    %3092 = vst [vmem:[%s2 + $0xc0] sm:$0xff] %v2980
    %3093 = vst [vmem:[%s2 + $0xc8] sm:$0xff] %v2981
    %3094 = vst [vmem:[%s2 + $0xd0] sm:$0xff] %v2982
    %3095 = vst [vmem:[%s2 + $0xd8] sm:$0xf] %v2983
    %3096 = vst [vmem:[%s2 + $0xe0] sm:$0xff] %v2984
    %3097 = vst [vmem:[%s2 + $0xe8] sm:$0xff] %v2985
    %3098 = vst [vmem:[%s2 + $0xf0] sm:$0xff] %v2986
    %3099 = vst [vmem:[%s2 + $0xf8] sm:$0xf] %v2987
    %3100 = vst [vmem:[%s2 + $0x100] sm:$0xff] %v2988
    %3101 = vst [vmem:[%s2 + $0x108] sm:$0xff] %v2989
    %3102 = vst [vmem:[%s2 + $0x110] sm:$0xff] %v2990
    %3103 = vst [vmem:[%s2 + $0x118] sm:$0xf] %v2991
    %3104 = vst [vmem:[%s2 + $0x120] sm:$0xff] %v2992
    %3105 = vst [vmem:[%s2 + $0x128] sm:$0xff] %v2993
    %3106 = vst [vmem:[%s2 + $0x130] sm:$0xff] %v2994
    %3107 = vst [vmem:[%s2 + $0x138] sm:$0xf] %v2995
    %3108 = vst [vmem:[%s2 + $0x140] sm:$0xff] %v2996
    %3109 = vst [vmem:[%s2 + $0x148] sm:$0xff] %v2997
    %3110 = vst [vmem:[%s2 + $0x150] sm:$0xff] %v2998
    %3111 = vst [vmem:[%s2 + $0x158] sm:$0xf] %v2999
    %3112 = vst [vmem:[%s2 + $0x160] sm:$0xff] %v3000
    %3113 = vst [vmem:[%s2 + $0x168] sm:$0xff] %v3001
    %3114 = vst [vmem:[%s2 + $0x170] sm:$0xff] %v3002
    %3115 = vst [vmem:[%s2 + $0x178] sm:$0xf] %v3003
    %3116 = vst [vmem:[%s2 + $0x180] sm:$0xff] %v3004
    %3117 = vst [vmem:[%s2 + $0x188] sm:$0xff] %v3005
    %3118 = vst [vmem:[%s2 + $0x190] sm:$0xff] %v3006
    %3119 = vst [vmem:[%s2 + $0x198] sm:$0xf] %v3007
    %3120 = vst [vmem:[%s2 + $0x1a0] sm:$0xff] %v3008
    %3121 = vst [vmem:[%s2 + $0x1a8] sm:$0xff] %v3009
    %3122 = vst [vmem:[%s2 + $0x1b0] sm:$0xff] %v3010
    %3123 = vst [vmem:[%s2 + $0x1b8] sm:$0xf] %v3011
    %3124 = vst [vmem:[%s2 + $0x1c0] sm:$0xff] %v3012
    %3125 = vst [vmem:[%s2 + $0x1c8] sm:$0xff] %v3013
    %3126 = vst [vmem:[%s2 + $0x1d0] sm:$0xff] %v3014
    %3127 = vst [vmem:[%s2 + $0x1d8] sm:$0xf] %v3015
    %3128 = vst [vmem:[%s2 + $0x1e0] sm:$0xff] %v3016
    %3129 = vst [vmem:[%s2 + $0x1e8] sm:$0xff] %v3017
    %3130 = vst [vmem:[%s2 + $0x1f0] sm:$0xff] %v3018
    %3131 = vst [vmem:[%s2 + $0x1f8] sm:$0xf] %v3019
    %3132 = vst [vmem:[%s2 + $0x200] sm:$0xff] %v3020
    %3133 = vst [vmem:[%s2 + $0x208] sm:$0xff] %v3021
    %3134 = vst [vmem:[%s2 + $0x210] sm:$0xff] %v3022
    %3135 = vst [vmem:[%s2 + $0x218] sm:$0xf] %v3023
    %3136 = vst [vmem:[%s2 + $0x220] sm:$0xff] %v3024
    %3137 = vst [vmem:[%s2 + $0x228] sm:$0xff] %v3025
    %3138 = vst [vmem:[%s2 + $0x230] sm:$0xff] %v3026
    %3139 = vst [vmem:[%s2 + $0x238] sm:$0xf] %v3027
    %3140 = vst [vmem:[%s2 + $0x240] sm:$0xff] %v3028
    %3141 = vst [vmem:[%s2 + $0x248] sm:$0xff] %v3029
    %3142 = vst [vmem:[%s2 + $0x250] sm:$0xff] %v3030
    %3143 = vst [vmem:[%s2 + $0x258] sm:$0xf] %v3031
    %3144 = vst [vmem:[%s2 + $0x260] sm:$0xff] %v3032
    %3145 = vst [vmem:[%s2 + $0x268] sm:$0xff] %v3033
    %3146 = vst [vmem:[%s2 + $0x270] sm:$0xff] %v3034
    %3147 = vst [vmem:[%s2 + $0x278] sm:$0xf] %v3035
    %3148 = vst [vmem:[%s2 + $0x280] sm:$0xff] %v3036
    %3149 = vst [vmem:[%s2 + $0x288] sm:$0xff] %v3037
    %3150 = vst [vmem:[%s2 + $0x290] sm:$0xff] %v3038
    %3151 = vst [vmem:[%s2 + $0x298] sm:$0xf] %v3039
    %3152 = vst [vmem:[%s2 + $0x2a0] sm:$0xff] %v3040
    %3153 = vst [vmem:[%s2 + $0x2a8] sm:$0xff] %v3041
    %3154 = vst [vmem:[%s2 + $0x2b0] sm:$0xff] %v3042
    %3155 = vst [vmem:[%s2 + $0x2b8] sm:$0xf] %v3043
    %3156 = vst [vmem:[%s2 + $0x2c0] sm:$0xff] %v3044
    %3157 = vst [vmem:[%s2 + $0x2c8] sm:$0xff] %v3045
    %3158 = vst [vmem:[%s2 + $0x2d0] sm:$0xff] %v3046
    %3159 = vst [vmem:[%s2 + $0x2d8] sm:$0xf] %v3047
    %3160 = vst [vmem:[%s2 + $0x2e0] sm:$0xff] %v3048
    %3161 = vst [vmem:[%s2 + $0x2e8] sm:$0xff] %v3049
    %3162 = vst [vmem:[%s2 + $0x2f0] sm:$0xff] %v3050
    %3163 = vst [vmem:[%s2 + $0x2f8] sm:$0xf] %v3051
    %3164 = vst [vmem:[%s2 + $0x300] sm:$0xff] %v3052
    %3165 = vst [vmem:[%s2 + $0x308] sm:$0xff] %v3053
    %3166 = vst [vmem:[%s2 + $0x310] sm:$0xff] %v3054
    %3167 = vst [vmem:[%s2 + $0x318] sm:$0xf] %v3055
    %3168 = vst [vmem:[%s2 + $0x320] sm:$0xff] %v3056
    %3169 = vst [vmem:[%s2 + $0x328] sm:$0xff] %v3057
    %3170 = vst [vmem:[%s2 + $0x330] sm:$0xff] %v3058
    %3171 = vst [vmem:[%s2 + $0x338] sm:$0xf] %v3059
    %3172 = vst [vmem:[%s2 + $0x340] sm:$0xff] %v3060
    %3173 = vst [vmem:[%s2 + $0x348] sm:$0xff] %v3061
    %3174 = vst [vmem:[%s2 + $0x350] sm:$0xff] %v3062
    %3175 = vst [vmem:[%s2 + $0x358] sm:$0xf] %v3063
    %3176 = vst [vmem:[%s2 + $0x360] sm:$0xff] %v3064
    %3177 = vst [vmem:[%s2 + $0x368] sm:$0xff] %v3065
    %3178 = vst [vmem:[%s2 + $0x370] sm:$0xff] %v3066
    %3179 = vst [vmem:[%s2 + $0x378] sm:$0xf] %v3067
    // Predicated region
    $region14: #{quantized_cnn_forward.2} parent=1 // pred_check
      _
    $region15: #{quantized_cnn_forward.2} parent=1 // pred_check_branch
      %3181 = sbr.rel (0) target = $region17
    $region16: #{quantized_cnn_forward.2} parent=1 // pred_region
      _
    $region17: #{quantized_cnn_forward.2} parent=1 // pred_fallthru
      _
    // Predicated region
    $region18: #{quantized_cnn_forward.2} parent=1 // pred_check
      _
    $region19: #{quantized_cnn_forward.2} parent=1 // pred_check_branch
      %3183 = sbr.rel (0) target = $region21
    $region20: #{quantized_cnn_forward.2} parent=1 // pred_region
      _
    $region21: #{quantized_cnn_forward.2} parent=1 // pred_fallthru
      _
    %3184 = vsyncpa [#allocation3], 1

</llo_original>
